<compile_context>
chip_gen: v6e
topology: v6e:2x2x1
jax: 0.10.0
libtpu: 0.0.40
codegen_flags: <defaults>
</compile_context>

<pallas_src>
import jax
import jax.numpy as jnp
from jax import lax
from jax.experimental import pallas as pl
from jax.experimental.pallas import tpu as pltpu


# -----------------------------------------------------------------------------
# Host-side layout helpers
# -----------------------------------------------------------------------------
def _fuse_gate_cols(a_f, a_b, H):
    """Interleave per-gate column blocks (PyTorch order i,f,g,o) of two (..., 4H)
    arrays into a (..., 8H) array laid out as [i_f i_b f_f f_b g_f g_b o_f o_b]."""
    parts = []
    for g in range(4):
        parts.append(a_f[..., g * H:(g + 1) * H])
        parts.append(a_b[..., g * H:(g + 1) * H])
    return jnp.concatenate(parts, axis=-1)


def _pack_inputs(params, x, h0, c0, num_layers, hidden_size, output_size):
    H = hidden_size
    B, num_features = x.shape
    T = num_features // 2
    D = 2
    B_pad = ((B + 7) // 8) * 8
    FCP = 128  # padded FC hidden / output lane width

    # Sequence input: row for step s = [x(s), x(T-1-s)]  (fwd + bwd chains fused).
    x_seq = jnp.transpose(x.reshape(B, D, T), (2, 0, 1))                 # (T, B, 2)
    x_seq = jnp.pad(x_seq, ((0, 0), (0, B_pad - B), (0, 0)))             # (T, 8, 2)
    xin0 = jnp.concatenate([x_seq, x_seq[::-1]], axis=-1).reshape(T * B_pad, 2 * D)

    # Initial state per layer: [h_f0 | h_b0 | c_f0 | c_b0]  (B_pad, 4H = 128 lanes).
    states = []
    for l in range(num_layers):
        hc0 = jnp.concatenate([h0[2 * l], h0[2 * l + 1]], axis=-1)
        cc0 = jnp.concatenate([c0[2 * l], c0[2 * l + 1]], axis=-1)
        st = jnp.concatenate([hc0, cc0], axis=-1)                        # (B, 4H)
        states.append(jnp.pad(st, ((0, B_pad - B), (0, 0))))
    state0 = jnp.stack(states, axis=0)                                   # (L, B_pad, 4H)

    # Fused LSTM weights.
    wih0 = None
    wih_rest, whh_list, b_list = [], [], []
    for l in range(num_layers):
        pf, pb = params["lstm"][l]
        zH = jnp.zeros((H, 4 * H), jnp.float32)
        # Block-diagonal recurrent weights: rows 0:H driven by h_f, rows H:2H by h_b.
        whh_list.append(jnp.concatenate(
            [_fuse_gate_cols(pf["whh_t"], zH, H),
             _fuse_gate_cols(zH, pb["whh_t"], H)], axis=0))              # (2H, 8H)
        b_list.append(_fuse_gate_cols(pf["b"], pb["b"], H))              # (1, 8H)
        wf, wb = pf["wih_t"], pb["wih_t"]
        if l == 0:
            zD = jnp.zeros_like(wf)
            wih0 = jnp.concatenate([_fuse_gate_cols(wf, zD, H),
                                    _fuse_gate_cols(zD, wb, H)], axis=0)  # (2D, 8H)
        else:
            # Layer-l input rows come from seq_scr: [h_f(s), h_b(T-1-s), h_f(T-1-s), h_b(s)].
            # Shuffle W_ih rows on the host so ONE matmul produces both directions' gates.
            wih_rest.append(jnp.concatenate(
                [_fuse_gate_cols(wf[0:H], zH, H),          # h_f(s)      -> fwd gates
                 _fuse_gate_cols(zH, wb[H:2 * H], H),      # h_b(T-1-s)  -> bwd gates
                 _fuse_gate_cols(zH, wb[0:H], H),          # h_f(T-1-s)  -> bwd gates
                 _fuse_gate_cols(wf[H:2 * H], zH, H)],     # h_b(s)      -> fwd gates
                axis=0))                                                  # (4H, 8H)
    whh_stack = jnp.stack(whh_list, axis=0)                               # (L, 2H, 8H)
    b_stack = jnp.stack(b_list, axis=0)                                   # (L, 1, 8H)
    if wih_rest:
        wihr_stack = jnp.stack(wih_rest, axis=0)                          # (L-1, 4H, 8H)
    else:
        wihr_stack = jnp.zeros((1, 4 * H, 8 * H), jnp.float32)            # dummy (unused)

    # FC head blob, zero-padded to 128 lanes (no nonlinearity between fc and fc1,
    # so zero padding is exact). Row layout: [fc_w_t(2H) | fc_b(8) | fc1_w_t(128) | fc1_b(8)].
    n_fc_hidden = params["fc_w_t"].shape[1]                               # 100
    fcw = jnp.zeros((2 * H, FCP), jnp.float32).at[:, :n_fc_hidden].set(params["fc_w_t"])
    fcb = jnp.zeros((8, FCP), jnp.float32).at[0, :n_fc_hidden].set(params["fc_b"])
    fc1w = jnp.zeros((FCP, FCP), jnp.float32).at[:n_fc_hidden, :output_size].set(params["fc1_w_t"])
    fc1b = jnp.zeros((8, FCP), jnp.float32).at[0, :output_size].set(params["fc1_b"])
    fc_blob = jnp.concatenate([fcw, fcb, fc1w, fc1b], axis=0)             # (2H+144, 128)

    return xin0, state0, wih0, wihr_stack, whh_stack, b_stack, fc_blob, B_pad, T


# -----------------------------------------------------------------------------
# Fused kernel: all layers, both directions, FC head in one gridless pallas_call.
# -----------------------------------------------------------------------------
def _make_fused_kernel(num_layers, T, B, H):
    H2 = 2 * H          # 64
    G4 = 4 * H          # 128

    def kernel(x0_ref, state0_ref, wih0_ref, wihr_ref, whh_ref, b_ref, fc_ref,
               out_ref, xp_scr, seq_scr):
        h_f_last = None
        h_b_last = None
        for l in range(num_layers):
            # ---- batched input projection for ALL time steps (one MXU call) ----
            if l == 0:
                xp = jnp.dot(x0_ref[...], wih0_ref[...],
                             preferred_element_type=jnp.float32)          # (T*B, 8H)
            else:
                xp = jnp.dot(seq_scr[...], wihr_ref[l - 1],
                             preferred_element_type=jnp.float32)
            xp_scr[...] = xp + b_ref[l]

            whh = whh_ref[l]                      # (2H, 8H) block-diag recurrent weights
            st = state0_ref[l]                    # (B, 4H): [h_f0 | h_b0 | c_f0 | c_b0]
            hc = st[:, 0:H2]                      # (B, 2H) = [h_f | h_b]
            cc = st[:, H2:2 * H2]                 # (B, 2H) = [c_f | c_b]

            last_layer = (l == num_layers - 1)
            for s in range(T):
                # Fused step: forward chain at time s, backward chain at time T-1-s.
                gates = xp_scr[pl.ds(s * B, B), :] + jnp.dot(
                    hc, whh, preferred_element_type=jnp.float32)          # (B, 8H)
                act_if = jax.nn.sigmoid(gates[:, 0:2 * H2])               # [i_cat | f_cat]
                i_cat = act_if[:, 0:H2]
                f_cat = act_if[:, H2:2 * H2]
                g_cat = jnp.tanh(gates[:, 2 * H2:3 * H2])
                o_cat = jax.nn.sigmoid(gates[:, 3 * H2:4 * H2])
                cc = f_cat * cc + i_cat * g_cat
                hc = o_cat * jnp.tanh(cc)
                if not last_layer:
                    # seq_scr row r = [hc_step(r) | hc_step(T-1-r)]; the host-side row
                    # shuffle of the next layer's W_ih undoes this layout.
                    seq_scr[pl.ds(s * B, B), 0:H2] = hc
                    seq_scr[pl.ds((T - 1 - s) * B, B), H2:2 * H2] = hc
                else:
                    if s == 0:
                        h_b_last = hc[:, H:H2]    # backward hidden at time T-1
                    if s == T - 1:
                        h_f_last = hc[:, 0:H]     # forward hidden at time T-1

        # ---- FC head (lane-padded to 128 on the host) ----
        hid = (jnp.dot(h_f_last, fc_ref[0:H, :], preferred_element_type=jnp.float32)
               + jnp.dot(h_b_last, fc_ref[H:H2, :], preferred_element_type=jnp.float32)
               + fc_ref[H2:H2 + 1, :])                                     # (B, 128)
        out = (jnp.dot(hid, fc_ref[H2 + 8:H2 + 8 + G4, :],
                       preferred_element_type=jnp.float32)
               + fc_ref[H2 + 8 + G4:H2 + 9 + G4, :])                       # (B, 128)
        out_ref[...] = out.astype(out_ref.dtype)

    return kernel


def forward_pallas(params, x, h0, c0, num_layers, hidden_size, output_size):
    B = x.shape[0]
    H = hidden_size
    (xin0, state0, wih0, wihr, whh, bias, fc_blob, B_pad, T) = _pack_inputs(
        params, x, h0, c0, num_layers, hidden_size, output_size)

    OUT_PAD = 128
    kernel = _make_fused_kernel(num_layers, T, B_pad, H)
    in_specs = [pl.BlockSpec(memory_space=pltpu.MemorySpace.VMEM) for _ in range(7)]
    out_pad = pl.pallas_call(
        kernel,
        out_shape=jax.ShapeDtypeStruct((B_pad, OUT_PAD), jnp.float32),
        in_specs=in_specs,
        out_specs=pl.BlockSpec(memory_space=pltpu.MemorySpace.VMEM),
        scratch_shapes=[pltpu.VMEM((T * B_pad, 8 * H), jnp.float32),   # per-layer xp
                        pltpu.VMEM((T * B_pad, 4 * H), jnp.float32)],  # bidi layer output
    )(xin0, state0, wih0, wihr, whh, bias, fc_blob)
    return out_pad[:B, :output_size]


# -----------------------------------------------------------------------------
# Parameter init (deterministic; mirrors nn.LSTM / nn.Linear shapes).
# -----------------------------------------------------------------------------
def init_params(key, input_size, hidden_size, num_layers, output_size):
    params = {"lstm": []}
    k = 1.0 / float(hidden_size) ** 0.5
    n_lstm_keys = num_layers * 2 * 4
    keys = jax.random.split(key, n_lstm_keys + 4)
    idx = 0
    for layer in range(num_layers):
        layer_in = input_size if layer == 0 else 2 * hidden_size
        dirs = []
        for _d in range(2):  # forward, backward
            w_ih = jax.random.uniform(keys[idx], (4 * hidden_size, layer_in),
                                      minval=-k, maxval=k, dtype=jnp.float32); idx += 1
            w_hh = jax.random.uniform(keys[idx], (4 * hidden_size, hidden_size),
                                      minval=-k, maxval=k, dtype=jnp.float32); idx += 1
            b_ih = jax.random.uniform(keys[idx], (4 * hidden_size,),
                                      minval=-k, maxval=k, dtype=jnp.float32); idx += 1
            b_hh = jax.random.uniform(keys[idx], (4 * hidden_size,),
                                      minval=-k, maxval=k, dtype=jnp.float32); idx += 1
            dirs.append({"wih_t": w_ih.T,
                         "whh_t": w_hh.T,
                         "b": (b_ih + b_hh).reshape(1, -1)})
        params["lstm"].append(dirs)

    k_fc = 1.0 / float(2 * hidden_size) ** 0.5
    w_fc = jax.random.uniform(keys[idx], (100, 2 * hidden_size),
                              minval=-k_fc, maxval=k_fc, dtype=jnp.float32); idx += 1
    b_fc = jax.random.uniform(keys[idx], (100,),
                              minval=-k_fc, maxval=k_fc, dtype=jnp.float32); idx += 1
    k_fc1 = 1.0 / float(100) ** 0.5
    w_fc1 = jax.random.uniform(keys[idx], (output_size, 100),
                               minval=-k_fc1, maxval=k_fc1, dtype=jnp.float32); idx += 1
    b_fc1 = jax.random.uniform(keys[idx], (output_size,),
                               minval=-k_fc1, maxval=k_fc1, dtype=jnp.float32); idx += 1
    params["fc_w_t"] = w_fc.T
    params["fc_b"] = b_fc
    params["fc1_w_t"] = w_fc1.T
    params["fc1_b"] = b_fc1
    return params


# -----------------------------------------------------------------------------
# Pure-JAX reference (for correctness check only).
# -----------------------------------------------------------------------------
def _lstm_layer_ref(x_seq, wih_t, whh_t, b, h0, c0):
    H = h0.shape[-1]

    def step(carry, x_t):
        h, c = carry
        gates = x_t @ wih_t + h @ whh_t + b
        i = jax.nn.sigmoid(gates[:, 0:H])
        f = jax.nn.sigmoid(gates[:, H:2 * H])
        g = jnp.tanh(gates[:, 2 * H:3 * H])
        o = jax.nn.sigmoid(gates[:, 3 * H:4 * H])
        c_new = f * c + i * g
        h_new = o * jnp.tanh(c_new)
        return (h_new, c_new), h_new

    _, outs = lax.scan(step, (h0, c0), x_seq)
    return outs


def forward_ref(params, x, h0, c0, num_layers):
    B, num_features = x.shape
    T = num_features // 2
    layer_in = jnp.transpose(x.reshape(B, 2, T), (2, 0, 1))          # (T, B, 2)
    for l in range(num_layers):
        pf, pb = params["lstm"][l]
        out_f = _lstm_layer_ref(layer_in, pf["wih_t"], pf["whh_t"], pf["b"],
                                h0[2 * l], c0[2 * l])
        out_b = _lstm_layer_ref(layer_in[::-1], pb["wih_t"], pb["whh_t"], pb["b"],
                                h0[2 * l + 1], c0[2 * l + 1])[::-1]
        layer_in = jnp.concatenate([out_f, out_b], axis=-1)
    last = layer_in[-1]
    h = last @ params["fc_w_t"] + params["fc_b"]
    return h @ params["fc1_w_t"] + params["fc1_b"]


if __name__ == "__main__":
    # The module's reshape implies input_size=2, seq_len = num_features // 2.
    input_size = 2
    hidden_size = 32           # 4H = 128 -> one lane width per direction's gate vector
    num_layers = 2
    output_size = 5
    batch = 2
    num_features = 16          # -> seq_len T = 8

    key = jax.random.PRNGKey(0)
    kp, kx, kh, kc = jax.random.split(key, 4)
    params = init_params(kp, input_size, hidden_size, num_layers, output_size)

    x = jax.random.normal(kx, (batch, num_features), dtype=jnp.float32)
    # TODO(synk): the PyTorch module draws h0/c0 with torch.randn inside forward();
    # here they are deterministic inputs instead.
    h0 = jax.random.normal(kh, (2 * num_layers, batch, hidden_size), dtype=jnp.float32)
    c0 = jax.random.normal(kc, (2 * num_layers, batch, hidden_size), dtype=jnp.float32)

    out = forward_pallas(params, x, h0, c0, num_layers, hidden_size, output_size)
    out = jax.block_until_ready(out)

    ref = forward_ref(params, x, h0, c0, num_layers)
    ref = jax.block_until_ready(ref)

    assert out.shape == (batch, output_size)
    assert jnp.allclose(out, ref, atol=5e-4, rtol=5e-4), "Pallas/ref mismatch"
    print("KERNEL_OK")
</pallas_src>

<mosaic_0001>
module attributes {stable_mosaic.version = 11 : i64} {
  func.func @kernel(%arg0: memref<64x4xf32, #tpu.memory_space<vmem>>, %arg1: memref<2x8x128xf32, #tpu.memory_space<vmem>>, %arg2: memref<4x256xf32, #tpu.memory_space<vmem>>, %arg3: memref<1x128x256xf32, #tpu.memory_space<vmem>>, %arg4: memref<2x64x256xf32, #tpu.memory_space<vmem>>, %arg5: memref<2x1x256xf32, #tpu.memory_space<vmem>>, %arg6: memref<208x128xf32, #tpu.memory_space<vmem>>, %arg7: memref<8x128xf32, #tpu.memory_space<vmem>>, %arg8: memref<64x256xf32, #tpu.memory_space<vmem>>, %arg9: memref<64x128xf32, #tpu.memory_space<vmem>>) attributes {dimension_semantics = [], scalar_prefetch = 0 : i64, scratch_operands = 2 : i64, tpu.core_type = #tpu.core_type<tc>} {
    %c0 = arith.constant 0 : index
    %c0_0 = arith.constant 0 : index
    %0 = vector.load %arg0[%c0, %c0_0] : memref<64x4xf32, #tpu.memory_space<vmem>>, vector<64x4xf32>
    %c0_1 = arith.constant 0 : index
    %c0_2 = arith.constant 0 : index
    %1 = vector.load %arg2[%c0_1, %c0_2] : memref<4x256xf32, #tpu.memory_space<vmem>>, vector<4x256xf32>
    %cst = arith.constant dense<0.000000e+00> : vector<64x256xf32>
    %2 = tpu.matmul %0, %1, %cst {dimension_numbers = #tpu.dot_dimension_numbers<[1], [0], [0], [1], [0, 0, 1, 1], [], []>} : vector<64x4xf32>, vector<4x256xf32>, vector<64x256xf32> -> vector<64x256xf32>
    %c0_3 = arith.constant 0 : index
    %c0_4 = arith.constant 0 : index
    %c0_5 = arith.constant 0 : index
    %3 = vector.load %arg5[%c0_3, %c0_4, %c0_5] : memref<2x1x256xf32, #tpu.memory_space<vmem>>, vector<1x1x256xf32>
    %4 = vector.shape_cast %3 : vector<1x1x256xf32> to vector<1x256xf32>
    %5 = vector.broadcast %4 : vector<1x256xf32> to vector<64x256xf32>
    %6 = arith.addf %2, %5 : vector<64x256xf32>
    %c0_6 = arith.constant 0 : index
    %c0_7 = arith.constant 0 : index
    %7 = vector.load %arg8[%c0_6, %c0_7] : memref<64x256xf32, #tpu.memory_space<vmem>>, vector<64x256xf32>
    tpu.vector_store %arg8[%c0_6, %c0_7], %6 {strides = array<i32>} : memref<64x256xf32, #tpu.memory_space<vmem>>, vector<64x256xf32>,
    %c0_8 = arith.constant 0 : index
    %c0_9 = arith.constant 0 : index
    %c0_10 = arith.constant 0 : index
    %8 = vector.load %arg4[%c0_8, %c0_9, %c0_10] : memref<2x64x256xf32, #tpu.memory_space<vmem>>, vector<1x64x256xf32>
    %9 = vector.shape_cast %8 : vector<1x64x256xf32> to vector<64x256xf32>
    %c0_11 = arith.constant 0 : index
    %c0_12 = arith.constant 0 : index
    %c0_13 = arith.constant 0 : index
    %10 = vector.load %arg1[%c0_11, %c0_12, %c0_13] : memref<2x8x128xf32, #tpu.memory_space<vmem>>, vector<1x8x128xf32>
    %11 = vector.shape_cast %10 : vector<1x8x128xf32> to vector<8x128xf32>
    %12 = vector.extract_strided_slice %11 {offsets = [0, 0], sizes = [8, 64], strides = [1, 1]} : vector<8x128xf32> to vector<8x64xf32>
    %13 = vector.extract_strided_slice %11 {offsets = [0, 64], sizes = [8, 64], strides = [1, 1]} : vector<8x128xf32> to vector<8x64xf32>
    %c0_14 = arith.constant 0 : index
    %c0_15 = arith.constant 0 : index
    %14 = vector.load %arg8[%c0_14, %c0_15] : memref<64x256xf32, #tpu.memory_space<vmem>>, vector<8x256xf32>
    %cst_16 = arith.constant dense<0.000000e+00> : vector<8x256xf32>
    %15 = tpu.matmul %12, %9, %cst_16 {dimension_numbers = #tpu.dot_dimension_numbers<[1], [0], [0], [1], [0, 0, 1, 1], [], []>} : vector<8x64xf32>, vector<64x256xf32>, vector<8x256xf32> -> vector<8x256xf32>
    %16 = arith.addf %14, %15 : vector<8x256xf32>
    %17 = vector.extract_strided_slice %16 {offsets = [0, 0], sizes = [8, 128], strides = [1, 1]} : vector<8x256xf32> to vector<8x128xf32>
    %18 = arith.negf %17 : vector<8x128xf32>
    %19 = math.exp %18 : vector<8x128xf32>
    %cst_17 = arith.constant 1.000000e+00 : f32
    %20 = vector.broadcast %cst_17 : f32 to vector<8x128xf32>
    %21 = arith.addf %20, %19 : vector<8x128xf32>
    %22 = arith.divf %20, %21 : vector<8x128xf32>
    %23 = vector.extract_strided_slice %22 {offsets = [0, 0], sizes = [8, 64], strides = [1, 1]} : vector<8x128xf32> to vector<8x64xf32>
    %24 = vector.extract_strided_slice %22 {offsets = [0, 64], sizes = [8, 64], strides = [1, 1]} : vector<8x128xf32> to vector<8x64xf32>
    %25 = vector.extract_strided_slice %16 {offsets = [0, 128], sizes = [8, 64], strides = [1, 1]} : vector<8x256xf32> to vector<8x64xf32>
    %26 = math.tanh %25 : vector<8x64xf32>
    %27 = vector.extract_strided_slice %16 {offsets = [0, 192], sizes = [8, 64], strides = [1, 1]} : vector<8x256xf32> to vector<8x64xf32>
    %28 = arith.negf %27 : vector<8x64xf32>
    %29 = math.exp %28 : vector<8x64xf32>
    %cst_18 = arith.constant 1.000000e+00 : f32
    %30 = vector.broadcast %cst_18 : f32 to vector<8x64xf32>
    %31 = arith.addf %30, %29 : vector<8x64xf32>
    %32 = arith.divf %30, %31 : vector<8x64xf32>
    %33 = arith.mulf %24, %13 : vector<8x64xf32>
    %34 = arith.mulf %23, %26 : vector<8x64xf32>
    %35 = arith.addf %33, %34 : vector<8x64xf32>
    %36 = math.tanh %35 : vector<8x64xf32>
    %37 = arith.mulf %32, %36 : vector<8x64xf32>
    %c0_19 = arith.constant 0 : index
    %c0_20 = arith.constant 0 : index
    %38 = vector.load %arg9[%c0_19, %c0_20] : memref<64x128xf32, #tpu.memory_space<vmem>>, vector<8x64xf32>
    tpu.vector_store %arg9[%c0_19, %c0_20], %37 {strides = array<i32>} : memref<64x128xf32, #tpu.memory_space<vmem>>, vector<8x64xf32>,
    %c56 = arith.constant 56 : index
    %c64 = arith.constant 64 : index
    %39 = vector.load %arg9[%c56, %c64] : memref<64x128xf32, #tpu.memory_space<vmem>>, vector<8x64xf32>
    tpu.vector_store %arg9[%c56, %c64], %37 {strides = array<i32>} : memref<64x128xf32, #tpu.memory_space<vmem>>, vector<8x64xf32>,
    %c8 = arith.constant 8 : index
    %c0_21 = arith.constant 0 : index
    %40 = vector.load %arg8[%c8, %c0_21] : memref<64x256xf32, #tpu.memory_space<vmem>>, vector<8x256xf32>
    %cst_22 = arith.constant dense<0.000000e+00> : vector<8x256xf32>
    %41 = tpu.matmul %37, %9, %cst_22 {dimension_numbers = #tpu.dot_dimension_numbers<[1], [0], [0], [1], [0, 0, 1, 1], [], []>} : vector<8x64xf32>, vector<64x256xf32>, vector<8x256xf32> -> vector<8x256xf32>
    %42 = arith.addf %40, %41 : vector<8x256xf32>
    %43 = vector.extract_strided_slice %42 {offsets = [0, 0], sizes = [8, 128], strides = [1, 1]} : vector<8x256xf32> to vector<8x128xf32>
    %44 = arith.negf %43 : vector<8x128xf32>
    %45 = math.exp %44 : vector<8x128xf32>
    %cst_23 = arith.constant 1.000000e+00 : f32
    %46 = vector.broadcast %cst_23 : f32 to vector<8x128xf32>
    %47 = arith.addf %46, %45 : vector<8x128xf32>
    %48 = arith.divf %46, %47 : vector<8x128xf32>
    %49 = vector.extract_strided_slice %48 {offsets = [0, 0], sizes = [8, 64], strides = [1, 1]} : vector<8x128xf32> to vector<8x64xf32>
    %50 = vector.extract_strided_slice %48 {offsets = [0, 64], sizes = [8, 64], strides = [1, 1]} : vector<8x128xf32> to vector<8x64xf32>
    %51 = vector.extract_strided_slice %42 {offsets = [0, 128], sizes = [8, 64], strides = [1, 1]} : vector<8x256xf32> to vector<8x64xf32>
    %52 = math.tanh %51 : vector<8x64xf32>
    %53 = vector.extract_strided_slice %42 {offsets = [0, 192], sizes = [8, 64], strides = [1, 1]} : vector<8x256xf32> to vector<8x64xf32>
    %54 = arith.negf %53 : vector<8x64xf32>
    %55 = math.exp %54 : vector<8x64xf32>
    %cst_24 = arith.constant 1.000000e+00 : f32
    %56 = vector.broadcast %cst_24 : f32 to vector<8x64xf32>
    %57 = arith.addf %56, %55 : vector<8x64xf32>
    %58 = arith.divf %56, %57 : vector<8x64xf32>
    %59 = arith.mulf %50, %35 : vector<8x64xf32>
    %60 = arith.mulf %49, %52 : vector<8x64xf32>
    %61 = arith.addf %59, %60 : vector<8x64xf32>
    %62 = math.tanh %61 : vector<8x64xf32>
    %63 = arith.mulf %58, %62 : vector<8x64xf32>
    %c8_25 = arith.constant 8 : index
    %c0_26 = arith.constant 0 : index
    %64 = vector.load %arg9[%c8_25, %c0_26] : memref<64x128xf32, #tpu.memory_space<vmem>>, vector<8x64xf32>
    tpu.vector_store %arg9[%c8_25, %c0_26], %63 {strides = array<i32>} : memref<64x128xf32, #tpu.memory_space<vmem>>, vector<8x64xf32>,
    %c48 = arith.constant 48 : index
    %c64_27 = arith.constant 64 : index
    %65 = vector.load %arg9[%c48, %c64_27] : memref<64x128xf32, #tpu.memory_space<vmem>>, vector<8x64xf32>
    tpu.vector_store %arg9[%c48, %c64_27], %63 {strides = array<i32>} : memref<64x128xf32, #tpu.memory_space<vmem>>, vector<8x64xf32>,
    %c16 = arith.constant 16 : index
    %c0_28 = arith.constant 0 : index
    %66 = vector.load %arg8[%c16, %c0_28] : memref<64x256xf32, #tpu.memory_space<vmem>>, vector<8x256xf32>
    %cst_29 = arith.constant dense<0.000000e+00> : vector<8x256xf32>
    %67 = tpu.matmul %63, %9, %cst_29 {dimension_numbers = #tpu.dot_dimension_numbers<[1], [0], [0], [1], [0, 0, 1, 1], [], []>} : vector<8x64xf32>, vector<64x256xf32>, vector<8x256xf32> -> vector<8x256xf32>
    %68 = arith.addf %66, %67 : vector<8x256xf32>
    %69 = vector.extract_strided_slice %68 {offsets = [0, 0], sizes = [8, 128], strides = [1, 1]} : vector<8x256xf32> to vector<8x128xf32>
    %70 = arith.negf %69 : vector<8x128xf32>
    %71 = math.exp %70 : vector<8x128xf32>
    %cst_30 = arith.constant 1.000000e+00 : f32
    %72 = vector.broadcast %cst_30 : f32 to vector<8x128xf32>
    %73 = arith.addf %72, %71 : vector<8x128xf32>
    %74 = arith.divf %72, %73 : vector<8x128xf32>
    %75 = vector.extract_strided_slice %74 {offsets = [0, 0], sizes = [8, 64], strides = [1, 1]} : vector<8x128xf32> to vector<8x64xf32>
    %76 = vector.extract_strided_slice %74 {offsets = [0, 64], sizes = [8, 64], strides = [1, 1]} : vector<8x128xf32> to vector<8x64xf32>
    %77 = vector.extract_strided_slice %68 {offsets = [0, 128], sizes = [8, 64], strides = [1, 1]} : vector<8x256xf32> to vector<8x64xf32>
    %78 = math.tanh %77 : vector<8x64xf32>
    %79 = vector.extract_strided_slice %68 {offsets = [0, 192], sizes = [8, 64], strides = [1, 1]} : vector<8x256xf32> to vector<8x64xf32>
    %80 = arith.negf %79 : vector<8x64xf32>
    %81 = math.exp %80 : vector<8x64xf32>
    %cst_31 = arith.constant 1.000000e+00 : f32
    %82 = vector.broadcast %cst_31 : f32 to vector<8x64xf32>
    %83 = arith.addf %82, %81 : vector<8x64xf32>
    %84 = arith.divf %82, %83 : vector<8x64xf32>
    %85 = arith.mulf %76, %61 : vector<8x64xf32>
    %86 = arith.mulf %75, %78 : vector<8x64xf32>
    %87 = arith.addf %85, %86 : vector<8x64xf32>
    %88 = math.tanh %87 : vector<8x64xf32>
    %89 = arith.mulf %84, %88 : vector<8x64xf32>
    %c16_32 = arith.constant 16 : index
    %c0_33 = arith.constant 0 : index
    %90 = vector.load %arg9[%c16_32, %c0_33] : memref<64x128xf32, #tpu.memory_space<vmem>>, vector<8x64xf32>
    tpu.vector_store %arg9[%c16_32, %c0_33], %89 {strides = array<i32>} : memref<64x128xf32, #tpu.memory_space<vmem>>, vector<8x64xf32>,
    %c40 = arith.constant 40 : index
    %c64_34 = arith.constant 64 : index
    %91 = vector.load %arg9[%c40, %c64_34] : memref<64x128xf32, #tpu.memory_space<vmem>>, vector<8x64xf32>
    tpu.vector_store %arg9[%c40, %c64_34], %89 {strides = array<i32>} : memref<64x128xf32, #tpu.memory_space<vmem>>, vector<8x64xf32>,
    %c24 = arith.constant 24 : index
    %c0_35 = arith.constant 0 : index
    %92 = vector.load %arg8[%c24, %c0_35] : memref<64x256xf32, #tpu.memory_space<vmem>>, vector<8x256xf32>
    %cst_36 = arith.constant dense<0.000000e+00> : vector<8x256xf32>
    %93 = tpu.matmul %89, %9, %cst_36 {dimension_numbers = #tpu.dot_dimension_numbers<[1], [0], [0], [1], [0, 0, 1, 1], [], []>} : vector<8x64xf32>, vector<64x256xf32>, vector<8x256xf32> -> vector<8x256xf32>
    %94 = arith.addf %92, %93 : vector<8x256xf32>
    %95 = vector.extract_strided_slice %94 {offsets = [0, 0], sizes = [8, 128], strides = [1, 1]} : vector<8x256xf32> to vector<8x128xf32>
    %96 = arith.negf %95 : vector<8x128xf32>
    %97 = math.exp %96 : vector<8x128xf32>
    %cst_37 = arith.constant 1.000000e+00 : f32
    %98 = vector.broadcast %cst_37 : f32 to vector<8x128xf32>
    %99 = arith.addf %98, %97 : vector<8x128xf32>
    %100 = arith.divf %98, %99 : vector<8x128xf32>
    %101 = vector.extract_strided_slice %100 {offsets = [0, 0], sizes = [8, 64], strides = [1, 1]} : vector<8x128xf32> to vector<8x64xf32>
    %102 = vector.extract_strided_slice %100 {offsets = [0, 64], sizes = [8, 64], strides = [1, 1]} : vector<8x128xf32> to vector<8x64xf32>
    %103 = vector.extract_strided_slice %94 {offsets = [0, 128], sizes = [8, 64], strides = [1, 1]} : vector<8x256xf32> to vector<8x64xf32>
    %104 = math.tanh %103 : vector<8x64xf32>
    %105 = vector.extract_strided_slice %94 {offsets = [0, 192], sizes = [8, 64], strides = [1, 1]} : vector<8x256xf32> to vector<8x64xf32>
    %106 = arith.negf %105 : vector<8x64xf32>
    %107 = math.exp %106 : vector<8x64xf32>
    %cst_38 = arith.constant 1.000000e+00 : f32
    %108 = vector.broadcast %cst_38 : f32 to vector<8x64xf32>
    %109 = arith.addf %108, %107 : vector<8x64xf32>
    %110 = arith.divf %108, %109 : vector<8x64xf32>
    %111 = arith.mulf %102, %87 : vector<8x64xf32>
    %112 = arith.mulf %101, %104 : vector<8x64xf32>
    %113 = arith.addf %111, %112 : vector<8x64xf32>
    %114 = math.tanh %113 : vector<8x64xf32>
    %115 = arith.mulf %110, %114 : vector<8x64xf32>
    %c24_39 = arith.constant 24 : index
    %c0_40 = arith.constant 0 : index
    %116 = vector.load %arg9[%c24_39, %c0_40] : memref<64x128xf32, #tpu.memory_space<vmem>>, vector<8x64xf32>
    tpu.vector_store %arg9[%c24_39, %c0_40], %115 {strides = array<i32>} : memref<64x128xf32, #tpu.memory_space<vmem>>, vector<8x64xf32>,
    %c32 = arith.constant 32 : index
    %c64_41 = arith.constant 64 : index
    %117 = vector.load %arg9[%c32, %c64_41] : memref<64x128xf32, #tpu.memory_space<vmem>>, vector<8x64xf32>
    tpu.vector_store %arg9[%c32, %c64_41], %115 {strides = array<i32>} : memref<64x128xf32, #tpu.memory_space<vmem>>, vector<8x64xf32>,
    %c32_42 = arith.constant 32 : index
    %c0_43 = arith.constant 0 : index
    %118 = vector.load %arg8[%c32_42, %c0_43] : memref<64x256xf32, #tpu.memory_space<vmem>>, vector<8x256xf32>
    %cst_44 = arith.constant dense<0.000000e+00> : vector<8x256xf32>
    %119 = tpu.matmul %115, %9, %cst_44 {dimension_numbers = #tpu.dot_dimension_numbers<[1], [0], [0], [1], [0, 0, 1, 1], [], []>} : vector<8x64xf32>, vector<64x256xf32>, vector<8x256xf32> -> vector<8x256xf32>
    %120 = arith.addf %118, %119 : vector<8x256xf32>
    %121 = vector.extract_strided_slice %120 {offsets = [0, 0], sizes = [8, 128], strides = [1, 1]} : vector<8x256xf32> to vector<8x128xf32>
    %122 = arith.negf %121 : vector<8x128xf32>
    %123 = math.exp %122 : vector<8x128xf32>
    %cst_45 = arith.constant 1.000000e+00 : f32
    %124 = vector.broadcast %cst_45 : f32 to vector<8x128xf32>
    %125 = arith.addf %124, %123 : vector<8x128xf32>
    %126 = arith.divf %124, %125 : vector<8x128xf32>
    %127 = vector.extract_strided_slice %126 {offsets = [0, 0], sizes = [8, 64], strides = [1, 1]} : vector<8x128xf32> to vector<8x64xf32>
    %128 = vector.extract_strided_slice %126 {offsets = [0, 64], sizes = [8, 64], strides = [1, 1]} : vector<8x128xf32> to vector<8x64xf32>
    %129 = vector.extract_strided_slice %120 {offsets = [0, 128], sizes = [8, 64], strides = [1, 1]} : vector<8x256xf32> to vector<8x64xf32>
    %130 = math.tanh %129 : vector<8x64xf32>
    %131 = vector.extract_strided_slice %120 {offsets = [0, 192], sizes = [8, 64], strides = [1, 1]} : vector<8x256xf32> to vector<8x64xf32>
    %132 = arith.negf %131 : vector<8x64xf32>
    %133 = math.exp %132 : vector<8x64xf32>
    %cst_46 = arith.constant 1.000000e+00 : f32
    %134 = vector.broadcast %cst_46 : f32 to vector<8x64xf32>
    %135 = arith.addf %134, %133 : vector<8x64xf32>
    %136 = arith.divf %134, %135 : vector<8x64xf32>
    %137 = arith.mulf %128, %113 : vector<8x64xf32>
    %138 = arith.mulf %127, %130 : vector<8x64xf32>
    %139 = arith.addf %137, %138 : vector<8x64xf32>
    %140 = math.tanh %139 : vector<8x64xf32>
    %141 = arith.mulf %136, %140 : vector<8x64xf32>
    %c32_47 = arith.constant 32 : index
    %c0_48 = arith.constant 0 : index
    %142 = vector.load %arg9[%c32_47, %c0_48] : memref<64x128xf32, #tpu.memory_space<vmem>>, vector<8x64xf32>
    tpu.vector_store %arg9[%c32_47, %c0_48], %141 {strides = array<i32>} : memref<64x128xf32, #tpu.memory_space<vmem>>, vector<8x64xf32>,
    %c24_49 = arith.constant 24 : index
    %c64_50 = arith.constant 64 : index
    %143 = vector.load %arg9[%c24_49, %c64_50] : memref<64x128xf32, #tpu.memory_space<vmem>>, vector<8x64xf32>
    tpu.vector_store %arg9[%c24_49, %c64_50], %141 {strides = array<i32>} : memref<64x128xf32, #tpu.memory_space<vmem>>, vector<8x64xf32>,
    %c40_51 = arith.constant 40 : index
    %c0_52 = arith.constant 0 : index
    %144 = vector.load %arg8[%c40_51, %c0_52] : memref<64x256xf32, #tpu.memory_space<vmem>>, vector<8x256xf32>
    %cst_53 = arith.constant dense<0.000000e+00> : vector<8x256xf32>
    %145 = tpu.matmul %141, %9, %cst_53 {dimension_numbers = #tpu.dot_dimension_numbers<[1], [0], [0], [1], [0, 0, 1, 1], [], []>} : vector<8x64xf32>, vector<64x256xf32>, vector<8x256xf32> -> vector<8x256xf32>
    %146 = arith.addf %144, %145 : vector<8x256xf32>
    %147 = vector.extract_strided_slice %146 {offsets = [0, 0], sizes = [8, 128], strides = [1, 1]} : vector<8x256xf32> to vector<8x128xf32>
    %148 = arith.negf %147 : vector<8x128xf32>
    %149 = math.exp %148 : vector<8x128xf32>
    %cst_54 = arith.constant 1.000000e+00 : f32
    %150 = vector.broadcast %cst_54 : f32 to vector<8x128xf32>
    %151 = arith.addf %150, %149 : vector<8x128xf32>
    %152 = arith.divf %150, %151 : vector<8x128xf32>
    %153 = vector.extract_strided_slice %152 {offsets = [0, 0], sizes = [8, 64], strides = [1, 1]} : vector<8x128xf32> to vector<8x64xf32>
    %154 = vector.extract_strided_slice %152 {offsets = [0, 64], sizes = [8, 64], strides = [1, 1]} : vector<8x128xf32> to vector<8x64xf32>
    %155 = vector.extract_strided_slice %146 {offsets = [0, 128], sizes = [8, 64], strides = [1, 1]} : vector<8x256xf32> to vector<8x64xf32>
    %156 = math.tanh %155 : vector<8x64xf32>
    %157 = vector.extract_strided_slice %146 {offsets = [0, 192], sizes = [8, 64], strides = [1, 1]} : vector<8x256xf32> to vector<8x64xf32>
    %158 = arith.negf %157 : vector<8x64xf32>
    %159 = math.exp %158 : vector<8x64xf32>
    %cst_55 = arith.constant 1.000000e+00 : f32
    %160 = vector.broadcast %cst_55 : f32 to vector<8x64xf32>
    %161 = arith.addf %160, %159 : vector<8x64xf32>
    %162 = arith.divf %160, %161 : vector<8x64xf32>
    %163 = arith.mulf %154, %139 : vector<8x64xf32>
    %164 = arith.mulf %153, %156 : vector<8x64xf32>
    %165 = arith.addf %163, %164 : vector<8x64xf32>
    %166 = math.tanh %165 : vector<8x64xf32>
    %167 = arith.mulf %162, %166 : vector<8x64xf32>
    %c40_56 = arith.constant 40 : index
    %c0_57 = arith.constant 0 : index
    %168 = vector.load %arg9[%c40_56, %c0_57] : memref<64x128xf32, #tpu.memory_space<vmem>>, vector<8x64xf32>
    tpu.vector_store %arg9[%c40_56, %c0_57], %167 {strides = array<i32>} : memref<64x128xf32, #tpu.memory_space<vmem>>, vector<8x64xf32>,
    %c16_58 = arith.constant 16 : index
    %c64_59 = arith.constant 64 : index
    %169 = vector.load %arg9[%c16_58, %c64_59] : memref<64x128xf32, #tpu.memory_space<vmem>>, vector<8x64xf32>
    tpu.vector_store %arg9[%c16_58, %c64_59], %167 {strides = array<i32>} : memref<64x128xf32, #tpu.memory_space<vmem>>, vector<8x64xf32>,
    %c48_60 = arith.constant 48 : index
    %c0_61 = arith.constant 0 : index
    %170 = vector.load %arg8[%c48_60, %c0_61] : memref<64x256xf32, #tpu.memory_space<vmem>>, vector<8x256xf32>
    %cst_62 = arith.constant dense<0.000000e+00> : vector<8x256xf32>
    %171 = tpu.matmul %167, %9, %cst_62 {dimension_numbers = #tpu.dot_dimension_numbers<[1], [0], [0], [1], [0, 0, 1, 1], [], []>} : vector<8x64xf32>, vector<64x256xf32>, vector<8x256xf32> -> vector<8x256xf32>
    %172 = arith.addf %170, %171 : vector<8x256xf32>
    %173 = vector.extract_strided_slice %172 {offsets = [0, 0], sizes = [8, 128], strides = [1, 1]} : vector<8x256xf32> to vector<8x128xf32>
    %174 = arith.negf %173 : vector<8x128xf32>
    %175 = math.exp %174 : vector<8x128xf32>
    %cst_63 = arith.constant 1.000000e+00 : f32
    %176 = vector.broadcast %cst_63 : f32 to vector<8x128xf32>
    %177 = arith.addf %176, %175 : vector<8x128xf32>
    %178 = arith.divf %176, %177 : vector<8x128xf32>
    %179 = vector.extract_strided_slice %178 {offsets = [0, 0], sizes = [8, 64], strides = [1, 1]} : vector<8x128xf32> to vector<8x64xf32>
    %180 = vector.extract_strided_slice %178 {offsets = [0, 64], sizes = [8, 64], strides = [1, 1]} : vector<8x128xf32> to vector<8x64xf32>
    %181 = vector.extract_strided_slice %172 {offsets = [0, 128], sizes = [8, 64], strides = [1, 1]} : vector<8x256xf32> to vector<8x64xf32>
    %182 = math.tanh %181 : vector<8x64xf32>
    %183 = vector.extract_strided_slice %172 {offsets = [0, 192], sizes = [8, 64], strides = [1, 1]} : vector<8x256xf32> to vector<8x64xf32>
    %184 = arith.negf %183 : vector<8x64xf32>
    %185 = math.exp %184 : vector<8x64xf32>
    %cst_64 = arith.constant 1.000000e+00 : f32
    %186 = vector.broadcast %cst_64 : f32 to vector<8x64xf32>
    %187 = arith.addf %186, %185 : vector<8x64xf32>
    %188 = arith.divf %186, %187 : vector<8x64xf32>
    %189 = arith.mulf %180, %165 : vector<8x64xf32>
    %190 = arith.mulf %179, %182 : vector<8x64xf32>
    %191 = arith.addf %189, %190 : vector<8x64xf32>
    %192 = math.tanh %191 : vector<8x64xf32>
    %193 = arith.mulf %188, %192 : vector<8x64xf32>
    %c48_65 = arith.constant 48 : index
    %c0_66 = arith.constant 0 : index
    %194 = vector.load %arg9[%c48_65, %c0_66] : memref<64x128xf32, #tpu.memory_space<vmem>>, vector<8x64xf32>
    tpu.vector_store %arg9[%c48_65, %c0_66], %193 {strides = array<i32>} : memref<64x128xf32, #tpu.memory_space<vmem>>, vector<8x64xf32>,
    %c8_67 = arith.constant 8 : index
    %c64_68 = arith.constant 64 : index
    %195 = vector.load %arg9[%c8_67, %c64_68] : memref<64x128xf32, #tpu.memory_space<vmem>>, vector<8x64xf32>
    tpu.vector_store %arg9[%c8_67, %c64_68], %193 {strides = array<i32>} : memref<64x128xf32, #tpu.memory_space<vmem>>, vector<8x64xf32>,
    %c56_69 = arith.constant 56 : index
    %c0_70 = arith.constant 0 : index
    %196 = vector.load %arg8[%c56_69, %c0_70] : memref<64x256xf32, #tpu.memory_space<vmem>>, vector<8x256xf32>
    %cst_71 = arith.constant dense<0.000000e+00> : vector<8x256xf32>
    %197 = tpu.matmul %193, %9, %cst_71 {dimension_numbers = #tpu.dot_dimension_numbers<[1], [0], [0], [1], [0, 0, 1, 1], [], []>} : vector<8x64xf32>, vector<64x256xf32>, vector<8x256xf32> -> vector<8x256xf32>
    %198 = arith.addf %196, %197 : vector<8x256xf32>
    %199 = vector.extract_strided_slice %198 {offsets = [0, 0], sizes = [8, 128], strides = [1, 1]} : vector<8x256xf32> to vector<8x128xf32>
    %200 = arith.negf %199 : vector<8x128xf32>
    %201 = math.exp %200 : vector<8x128xf32>
    %cst_72 = arith.constant 1.000000e+00 : f32
    %202 = vector.broadcast %cst_72 : f32 to vector<8x128xf32>
    %203 = arith.addf %202, %201 : vector<8x128xf32>
    %204 = arith.divf %202, %203 : vector<8x128xf32>
    %205 = vector.extract_strided_slice %204 {offsets = [0, 0], sizes = [8, 64], strides = [1, 1]} : vector<8x128xf32> to vector<8x64xf32>
    %206 = vector.extract_strided_slice %204 {offsets = [0, 64], sizes = [8, 64], strides = [1, 1]} : vector<8x128xf32> to vector<8x64xf32>
    %207 = vector.extract_strided_slice %198 {offsets = [0, 128], sizes = [8, 64], strides = [1, 1]} : vector<8x256xf32> to vector<8x64xf32>
    %208 = math.tanh %207 : vector<8x64xf32>
    %209 = vector.extract_strided_slice %198 {offsets = [0, 192], sizes = [8, 64], strides = [1, 1]} : vector<8x256xf32> to vector<8x64xf32>
    %210 = arith.negf %209 : vector<8x64xf32>
    %211 = math.exp %210 : vector<8x64xf32>
    %cst_73 = arith.constant 1.000000e+00 : f32
    %212 = vector.broadcast %cst_73 : f32 to vector<8x64xf32>
    %213 = arith.addf %212, %211 : vector<8x64xf32>
    %214 = arith.divf %212, %213 : vector<8x64xf32>
    %215 = arith.mulf %206, %191 : vector<8x64xf32>
    %216 = arith.mulf %205, %208 : vector<8x64xf32>
    %217 = arith.addf %215, %216 : vector<8x64xf32>
    %218 = math.tanh %217 : vector<8x64xf32>
    %219 = arith.mulf %214, %218 : vector<8x64xf32>
    %c56_74 = arith.constant 56 : index
    %c0_75 = arith.constant 0 : index
    %220 = vector.load %arg9[%c56_74, %c0_75] : memref<64x128xf32, #tpu.memory_space<vmem>>, vector<8x64xf32>
    tpu.vector_store %arg9[%c56_74, %c0_75], %219 {strides = array<i32>} : memref<64x128xf32, #tpu.memory_space<vmem>>, vector<8x64xf32>,
    %c0_76 = arith.constant 0 : index
    %c64_77 = arith.constant 64 : index
    %221 = vector.load %arg9[%c0_76, %c64_77] : memref<64x128xf32, #tpu.memory_space<vmem>>, vector<8x64xf32>
    tpu.vector_store %arg9[%c0_76, %c64_77], %219 {strides = array<i32>} : memref<64x128xf32, #tpu.memory_space<vmem>>, vector<8x64xf32>,
    %c0_78 = arith.constant 0 : index
    %c0_79 = arith.constant 0 : index
    %222 = vector.load %arg9[%c0_78, %c0_79] : memref<64x128xf32, #tpu.memory_space<vmem>>, vector<64x128xf32>
    %c0_80 = arith.constant 0 : index
    %c0_81 = arith.constant 0 : index
    %c0_82 = arith.constant 0 : index
    %223 = vector.load %arg3[%c0_80, %c0_81, %c0_82] : memref<1x128x256xf32, #tpu.memory_space<vmem>>, vector<1x128x256xf32>
    %224 = vector.shape_cast %223 : vector<1x128x256xf32> to vector<128x256xf32>
    %cst_83 = arith.constant dense<0.000000e+00> : vector<64x256xf32>
    %225 = tpu.matmul %222, %224, %cst_83 {dimension_numbers = #tpu.dot_dimension_numbers<[1], [0], [0], [1], [0, 0, 1, 1], [], []>} : vector<64x128xf32>, vector<128x256xf32>, vector<64x256xf32> -> vector<64x256xf32>
    %c1 = arith.constant 1 : index
    %c0_84 = arith.constant 0 : index
    %c0_85 = arith.constant 0 : index
    %226 = vector.load %arg5[%c1, %c0_84, %c0_85] : memref<2x1x256xf32, #tpu.memory_space<vmem>>, vector<1x1x256xf32>
    %227 = vector.shape_cast %226 : vector<1x1x256xf32> to vector<1x256xf32>
    %228 = vector.broadcast %227 : vector<1x256xf32> to vector<64x256xf32>
    %229 = arith.addf %225, %228 : vector<64x256xf32>
    %c0_86 = arith.constant 0 : index
    %c0_87 = arith.constant 0 : index
    %230 = vector.load %arg8[%c0_86, %c0_87] : memref<64x256xf32, #tpu.memory_space<vmem>>, vector<64x256xf32>
    tpu.vector_store %arg8[%c0_86, %c0_87], %229 {strides = array<i32>} : memref<64x256xf32, #tpu.memory_space<vmem>>, vector<64x256xf32>,
    %c1_88 = arith.constant 1 : index
    %c0_89 = arith.constant 0 : index
    %c0_90 = arith.constant 0 : index
    %231 = vector.load %arg4[%c1_88, %c0_89, %c0_90] : memref<2x64x256xf32, #tpu.memory_space<vmem>>, vector<1x64x256xf32>
    %232 = vector.shape_cast %231 : vector<1x64x256xf32> to vector<64x256xf32>
    %c1_91 = arith.constant 1 : index
    %c0_92 = arith.constant 0 : index
    %c0_93 = arith.constant 0 : index
    %233 = vector.load %arg1[%c1_91, %c0_92, %c0_93] : memref<2x8x128xf32, #tpu.memory_space<vmem>>, vector<1x8x128xf32>
    %234 = vector.shape_cast %233 : vector<1x8x128xf32> to vector<8x128xf32>
    %235 = vector.extract_strided_slice %234 {offsets = [0, 0], sizes = [8, 64], strides = [1, 1]} : vector<8x128xf32> to vector<8x64xf32>
    %236 = vector.extract_strided_slice %234 {offsets = [0, 64], sizes = [8, 64], strides = [1, 1]} : vector<8x128xf32> to vector<8x64xf32>
    %c0_94 = arith.constant 0 : index
    %c0_95 = arith.constant 0 : index
    %237 = vector.load %arg8[%c0_94, %c0_95] : memref<64x256xf32, #tpu.memory_space<vmem>>, vector<8x256xf32>
    %cst_96 = arith.constant dense<0.000000e+00> : vector<8x256xf32>
    %238 = tpu.matmul %235, %232, %cst_96 {dimension_numbers = #tpu.dot_dimension_numbers<[1], [0], [0], [1], [0, 0, 1, 1], [], []>} : vector<8x64xf32>, vector<64x256xf32>, vector<8x256xf32> -> vector<8x256xf32>
    %239 = arith.addf %237, %238 : vector<8x256xf32>
    %240 = vector.extract_strided_slice %239 {offsets = [0, 0], sizes = [8, 128], strides = [1, 1]} : vector<8x256xf32> to vector<8x128xf32>
    %241 = arith.negf %240 : vector<8x128xf32>
    %242 = math.exp %241 : vector<8x128xf32>
    %cst_97 = arith.constant 1.000000e+00 : f32
    %243 = vector.broadcast %cst_97 : f32 to vector<8x128xf32>
    %244 = arith.addf %243, %242 : vector<8x128xf32>
    %245 = arith.divf %243, %244 : vector<8x128xf32>
    %246 = vector.extract_strided_slice %245 {offsets = [0, 0], sizes = [8, 64], strides = [1, 1]} : vector<8x128xf32> to vector<8x64xf32>
    %247 = vector.extract_strided_slice %245 {offsets = [0, 64], sizes = [8, 64], strides = [1, 1]} : vector<8x128xf32> to vector<8x64xf32>
    %248 = vector.extract_strided_slice %239 {offsets = [0, 128], sizes = [8, 64], strides = [1, 1]} : vector<8x256xf32> to vector<8x64xf32>
    %249 = math.tanh %248 : vector<8x64xf32>
    %250 = vector.extract_strided_slice %239 {offsets = [0, 192], sizes = [8, 64], strides = [1, 1]} : vector<8x256xf32> to vector<8x64xf32>
    %251 = arith.negf %250 : vector<8x64xf32>
    %252 = math.exp %251 : vector<8x64xf32>
    %cst_98 = arith.constant 1.000000e+00 : f32
    %253 = vector.broadcast %cst_98 : f32 to vector<8x64xf32>
    %254 = arith.addf %253, %252 : vector<8x64xf32>
    %255 = arith.divf %253, %254 : vector<8x64xf32>
    %256 = arith.mulf %247, %236 : vector<8x64xf32>
    %257 = arith.mulf %246, %249 : vector<8x64xf32>
    %258 = arith.addf %256, %257 : vector<8x64xf32>
    %259 = math.tanh %258 : vector<8x64xf32>
    %260 = arith.mulf %255, %259 : vector<8x64xf32>
    %261 = vector.extract_strided_slice %260 {offsets = [0, 32], sizes = [8, 32], strides = [1, 1]} : vector<8x64xf32> to vector<8x32xf32>
    %c8_99 = arith.constant 8 : index
    %c0_100 = arith.constant 0 : index
    %262 = vector.load %arg8[%c8_99, %c0_100] : memref<64x256xf32, #tpu.memory_space<vmem>>, vector<8x256xf32>
    %cst_101 = arith.constant dense<0.000000e+00> : vector<8x256xf32>
    %263 = tpu.matmul %260, %232, %cst_101 {dimension_numbers = #tpu.dot_dimension_numbers<[1], [0], [0], [1], [0, 0, 1, 1], [], []>} : vector<8x64xf32>, vector<64x256xf32>, vector<8x256xf32> -> vector<8x256xf32>
    %264 = arith.addf %262, %263 : vector<8x256xf32>
    %265 = vector.extract_strided_slice %264 {offsets = [0, 0], sizes = [8, 128], strides = [1, 1]} : vector<8x256xf32> to vector<8x128xf32>
    %266 = arith.negf %265 : vector<8x128xf32>
    %267 = math.exp %266 : vector<8x128xf32>
    %cst_102 = arith.constant 1.000000e+00 : f32
    %268 = vector.broadcast %cst_102 : f32 to vector<8x128xf32>
    %269 = arith.addf %268, %267 : vector<8x128xf32>
    %270 = arith.divf %268, %269 : vector<8x128xf32>
    %271 = vector.extract_strided_slice %270 {offsets = [0, 0], sizes = [8, 64], strides = [1, 1]} : vector<8x128xf32> to vector<8x64xf32>
    %272 = vector.extract_strided_slice %270 {offsets = [0, 64], sizes = [8, 64], strides = [1, 1]} : vector<8x128xf32> to vector<8x64xf32>
    %273 = vector.extract_strided_slice %264 {offsets = [0, 128], sizes = [8, 64], strides = [1, 1]} : vector<8x256xf32> to vector<8x64xf32>
    %274 = math.tanh %273 : vector<8x64xf32>
    %275 = vector.extract_strided_slice %264 {offsets = [0, 192], sizes = [8, 64], strides = [1, 1]} : vector<8x256xf32> to vector<8x64xf32>
    %276 = arith.negf %275 : vector<8x64xf32>
    %277 = math.exp %276 : vector<8x64xf32>
    %cst_103 = arith.constant 1.000000e+00 : f32
    %278 = vector.broadcast %cst_103 : f32 to vector<8x64xf32>
    %279 = arith.addf %278, %277 : vector<8x64xf32>
    %280 = arith.divf %278, %279 : vector<8x64xf32>
    %281 = arith.mulf %272, %258 : vector<8x64xf32>
    %282 = arith.mulf %271, %274 : vector<8x64xf32>
    %283 = arith.addf %281, %282 : vector<8x64xf32>
    %284 = math.tanh %283 : vector<8x64xf32>
    %285 = arith.mulf %280, %284 : vector<8x64xf32>
    %c16_104 = arith.constant 16 : index
    %c0_105 = arith.constant 0 : index
    %286 = vector.load %arg8[%c16_104, %c0_105] : memref<64x256xf32, #tpu.memory_space<vmem>>, vector<8x256xf32>
    %cst_106 = arith.constant dense<0.000000e+00> : vector<8x256xf32>
    %287 = tpu.matmul %285, %232, %cst_106 {dimension_numbers = #tpu.dot_dimension_numbers<[1], [0], [0], [1], [0, 0, 1, 1], [], []>} : vector<8x64xf32>, vector<64x256xf32>, vector<8x256xf32> -> vector<8x256xf32>
    %288 = arith.addf %286, %287 : vector<8x256xf32>
    %289 = vector.extract_strided_slice %288 {offsets = [0, 0], sizes = [8, 128], strides = [1, 1]} : vector<8x256xf32> to vector<8x128xf32>
    %290 = arith.negf %289 : vector<8x128xf32>
    %291 = math.exp %290 : vector<8x128xf32>
    %cst_107 = arith.constant 1.000000e+00 : f32
    %292 = vector.broadcast %cst_107 : f32 to vector<8x128xf32>
    %293 = arith.addf %292, %291 : vector<8x128xf32>
    %294 = arith.divf %292, %293 : vector<8x128xf32>
    %295 = vector.extract_strided_slice %294 {offsets = [0, 0], sizes = [8, 64], strides = [1, 1]} : vector<8x128xf32> to vector<8x64xf32>
    %296 = vector.extract_strided_slice %294 {offsets = [0, 64], sizes = [8, 64], strides = [1, 1]} : vector<8x128xf32> to vector<8x64xf32>
    %297 = vector.extract_strided_slice %288 {offsets = [0, 128], sizes = [8, 64], strides = [1, 1]} : vector<8x256xf32> to vector<8x64xf32>
    %298 = math.tanh %297 : vector<8x64xf32>
    %299 = vector.extract_strided_slice %288 {offsets = [0, 192], sizes = [8, 64], strides = [1, 1]} : vector<8x256xf32> to vector<8x64xf32>
    %300 = arith.negf %299 : vector<8x64xf32>
    %301 = math.exp %300 : vector<8x64xf32>
    %cst_108 = arith.constant 1.000000e+00 : f32
    %302 = vector.broadcast %cst_108 : f32 to vector<8x64xf32>
    %303 = arith.addf %302, %301 : vector<8x64xf32>
    %304 = arith.divf %302, %303 : vector<8x64xf32>
    %305 = arith.mulf %296, %283 : vector<8x64xf32>
    %306 = arith.mulf %295, %298 : vector<8x64xf32>
    %307 = arith.addf %305, %306 : vector<8x64xf32>
    %308 = math.tanh %307 : vector<8x64xf32>
    %309 = arith.mulf %304, %308 : vector<8x64xf32>
    %c24_109 = arith.constant 24 : index
    %c0_110 = arith.constant 0 : index
    %310 = vector.load %arg8[%c24_109, %c0_110] : memref<64x256xf32, #tpu.memory_space<vmem>>, vector<8x256xf32>
    %cst_111 = arith.constant dense<0.000000e+00> : vector<8x256xf32>
    %311 = tpu.matmul %309, %232, %cst_111 {dimension_numbers = #tpu.dot_dimension_numbers<[1], [0], [0], [1], [0, 0, 1, 1], [], []>} : vector<8x64xf32>, vector<64x256xf32>, vector<8x256xf32> -> vector<8x256xf32>
    %312 = arith.addf %310, %311 : vector<8x256xf32>
    %313 = vector.extract_strided_slice %312 {offsets = [0, 0], sizes = [8, 128], strides = [1, 1]} : vector<8x256xf32> to vector<8x128xf32>
    %314 = arith.negf %313 : vector<8x128xf32>
    %315 = math.exp %314 : vector<8x128xf32>
    %cst_112 = arith.constant 1.000000e+00 : f32
    %316 = vector.broadcast %cst_112 : f32 to vector<8x128xf32>
    %317 = arith.addf %316, %315 : vector<8x128xf32>
    %318 = arith.divf %316, %317 : vector<8x128xf32>
    %319 = vector.extract_strided_slice %318 {offsets = [0, 0], sizes = [8, 64], strides = [1, 1]} : vector<8x128xf32> to vector<8x64xf32>
    %320 = vector.extract_strided_slice %318 {offsets = [0, 64], sizes = [8, 64], strides = [1, 1]} : vector<8x128xf32> to vector<8x64xf32>
    %321 = vector.extract_strided_slice %312 {offsets = [0, 128], sizes = [8, 64], strides = [1, 1]} : vector<8x256xf32> to vector<8x64xf32>
    %322 = math.tanh %321 : vector<8x64xf32>
    %323 = vector.extract_strided_slice %312 {offsets = [0, 192], sizes = [8, 64], strides = [1, 1]} : vector<8x256xf32> to vector<8x64xf32>
    %324 = arith.negf %323 : vector<8x64xf32>
    %325 = math.exp %324 : vector<8x64xf32>
    %cst_113 = arith.constant 1.000000e+00 : f32
    %326 = vector.broadcast %cst_113 : f32 to vector<8x64xf32>
    %327 = arith.addf %326, %325 : vector<8x64xf32>
    %328 = arith.divf %326, %327 : vector<8x64xf32>
    %329 = arith.mulf %320, %307 : vector<8x64xf32>
    %330 = arith.mulf %319, %322 : vector<8x64xf32>
    %331 = arith.addf %329, %330 : vector<8x64xf32>
    %332 = math.tanh %331 : vector<8x64xf32>
    %333 = arith.mulf %328, %332 : vector<8x64xf32>
    %c32_114 = arith.constant 32 : index
    %c0_115 = arith.constant 0 : index
    %334 = vector.load %arg8[%c32_114, %c0_115] : memref<64x256xf32, #tpu.memory_space<vmem>>, vector<8x256xf32>
    %cst_116 = arith.constant dense<0.000000e+00> : vector<8x256xf32>
    %335 = tpu.matmul %333, %232, %cst_116 {dimension_numbers = #tpu.dot_dimension_numbers<[1], [0], [0], [1], [0, 0, 1, 1], [], []>} : vector<8x64xf32>, vector<64x256xf32>, vector<8x256xf32> -> vector<8x256xf32>
    %336 = arith.addf %334, %335 : vector<8x256xf32>
    %337 = vector.extract_strided_slice %336 {offsets = [0, 0], sizes = [8, 128], strides = [1, 1]} : vector<8x256xf32> to vector<8x128xf32>
    %338 = arith.negf %337 : vector<8x128xf32>
    %339 = math.exp %338 : vector<8x128xf32>
    %cst_117 = arith.constant 1.000000e+00 : f32
    %340 = vector.broadcast %cst_117 : f32 to vector<8x128xf32>
    %341 = arith.addf %340, %339 : vector<8x128xf32>
    %342 = arith.divf %340, %341 : vector<8x128xf32>
    %343 = vector.extract_strided_slice %342 {offsets = [0, 0], sizes = [8, 64], strides = [1, 1]} : vector<8x128xf32> to vector<8x64xf32>
    %344 = vector.extract_strided_slice %342 {offsets = [0, 64], sizes = [8, 64], strides = [1, 1]} : vector<8x128xf32> to vector<8x64xf32>
    %345 = vector.extract_strided_slice %336 {offsets = [0, 128], sizes = [8, 64], strides = [1, 1]} : vector<8x256xf32> to vector<8x64xf32>
    %346 = math.tanh %345 : vector<8x64xf32>
    %347 = vector.extract_strided_slice %336 {offsets = [0, 192], sizes = [8, 64], strides = [1, 1]} : vector<8x256xf32> to vector<8x64xf32>
    %348 = arith.negf %347 : vector<8x64xf32>
    %349 = math.exp %348 : vector<8x64xf32>
    %cst_118 = arith.constant 1.000000e+00 : f32
    %350 = vector.broadcast %cst_118 : f32 to vector<8x64xf32>
    %351 = arith.addf %350, %349 : vector<8x64xf32>
    %352 = arith.divf %350, %351 : vector<8x64xf32>
    %353 = arith.mulf %344, %331 : vector<8x64xf32>
    %354 = arith.mulf %343, %346 : vector<8x64xf32>
    %355 = arith.addf %353, %354 : vector<8x64xf32>
    %356 = math.tanh %355 : vector<8x64xf32>
    %357 = arith.mulf %352, %356 : vector<8x64xf32>
    %c40_119 = arith.constant 40 : index
    %c0_120 = arith.constant 0 : index
    %358 = vector.load %arg8[%c40_119, %c0_120] : memref<64x256xf32, #tpu.memory_space<vmem>>, vector<8x256xf32>
    %cst_121 = arith.constant dense<0.000000e+00> : vector<8x256xf32>
    %359 = tpu.matmul %357, %232, %cst_121 {dimension_numbers = #tpu.dot_dimension_numbers<[1], [0], [0], [1], [0, 0, 1, 1], [], []>} : vector<8x64xf32>, vector<64x256xf32>, vector<8x256xf32> -> vector<8x256xf32>
    %360 = arith.addf %358, %359 : vector<8x256xf32>
    %361 = vector.extract_strided_slice %360 {offsets = [0, 0], sizes = [8, 128], strides = [1, 1]} : vector<8x256xf32> to vector<8x128xf32>
    %362 = arith.negf %361 : vector<8x128xf32>
    %363 = math.exp %362 : vector<8x128xf32>
    %cst_122 = arith.constant 1.000000e+00 : f32
    %364 = vector.broadcast %cst_122 : f32 to vector<8x128xf32>
    %365 = arith.addf %364, %363 : vector<8x128xf32>
    %366 = arith.divf %364, %365 : vector<8x128xf32>
    %367 = vector.extract_strided_slice %366 {offsets = [0, 0], sizes = [8, 64], strides = [1, 1]} : vector<8x128xf32> to vector<8x64xf32>
    %368 = vector.extract_strided_slice %366 {offsets = [0, 64], sizes = [8, 64], strides = [1, 1]} : vector<8x128xf32> to vector<8x64xf32>
    %369 = vector.extract_strided_slice %360 {offsets = [0, 128], sizes = [8, 64], strides = [1, 1]} : vector<8x256xf32> to vector<8x64xf32>
    %370 = math.tanh %369 : vector<8x64xf32>
    %371 = vector.extract_strided_slice %360 {offsets = [0, 192], sizes = [8, 64], strides = [1, 1]} : vector<8x256xf32> to vector<8x64xf32>
    %372 = arith.negf %371 : vector<8x64xf32>
    %373 = math.exp %372 : vector<8x64xf32>
    %cst_123 = arith.constant 1.000000e+00 : f32
    %374 = vector.broadcast %cst_123 : f32 to vector<8x64xf32>
    %375 = arith.addf %374, %373 : vector<8x64xf32>
    %376 = arith.divf %374, %375 : vector<8x64xf32>
    %377 = arith.mulf %368, %355 : vector<8x64xf32>
    %378 = arith.mulf %367, %370 : vector<8x64xf32>
    %379 = arith.addf %377, %378 : vector<8x64xf32>
    %380 = math.tanh %379 : vector<8x64xf32>
    %381 = arith.mulf %376, %380 : vector<8x64xf32>
    %c48_124 = arith.constant 48 : index
    %c0_125 = arith.constant 0 : index
    %382 = vector.load %arg8[%c48_124, %c0_125] : memref<64x256xf32, #tpu.memory_space<vmem>>, vector<8x256xf32>
    %cst_126 = arith.constant dense<0.000000e+00> : vector<8x256xf32>
    %383 = tpu.matmul %381, %232, %cst_126 {dimension_numbers = #tpu.dot_dimension_numbers<[1], [0], [0], [1], [0, 0, 1, 1], [], []>} : vector<8x64xf32>, vector<64x256xf32>, vector<8x256xf32> -> vector<8x256xf32>
    %384 = arith.addf %382, %383 : vector<8x256xf32>
    %385 = vector.extract_strided_slice %384 {offsets = [0, 0], sizes = [8, 128], strides = [1, 1]} : vector<8x256xf32> to vector<8x128xf32>
    %386 = arith.negf %385 : vector<8x128xf32>
    %387 = math.exp %386 : vector<8x128xf32>
    %cst_127 = arith.constant 1.000000e+00 : f32
    %388 = vector.broadcast %cst_127 : f32 to vector<8x128xf32>
    %389 = arith.addf %388, %387 : vector<8x128xf32>
    %390 = arith.divf %388, %389 : vector<8x128xf32>
    %391 = vector.extract_strided_slice %390 {offsets = [0, 0], sizes = [8, 64], strides = [1, 1]} : vector<8x128xf32> to vector<8x64xf32>
    %392 = vector.extract_strided_slice %390 {offsets = [0, 64], sizes = [8, 64], strides = [1, 1]} : vector<8x128xf32> to vector<8x64xf32>
    %393 = vector.extract_strided_slice %384 {offsets = [0, 128], sizes = [8, 64], strides = [1, 1]} : vector<8x256xf32> to vector<8x64xf32>
    %394 = math.tanh %393 : vector<8x64xf32>
    %395 = vector.extract_strided_slice %384 {offsets = [0, 192], sizes = [8, 64], strides = [1, 1]} : vector<8x256xf32> to vector<8x64xf32>
    %396 = arith.negf %395 : vector<8x64xf32>
    %397 = math.exp %396 : vector<8x64xf32>
    %cst_128 = arith.constant 1.000000e+00 : f32
    %398 = vector.broadcast %cst_128 : f32 to vector<8x64xf32>
    %399 = arith.addf %398, %397 : vector<8x64xf32>
    %400 = arith.divf %398, %399 : vector<8x64xf32>
    %401 = arith.mulf %392, %379 : vector<8x64xf32>
    %402 = arith.mulf %391, %394 : vector<8x64xf32>
    %403 = arith.addf %401, %402 : vector<8x64xf32>
    %404 = math.tanh %403 : vector<8x64xf32>
    %405 = arith.mulf %400, %404 : vector<8x64xf32>
    %c56_129 = arith.constant 56 : index
    %c0_130 = arith.constant 0 : index
    %406 = vector.load %arg8[%c56_129, %c0_130] : memref<64x256xf32, #tpu.memory_space<vmem>>, vector<8x256xf32>
    %cst_131 = arith.constant dense<0.000000e+00> : vector<8x256xf32>
    %407 = tpu.matmul %405, %232, %cst_131 {dimension_numbers = #tpu.dot_dimension_numbers<[1], [0], [0], [1], [0, 0, 1, 1], [], []>} : vector<8x64xf32>, vector<64x256xf32>, vector<8x256xf32> -> vector<8x256xf32>
    %408 = arith.addf %406, %407 : vector<8x256xf32>
    %409 = vector.extract_strided_slice %408 {offsets = [0, 0], sizes = [8, 128], strides = [1, 1]} : vector<8x256xf32> to vector<8x128xf32>
    %410 = arith.negf %409 : vector<8x128xf32>
    %411 = math.exp %410 : vector<8x128xf32>
    %cst_132 = arith.constant 1.000000e+00 : f32
    %412 = vector.broadcast %cst_132 : f32 to vector<8x128xf32>
    %413 = arith.addf %412, %411 : vector<8x128xf32>
    %414 = arith.divf %412, %413 : vector<8x128xf32>
    %415 = vector.extract_strided_slice %414 {offsets = [0, 0], sizes = [8, 64], strides = [1, 1]} : vector<8x128xf32> to vector<8x64xf32>
    %416 = vector.extract_strided_slice %414 {offsets = [0, 64], sizes = [8, 64], strides = [1, 1]} : vector<8x128xf32> to vector<8x64xf32>
    %417 = vector.extract_strided_slice %408 {offsets = [0, 128], sizes = [8, 64], strides = [1, 1]} : vector<8x256xf32> to vector<8x64xf32>
    %418 = math.tanh %417 : vector<8x64xf32>
    %419 = vector.extract_strided_slice %408 {offsets = [0, 192], sizes = [8, 64], strides = [1, 1]} : vector<8x256xf32> to vector<8x64xf32>
    %420 = arith.negf %419 : vector<8x64xf32>
    %421 = math.exp %420 : vector<8x64xf32>
    %cst_133 = arith.constant 1.000000e+00 : f32
    %422 = vector.broadcast %cst_133 : f32 to vector<8x64xf32>
    %423 = arith.addf %422, %421 : vector<8x64xf32>
    %424 = arith.divf %422, %423 : vector<8x64xf32>
    %425 = arith.mulf %416, %403 : vector<8x64xf32>
    %426 = arith.mulf %415, %418 : vector<8x64xf32>
    %427 = arith.addf %425, %426 : vector<8x64xf32>
    %428 = math.tanh %427 : vector<8x64xf32>
    %429 = arith.mulf %424, %428 : vector<8x64xf32>
    %430 = vector.extract_strided_slice %429 {offsets = [0, 0], sizes = [8, 32], strides = [1, 1]} : vector<8x64xf32> to vector<8x32xf32>
    %c0_134 = arith.constant 0 : index
    %c0_135 = arith.constant 0 : index
    %431 = vector.load %arg6[%c0_134, %c0_135] : memref<208x128xf32, #tpu.memory_space<vmem>>, vector<32x128xf32>
    %cst_136 = arith.constant dense<0.000000e+00> : vector<8x128xf32>
    %432 = tpu.matmul %430, %431, %cst_136 {dimension_numbers = #tpu.dot_dimension_numbers<[1], [0], [0], [1], [0, 0, 1, 1], [], []>} : vector<8x32xf32>, vector<32x128xf32>, vector<8x128xf32> -> vector<8x128xf32>
    %c32_137 = arith.constant 32 : index
    %c0_138 = arith.constant 0 : index
    %433 = vector.load %arg6[%c32_137, %c0_138] : memref<208x128xf32, #tpu.memory_space<vmem>>, vector<32x128xf32>
    %cst_139 = arith.constant dense<0.000000e+00> : vector<8x128xf32>
    %434 = tpu.matmul %261, %433, %cst_139 {dimension_numbers = #tpu.dot_dimension_numbers<[1], [0], [0], [1], [0, 0, 1, 1], [], []>} : vector<8x32xf32>, vector<32x128xf32>, vector<8x128xf32> -> vector<8x128xf32>
    %435 = arith.addf %432, %434 : vector<8x128xf32>
    %c64_140 = arith.constant 64 : index
    %c0_141 = arith.constant 0 : index
    %436 = vector.load %arg6[%c64_140, %c0_141] : memref<208x128xf32, #tpu.memory_space<vmem>>, vector<1x128xf32>
    %437 = vector.broadcast %436 : vector<1x128xf32> to vector<8x128xf32>
    %438 = arith.addf %435, %437 : vector<8x128xf32>
    %c72 = arith.constant 72 : index
    %c0_142 = arith.constant 0 : index
    %439 = vector.load %arg6[%c72, %c0_142] : memref<208x128xf32, #tpu.memory_space<vmem>>, vector<128x128xf32>
    %cst_143 = arith.constant dense<0.000000e+00> : vector<8x128xf32>
    %440 = tpu.matmul %438, %439, %cst_143 {dimension_numbers = #tpu.dot_dimension_numbers<[1], [0], [0], [1], [0, 0, 1, 1], [], []>} : vector<8x128xf32>, vector<128x128xf32>, vector<8x128xf32> -> vector<8x128xf32>
    %c200 = arith.constant 200 : index
    %c0_144 = arith.constant 0 : index
    %441 = vector.load %arg6[%c200, %c0_144] : memref<208x128xf32, #tpu.memory_space<vmem>>, vector<1x128xf32>
    %442 = vector.broadcast %441 : vector<1x128xf32> to vector<8x128xf32>
    %443 = arith.addf %440, %442 : vector<8x128xf32>
    %c0_145 = arith.constant 0 : index
    %c0_146 = arith.constant 0 : index
    %444 = vector.load %arg7[%c0_145, %c0_146] : memref<8x128xf32, #tpu.memory_space<vmem>>, vector<8x128xf32>
    tpu.vector_store %arg7[%c0_145, %c0_146], %443 {strides = array<i32>} : memref<8x128xf32, #tpu.memory_space<vmem>>, vector<8x128xf32>,
    return
  }
}

</mosaic_0001>

<llo_original>
// kernel: tpu_custom_call.1
$region0: #{tpu_custom_call.1}
  #allocation0 [shape = 'u32[]', space=smem, size = 0x4, offset = 0x4, fixed_abs, tag = 'smem constant byte address 0x4 - core index']
  #allocation1 [shape = 'u32[144,128]{1,0:T(1,128)}', space=vmem, size = 0x12000, scoped, tag = 'internal scratch']
  #allocation2 [shape = 'f32[64,256]{1,0:T(8,128)}', space=vmem, size = 0x10000, scoped, tag = 'scratch operand']
  #allocation3 [shape = 'f32[64,128]{1,0:T(8,128)}', space=vmem, size = 0x8000, scoped, tag = 'scratch operand']
  %s0 = inlined_call_operand.vmem [shape: f32[64,4], index: 0, kind: input, shape index: {}]
  %s1 = inlined_call_operand.vmem [shape: f32[2,8,128], index: 1, kind: input, shape index: {}]
  %s2 = inlined_call_operand.vmem [shape: f32[4,256], index: 2, kind: input, shape index: {}]
  %s3 = inlined_call_operand.hbm [shape: f32[1,128,256], index: 3, kind: input, shape index: {}]
  %s4 = inlined_call_operand.hbm [shape: f32[2,64,256], index: 4, kind: input, shape index: {}]
  %s5 = inlined_call_operand.vmem [shape: f32[2,1,256], index: 5, kind: input, shape index: {}]
  %s6 = inlined_call_operand.hbm [shape: f32[208,128], index: 6, kind: input, shape index: {}]
  %s7 = inlined_call_operand.hbm [shape: f32[8,128], index: 7, kind: output, shape index: {}]
  %s8 = sld [smem:[#allocation0]]
  $region50: #{tpu_custom_call.1} parent=0
    _
  %s10 = ssub.s32 1, %s8
  %s11 = scalar_select 0, %s10, %s8
  $region1: #{tpu_custom_call.1} parent=0
    #allocation4 [shape = 'u8[131072]{0}', space=vmem, size = 0x20000, scoped, tag = 'input window, operand 3, single buffered']
    #allocation5 [shape = 's32[1]{0}', space=sflag, size = 0x4, scoped, tag = 'scoped memory for tpu_custom_call.1']
    #allocation6 [shape = 's32[1]{0}', space=sflag, size = 0x4, scoped, tag = 'scoped memory for tpu_custom_call.1']
    #allocation7 [shape = 'u8[131072]{0}', space=vmem, size = 0x20000, scoped, tag = 'input window, operand 4, single buffered']
    #allocation8 [shape = 's32[1]{0}', space=sflag, size = 0x4, scoped, tag = 'scoped memory for tpu_custom_call.1']
    #allocation9 [shape = 'u8[106496]{0}', space=vmem, size = 0x1a000, scoped, tag = 'input window, operand 6, single buffered']
    #allocation10 [shape = 'u8[4096]{0}', space=vmem, size = 0x1000, scoped, tag = 'output window, operand 0, single buffered']
    %12 = vsyncpa [#allocation5], 0
    %13 = vsyncpa [#allocation8], 0
    %14 = vsyncpa [#allocation6], 0
    // Predicated region
    $region2: #{tpu_custom_call.1} parent=1 // pred_check
      _
    $region3: #{tpu_custom_call.1} parent=1 // pred_check_branch
      %16 = sbr.rel (0) target = $region5
    $region4: #{tpu_custom_call.1} parent=1 // pred_region
      _
    $region5: #{tpu_custom_call.1} parent=1 // pred_fallthru
      _
    // Predicated region
    $region6: #{tpu_custom_call.1} parent=1 // pred_check
      _
    $region7: #{tpu_custom_call.1} parent=1 // pred_check_branch
      %18 = sbr.rel (0) target = $region9
    $region8: #{tpu_custom_call.1} parent=1 // pred_region
      _
    $region9: #{tpu_custom_call.1} parent=1 // pred_fallthru
      _
    // Predicated region
    $region10: #{tpu_custom_call.1} parent=1 // pred_check
      _
    $region11: #{tpu_custom_call.1} parent=1 // pred_check_branch
      %20 = sbr.rel (0) target = $region13
    $region12: #{tpu_custom_call.1} parent=1 // pred_region
      _
    $region13: #{tpu_custom_call.1} parent=1 // pred_fallthru
      _
    // Predicated region
    $region14: #{tpu_custom_call.1} parent=1 // pred_check
      _
    $region15: #{tpu_custom_call.1} parent=1 // pred_check_branch
      %22 = sbr.rel (0) target = $region17
    $region16: #{tpu_custom_call.1} parent=1 // pred_region
      %s24 = ssub.s32 4096, 4096
      %25 = vsyncadd [#allocation5], %s24
      %s26 = sshll.u32 [#allocation4], 4
      %s27 = int_to_ptr.vmem [resolvable:$true] %s26
      %32 = dma.hbm_to_vmem [thread:$0]  %s3, 4096, %s27, [#allocation5], 256, 256, 16
    $region17: #{tpu_custom_call.1} parent=1 // pred_fallthru
      _
    // Predicated region
    $region18: #{tpu_custom_call.1} parent=1 // pred_check
      _
    $region19: #{tpu_custom_call.1} parent=1 // pred_check_branch
      %34 = sbr.rel (0) target = $region21
    $region20: #{tpu_custom_call.1} parent=1 // pred_region
      %s36 = ssub.s32 4096, 4096
      %37 = vsyncadd [#allocation8], %s36
      %s38 = sshll.u32 [#allocation7], 4
      %s39 = int_to_ptr.vmem [resolvable:$true] %s38
      %44 = dma.hbm_to_vmem [thread:$0]  %s4, 4096, %s39, [#allocation8], 256, 256, 16
    $region21: #{tpu_custom_call.1} parent=1 // pred_fallthru
      _
    // Predicated region
    $region22: #{tpu_custom_call.1} parent=1 // pred_check
      _
    $region23: #{tpu_custom_call.1} parent=1 // pred_check_branch
      %46 = sbr.rel (0) target = $region25
    $region24: #{tpu_custom_call.1} parent=1 // pred_region
      _
    $region25: #{tpu_custom_call.1} parent=1 // pred_fallthru
      _
    // Predicated region
    $region26: #{tpu_custom_call.1} parent=1 // pred_check
      _
    $region27: #{tpu_custom_call.1} parent=1 // pred_check_branch
      %48 = sbr.rel (0) target = $region29
    $region28: #{tpu_custom_call.1} parent=1 // pred_region
      %s50 = ssub.s32 3328, 3328
      %51 = vsyncadd [#allocation8], %s50
      %s52 = sshll.u32 [#allocation9], 4
      %s53 = int_to_ptr.vmem [resolvable:$true] %s52
      %58 = dma.hbm_to_vmem [thread:$0]  %s6, 3328, %s53, [#allocation8], 128, 128, 8
    $region29: #{tpu_custom_call.1} parent=1 // pred_fallthru
      _
    // Predicated region
    $region30: #{tpu_custom_call.1} parent=1 // pred_check
      _
    $region31: #{tpu_custom_call.1} parent=1 // pred_check_branch
      %60 = sbr.rel (0) target = $region33
    $region32: #{tpu_custom_call.1} parent=1 // pred_region
      %61 = dma.done [#allocation5], 4096
    $region33: #{tpu_custom_call.1} parent=1 // pred_fallthru
      _
    // Predicated region
    $region34: #{tpu_custom_call.1} parent=1 // pred_check
      _
    $region35: #{tpu_custom_call.1} parent=1 // pred_check_branch
      %63 = sbr.rel (0) target = $region37
    $region36: #{tpu_custom_call.1} parent=1 // pred_region
      %64 = dma.done [#allocation8], 4096
    $region37: #{tpu_custom_call.1} parent=1 // pred_fallthru
      _
    // Predicated region
    $region38: #{tpu_custom_call.1} parent=1 // pred_check
      _
    $region39: #{tpu_custom_call.1} parent=1 // pred_check_branch
      %66 = sbr.rel (0) target = $region41
    $region40: #{tpu_custom_call.1} parent=1 // pred_region
      %67 = dma.done [#allocation8], 3328
    $region41: #{tpu_custom_call.1} parent=1 // pred_fallthru
      _
    %v68 = vld [vmem:[%s0] sm:$0xff]
    %v69 = vld [vmem:[%s0 + $0x8] sm:$0xff]
    %v70 = vld [vmem:[%s0 + $0x10] sm:$0xff]
    %v71 = vld [vmem:[%s0 + $0x18] sm:$0xff]
    %v72 = vld [vmem:[%s0 + $0x20] sm:$0xff]
    %v73 = vld [vmem:[%s0 + $0x28] sm:$0xff]
    %v74 = vld [vmem:[%s0 + $0x30] sm:$0xff]
    %v75 = vld [vmem:[%s0 + $0x38] sm:$0xff]
    %v76 = vld [vmem:[%s2] sm:$0xff]
    %v77 = vld [vmem:[%s5] sm:$0x3]
    %v79 = vlaneseq
    %v80 = vshrl.u32 %v79, 7
    %v81 = vsub.s32 0, %v80
    %v82 = vrot.slane %v77, %v81
    %v83 = vlaneseq
    %v84 = vshrl.u32 %v83, 7
    %v85 = vsub.s32 1, %v84
    %v86 = vrot.slane %v77, %v85
    %v90 = vcombine.high %v76, %v76
    %vm91 = vcmask 31744
    %v93 = vsel %vm91, %v68, 0
    %v96 = vsel %vm91, %v69, 0
    %v99 = vsel %vm91, %v70, 0
    %v102 = vsel %vm91, %v71, 0
    %v105 = vsel %vm91, %v72, 0
    %v108 = vsel %vm91, %v73, 0
    %v111 = vsel %vm91, %v74, 0
    %v114 = vsel %vm91, %v75, 0
    %vm116 = vcmask 1043456
    %v117 = vsel %vm116, %v76, 0
    %v119 = vsel %vm116, %v90, 0
    %121 = vmatprep.subr.mxu0 0.0
    %122 = vmatpush1.msra.mxu0 0.0
    %123 = vmatprep.subr.mxu0 0.0
    %124 = vmatpush1.msra.mxu0 0.0
    %125 = vmatprep.subr.mxu0 0.0
    %126 = vmatpush1.msra.mxu0 0.0
    %127 = vmatprep.subr.mxu0 0.0
    %128 = vmatpush1.msra.mxu0 0.0
    %129 = vmatprep.subr.mxu0 0.0
    %130 = vmatpush1.msra.mxu0 0.0
    %131 = vmatprep.subr.mxu0 0.0
    %132 = vmatpush1.msra.mxu0 0.0
    %133 = vmatprep.subr.mxu0 0.0
    %134 = vmatpush1.msra.mxu0 0.0
    %135 = vmatprep.subr.mxu0 0.0
    %136 = vmatpush1.msra.mxu0 0.0
    %137 = vmatprep.subr.mxu0 0.0
    %138 = vmatpush1.msra.mxu0 0.0
    %139 = vmatprep.subr.mxu0 0.0
    %140 = vmatpush1.msra.mxu0 0.0
    %141 = vmatprep.subr.mxu0 0.0
    %142 = vmatpush1.msra.mxu0 0.0
    %143 = vmatprep.subr.mxu0 0.0
    %144 = vmatpush1.msra.mxu0 0.0
    %145 = vmatprep.subr.mxu0 0.0
    %146 = vmatpush1.msra.mxu0 0.0
    %147 = vmatprep.subr.mxu0 0.0
    %148 = vmatpush1.msra.mxu0 0.0
    %149 = vmatprep.subr.mxu0 0.0
    %150 = vmatpush1.msra.mxu0 0.0
    %151 = vmatprep.subr.mxu0 %v119
    %152 = vmatpush1.msra.mxu0 %v117
    %153 = vmatprep.subr.mxu0 0.0
    %154 = vmatpush2.msra.mxu0 0.0
    %155 = vmatprep.subr.mxu0 0.0
    %156 = vmatpush2.msra.mxu0 0.0
    %157 = vmatprep.subr.mxu0 0.0
    %158 = vmatpush2.msra.mxu0 0.0
    %159 = vmatprep.subr.mxu0 0.0
    %160 = vmatpush2.msra.mxu0 0.0
    %161 = vmatprep.subr.mxu0 0.0
    %162 = vmatpush2.msra.mxu0 0.0
    %163 = vmatprep.subr.mxu0 0.0
    %164 = vmatpush2.msra.mxu0 0.0
    %165 = vmatprep.subr.mxu0 0.0
    %166 = vmatpush2.msra.mxu0 0.0
    %167 = vmatprep.subr.mxu0 0.0
    %168 = vmatpush2.msra.mxu0 0.0
    %169 = vmatprep.subr.mxu0 0.0
    %170 = vmatpush2.msra.mxu0 0.0
    %171 = vmatprep.subr.mxu0 0.0
    %172 = vmatpush2.msra.mxu0 0.0
    %173 = vmatprep.subr.mxu0 0.0
    %174 = vmatpush2.msra.mxu0 0.0
    %175 = vmatprep.subr.mxu0 0.0
    %176 = vmatpush2.msra.mxu0 0.0
    %177 = vmatprep.subr.mxu0 0.0
    %178 = vmatpush2.msra.mxu0 0.0
    %179 = vmatprep.subr.mxu0 0.0
    %180 = vmatpush2.msra.mxu0 0.0
    %181 = vmatprep.subr.mxu0 0.0
    %182 = vmatpush2.msra.mxu0 0.0
    %183 = vmatprep.subr.mxu0 0.0
    %184 = vmatpush2.msra.mxu0 0.0
    %185 = vmatprep.mubr.f32.mxu0 0.0
    %186 = vmatmul.mubr.f32.gmra.mxu0 %v93
    %v187 = vpop.f32.mrf.mxu0
    %v188 = vadd.f32 %v82, %v187
    %v189 = vpop.f32.mrf.mxu0
    %v190 = vadd.f32 %v86, %v189
    %191 = vmatprep.mubr.f32.mxu0 0.0
    %192 = vmatmul.mubr.f32.gmra.mxu0 %v96
    %v193 = vpop.f32.mrf.mxu0
    %v194 = vadd.f32 %v82, %v193
    %v195 = vpop.f32.mrf.mxu0
    %v196 = vadd.f32 %v86, %v195
    %197 = vmatprep.mubr.f32.mxu0 0.0
    %198 = vmatmul.mubr.f32.gmra.mxu0 %v99
    %v199 = vpop.f32.mrf.mxu0
    %v200 = vadd.f32 %v82, %v199
    %v201 = vpop.f32.mrf.mxu0
    %v202 = vadd.f32 %v86, %v201
    %203 = vmatprep.mubr.f32.mxu0 0.0
    %204 = vmatmul.mubr.f32.gmra.mxu0 %v102
    %v205 = vpop.f32.mrf.mxu0
    %v206 = vadd.f32 %v82, %v205
    %v207 = vpop.f32.mrf.mxu0
    %v208 = vadd.f32 %v86, %v207
    %209 = vmatprep.mubr.f32.mxu0 0.0
    %210 = vmatmul.mubr.f32.gmra.mxu0 %v105
    %v211 = vpop.f32.mrf.mxu0
    %v212 = vadd.f32 %v82, %v211
    %v213 = vpop.f32.mrf.mxu0
    %v214 = vadd.f32 %v86, %v213
    %215 = vmatprep.mubr.f32.mxu0 0.0
    %216 = vmatmul.mubr.f32.gmra.mxu0 %v108
    %v217 = vpop.f32.mrf.mxu0
    %v218 = vadd.f32 %v82, %v217
    %v219 = vpop.f32.mrf.mxu0
    %v220 = vadd.f32 %v86, %v219
    %221 = vmatprep.mubr.f32.mxu0 0.0
    %222 = vmatmul.mubr.f32.gmra.mxu0 %v111
    %v223 = vpop.f32.mrf.mxu0
    %v224 = vadd.f32 %v82, %v223
    %v225 = vpop.f32.mrf.mxu0
    %v226 = vadd.f32 %v86, %v225
    %227 = vmatprep.mubr.f32.mxu0 0.0
    %228 = vmatmul.mubr.f32.gmra.mxu0 %v114
    %v229 = vpop.f32.mrf.mxu0
    %v230 = vadd.f32 %v82, %v229
    %v231 = vpop.f32.mrf.mxu0
    %v232 = vadd.f32 %v86, %v231
    %233 = vdwg.mxu0
    %234 = vst [vmem:[#allocation2] sm:$0xff] %v188
    %235 = vst [vmem:[#allocation2 + $0x8] sm:$0xff] %v190
    %236 = vst [vmem:[#allocation2 + $0x10] sm:$0xff] %v194
    %237 = vst [vmem:[#allocation2 + $0x18] sm:$0xff] %v196
    %238 = vst [vmem:[#allocation2 + $0x20] sm:$0xff] %v200
    %239 = vst [vmem:[#allocation2 + $0x28] sm:$0xff] %v202
    %240 = vst [vmem:[#allocation2 + $0x30] sm:$0xff] %v206
    %241 = vst [vmem:[#allocation2 + $0x38] sm:$0xff] %v208
    %242 = vst [vmem:[#allocation2 + $0x40] sm:$0xff] %v212
    %243 = vst [vmem:[#allocation2 + $0x48] sm:$0xff] %v214
    %244 = vst [vmem:[#allocation2 + $0x50] sm:$0xff] %v218
    %245 = vst [vmem:[#allocation2 + $0x58] sm:$0xff] %v220
    %246 = vst [vmem:[#allocation2 + $0x60] sm:$0xff] %v224
    %247 = vst [vmem:[#allocation2 + $0x68] sm:$0xff] %v226
    %248 = vst [vmem:[#allocation2 + $0x70] sm:$0xff] %v230
    %249 = vst [vmem:[#allocation2 + $0x78] sm:$0xff] %v232
    %v250 = vld [vmem:[#allocation7] sm:$0xff]
    %v251 = vld [vmem:[#allocation7 + $0x8] sm:$0xff]
    %v252 = vld [vmem:[#allocation7 + $0x10] sm:$0xff]
    %v253 = vld [vmem:[#allocation7 + $0x18] sm:$0xff]
    %v254 = vld [vmem:[#allocation7 + $0x20] sm:$0xff]
    %v255 = vld [vmem:[#allocation7 + $0x28] sm:$0xff]
    %v256 = vld [vmem:[#allocation7 + $0x30] sm:$0xff]
    %v257 = vld [vmem:[#allocation7 + $0x38] sm:$0xff]
    %v258 = vld [vmem:[#allocation7 + $0x40] sm:$0xff]
    %v259 = vld [vmem:[#allocation7 + $0x48] sm:$0xff]
    %v260 = vld [vmem:[#allocation7 + $0x50] sm:$0xff]
    %v261 = vld [vmem:[#allocation7 + $0x58] sm:$0xff]
    %v262 = vld [vmem:[#allocation7 + $0x60] sm:$0xff]
    %v263 = vld [vmem:[#allocation7 + $0x68] sm:$0xff]
    %v264 = vld [vmem:[#allocation7 + $0x70] sm:$0xff]
    %v265 = vld [vmem:[#allocation7 + $0x78] sm:$0xff]
    %v266 = vld [vmem:[%s1] sm:$0xff]
    %v267 = vld [vmem:[#allocation2] sm:$0xff]
    %v268 = vld [vmem:[#allocation2 + $0x8] sm:$0xff]
    %vm269 = vcmask 523264
    %v271 = vsel %vm269, %v266, 0
    %273 = vmatprep.subr.mxu0 0.0
    %274 = vmatpush1.msra.mxu0 0.0
    %275 = vmatprep.subr.mxu0 0.0
    %276 = vmatpush1.msra.mxu0 0.0
    %277 = vmatprep.subr.mxu0 0.0
    %278 = vmatpush1.msra.mxu0 0.0
    %279 = vmatprep.subr.mxu0 0.0
    %280 = vmatpush1.msra.mxu0 0.0
    %281 = vmatprep.subr.mxu0 0.0
    %282 = vmatpush1.msra.mxu0 0.0
    %283 = vmatprep.subr.mxu0 0.0
    %284 = vmatpush1.msra.mxu0 0.0
    %285 = vmatprep.subr.mxu0 0.0
    %286 = vmatpush1.msra.mxu0 0.0
    %287 = vmatprep.subr.mxu0 0.0
    %288 = vmatpush1.msra.mxu0 0.0
    %289 = vmatprep.subr.mxu0 %v265
    %290 = vmatpush1.msra.mxu0 %v264
    %291 = vmatprep.subr.mxu0 %v263
    %292 = vmatpush1.msra.mxu0 %v262
    %293 = vmatprep.subr.mxu0 %v261
    %294 = vmatpush1.msra.mxu0 %v260
    %295 = vmatprep.subr.mxu0 %v259
    %296 = vmatpush1.msra.mxu0 %v258
    %297 = vmatprep.subr.mxu0 %v257
    %298 = vmatpush1.msra.mxu0 %v256
    %299 = vmatprep.subr.mxu0 %v255
    %300 = vmatpush1.msra.mxu0 %v254
    %301 = vmatprep.subr.mxu0 %v253
    %302 = vmatpush1.msra.mxu0 %v252
    %303 = vmatprep.subr.mxu0 %v251
    %304 = vmatpush1.msra.mxu0 %v250
    %305 = vmatprep.subr.mxu0 0.0
    %306 = vmatpush2.msra.mxu0 0.0
    %307 = vmatprep.subr.mxu0 0.0
    %308 = vmatpush2.msra.mxu0 0.0
    %309 = vmatprep.subr.mxu0 0.0
    %310 = vmatpush2.msra.mxu0 0.0
    %311 = vmatprep.subr.mxu0 0.0
    %312 = vmatpush2.msra.mxu0 0.0
    %313 = vmatprep.subr.mxu0 0.0
    %314 = vmatpush2.msra.mxu0 0.0
    %315 = vmatprep.subr.mxu0 0.0
    %316 = vmatpush2.msra.mxu0 0.0
    %317 = vmatprep.subr.mxu0 0.0
    %318 = vmatpush2.msra.mxu0 0.0
    %319 = vmatprep.subr.mxu0 0.0
    %320 = vmatpush2.msra.mxu0 0.0
    %321 = vmatprep.subr.mxu0 0.0
    %322 = vmatpush2.msra.mxu0 0.0
    %323 = vmatprep.subr.mxu0 0.0
    %324 = vmatpush2.msra.mxu0 0.0
    %325 = vmatprep.subr.mxu0 0.0
    %326 = vmatpush2.msra.mxu0 0.0
    %327 = vmatprep.subr.mxu0 0.0
    %328 = vmatpush2.msra.mxu0 0.0
    %329 = vmatprep.subr.mxu0 0.0
    %330 = vmatpush2.msra.mxu0 0.0
    %331 = vmatprep.subr.mxu0 0.0
    %332 = vmatpush2.msra.mxu0 0.0
    %333 = vmatprep.subr.mxu0 0.0
    %334 = vmatpush2.msra.mxu0 0.0
    %335 = vmatprep.subr.mxu0 0.0
    %336 = vmatpush2.msra.mxu0 0.0
    %337 = vmatprep.mubr.f32.mxu0 0.0
    %338 = vmatmul.mubr.f32.gmra.mxu0 %v271
    %v339 = vpop.f32.mrf.mxu0
    %v340 = vadd.f32 0.0, %v339
    %v341 = vpop.f32.mrf.mxu0
    %v342 = vadd.f32 0.0, %v341
    %343 = vdwg.mxu0
    %v344 = vadd.f32 %v267, %v340
    %v345 = vadd.f32 %v268, %v342
    %v346 = vxor.u32 %v344, 2147483648
    %v347 = vmul.f32 %v346, 1.442695
    %v348 = vpow.pop %v347
    %v349 = vadd.f32 %v348, 1.0
    %v350 = vrcp.pop %v349
    %v351 = vmul.f32 1.0, %v350
    %v352 = vtanh.pop %v345
    %v353 = vxor.u32 %v345, 2147483648
    %v354 = vmul.f32 %v353, 1.442695
    %v355 = vpow.pop %v354
    %v356 = vadd.f32 %v355, 1.0
    %v357 = vrcp.pop %v356
    %v358 = vmul.f32 1.0, %v357
    %v359 = vmul.f32 %v351, %v266
    %v360 = vmul.f32 %v351, %v352
    %362 = vrot.lane.b32.xlu0 %v360, 64
    %v363 = vpop.permute.xlu0 %362
    %v365 = vadd.f32 %v359, %v363
    %v366 = vtanh.pop %v365
    %v367 = vmul.f32 %v358, %v366
    %369 = vrot.lane.b32.xlu0 %v367, 64
    %v370 = vpop.permute.xlu0 %369
    %372 = vst.msk [vmem:[#allocation3] sm:$0xff] %vm269, %v370
    %vm373 = vcmask 1048064
    %374 = vst.msk [vmem:[#allocation3 + $0x38] sm:$0xff] %vm373, %v367
    %v375 = vld [vmem:[#allocation2 + $0x10] sm:$0xff]
    %v376 = vld [vmem:[#allocation2 + $0x18] sm:$0xff]
    %v377 = vsel %vm269, %v370, 0
    %379 = vmatprep.subr.mxu0 0.0
    %380 = vmatpush1.msra.mxu0 0.0
    %381 = vmatprep.subr.mxu0 0.0
    %382 = vmatpush1.msra.mxu0 0.0
    %383 = vmatprep.subr.mxu0 0.0
    %384 = vmatpush1.msra.mxu0 0.0
    %385 = vmatprep.subr.mxu0 0.0
    %386 = vmatpush1.msra.mxu0 0.0
    %387 = vmatprep.subr.mxu0 0.0
    %388 = vmatpush1.msra.mxu0 0.0
    %389 = vmatprep.subr.mxu0 0.0
    %390 = vmatpush1.msra.mxu0 0.0
    %391 = vmatprep.subr.mxu0 0.0
    %392 = vmatpush1.msra.mxu0 0.0
    %393 = vmatprep.subr.mxu0 0.0
    %394 = vmatpush1.msra.mxu0 0.0
    %395 = vmatprep.subr.mxu0 %v265
    %396 = vmatpush1.msra.mxu0 %v264
    %397 = vmatprep.subr.mxu0 %v263
    %398 = vmatpush1.msra.mxu0 %v262
    %399 = vmatprep.subr.mxu0 %v261
    %400 = vmatpush1.msra.mxu0 %v260
    %401 = vmatprep.subr.mxu0 %v259
    %402 = vmatpush1.msra.mxu0 %v258
    %403 = vmatprep.subr.mxu0 %v257
    %404 = vmatpush1.msra.mxu0 %v256
    %405 = vmatprep.subr.mxu0 %v255
    %406 = vmatpush1.msra.mxu0 %v254
    %407 = vmatprep.subr.mxu0 %v253
    %408 = vmatpush1.msra.mxu0 %v252
    %409 = vmatprep.subr.mxu0 %v251
    %410 = vmatpush1.msra.mxu0 %v250
    %411 = vmatprep.subr.mxu0 0.0
    %412 = vmatpush2.msra.mxu0 0.0
    %413 = vmatprep.subr.mxu0 0.0
    %414 = vmatpush2.msra.mxu0 0.0
    %415 = vmatprep.subr.mxu0 0.0
    %416 = vmatpush2.msra.mxu0 0.0
    %417 = vmatprep.subr.mxu0 0.0
    %418 = vmatpush2.msra.mxu0 0.0
    %419 = vmatprep.subr.mxu0 0.0
    %420 = vmatpush2.msra.mxu0 0.0
    %421 = vmatprep.subr.mxu0 0.0
    %422 = vmatpush2.msra.mxu0 0.0
    %423 = vmatprep.subr.mxu0 0.0
    %424 = vmatpush2.msra.mxu0 0.0
    %425 = vmatprep.subr.mxu0 0.0
    %426 = vmatpush2.msra.mxu0 0.0
    %427 = vmatprep.subr.mxu0 0.0
    %428 = vmatpush2.msra.mxu0 0.0
    %429 = vmatprep.subr.mxu0 0.0
    %430 = vmatpush2.msra.mxu0 0.0
    %431 = vmatprep.subr.mxu0 0.0
    %432 = vmatpush2.msra.mxu0 0.0
    %433 = vmatprep.subr.mxu0 0.0
    %434 = vmatpush2.msra.mxu0 0.0
    %435 = vmatprep.subr.mxu0 0.0
    %436 = vmatpush2.msra.mxu0 0.0
    %437 = vmatprep.subr.mxu0 0.0
    %438 = vmatpush2.msra.mxu0 0.0
    %439 = vmatprep.subr.mxu0 0.0
    %440 = vmatpush2.msra.mxu0 0.0
    %441 = vmatprep.subr.mxu0 0.0
    %442 = vmatpush2.msra.mxu0 0.0
    %443 = vmatprep.mubr.f32.mxu0 0.0
    %444 = vmatmul.mubr.f32.gmra.mxu0 %v377
    %v445 = vpop.f32.mrf.mxu0
    %v446 = vadd.f32 0.0, %v445
    %v447 = vpop.f32.mrf.mxu0
    %v448 = vadd.f32 0.0, %v447
    %449 = vdwg.mxu0
    %v450 = vadd.f32 %v375, %v446
    %v451 = vadd.f32 %v376, %v448
    %v452 = vxor.u32 %v450, 2147483648
    %v453 = vmul.f32 %v452, 1.442695
    %v454 = vpow.pop %v453
    %v455 = vadd.f32 %v454, 1.0
    %v456 = vrcp.pop %v455
    %v457 = vmul.f32 1.0, %v456
    %v458 = vtanh.pop %v451
    %v459 = vxor.u32 %v451, 2147483648
    %v460 = vmul.f32 %v459, 1.442695
    %v461 = vpow.pop %v460
    %v462 = vadd.f32 %v461, 1.0
    %v463 = vrcp.pop %v462
    %v464 = vmul.f32 1.0, %v463
    %v465 = vmul.f32 %v457, %v365
    %v466 = vmul.f32 %v457, %v458
    %468 = vrot.lane.b32.xlu0 %v466, 64
    %v469 = vpop.permute.xlu0 %468
    %v471 = vadd.f32 %v465, %v469
    %v472 = vtanh.pop %v471
    %v473 = vmul.f32 %v464, %v472
    %475 = vrot.lane.b32.xlu0 %v473, 64
    %v476 = vpop.permute.xlu0 %475
    %478 = vst.msk [vmem:[#allocation3 + $0x8] sm:$0xff] %vm269, %v476
    %479 = vst.msk [vmem:[#allocation3 + $0x30] sm:$0xff] %vm373, %v473
    %v480 = vld [vmem:[#allocation2 + $0x20] sm:$0xff]
    %v481 = vld [vmem:[#allocation2 + $0x28] sm:$0xff]
    %v482 = vsel %vm269, %v476, 0
    %484 = vmatprep.subr.mxu0 0.0
    %485 = vmatpush1.msra.mxu0 0.0
    %486 = vmatprep.subr.mxu0 0.0
    %487 = vmatpush1.msra.mxu0 0.0
    %488 = vmatprep.subr.mxu0 0.0
    %489 = vmatpush1.msra.mxu0 0.0
    %490 = vmatprep.subr.mxu0 0.0
    %491 = vmatpush1.msra.mxu0 0.0
    %492 = vmatprep.subr.mxu0 0.0
    %493 = vmatpush1.msra.mxu0 0.0
    %494 = vmatprep.subr.mxu0 0.0
    %495 = vmatpush1.msra.mxu0 0.0
    %496 = vmatprep.subr.mxu0 0.0
    %497 = vmatpush1.msra.mxu0 0.0
    %498 = vmatprep.subr.mxu0 0.0
    %499 = vmatpush1.msra.mxu0 0.0
    %500 = vmatprep.subr.mxu0 %v265
    %501 = vmatpush1.msra.mxu0 %v264
    %502 = vmatprep.subr.mxu0 %v263
    %503 = vmatpush1.msra.mxu0 %v262
    %504 = vmatprep.subr.mxu0 %v261
    %505 = vmatpush1.msra.mxu0 %v260
    %506 = vmatprep.subr.mxu0 %v259
    %507 = vmatpush1.msra.mxu0 %v258
    %508 = vmatprep.subr.mxu0 %v257
    %509 = vmatpush1.msra.mxu0 %v256
    %510 = vmatprep.subr.mxu0 %v255
    %511 = vmatpush1.msra.mxu0 %v254
    %512 = vmatprep.subr.mxu0 %v253
    %513 = vmatpush1.msra.mxu0 %v252
    %514 = vmatprep.subr.mxu0 %v251
    %515 = vmatpush1.msra.mxu0 %v250
    %516 = vmatprep.subr.mxu0 0.0
    %517 = vmatpush2.msra.mxu0 0.0
    %518 = vmatprep.subr.mxu0 0.0
    %519 = vmatpush2.msra.mxu0 0.0
    %520 = vmatprep.subr.mxu0 0.0
    %521 = vmatpush2.msra.mxu0 0.0
    %522 = vmatprep.subr.mxu0 0.0
    %523 = vmatpush2.msra.mxu0 0.0
    %524 = vmatprep.subr.mxu0 0.0
    %525 = vmatpush2.msra.mxu0 0.0
    %526 = vmatprep.subr.mxu0 0.0
    %527 = vmatpush2.msra.mxu0 0.0
    %528 = vmatprep.subr.mxu0 0.0
    %529 = vmatpush2.msra.mxu0 0.0
    %530 = vmatprep.subr.mxu0 0.0
    %531 = vmatpush2.msra.mxu0 0.0
    %532 = vmatprep.subr.mxu0 0.0
    %533 = vmatpush2.msra.mxu0 0.0
    %534 = vmatprep.subr.mxu0 0.0
    %535 = vmatpush2.msra.mxu0 0.0
    %536 = vmatprep.subr.mxu0 0.0
    %537 = vmatpush2.msra.mxu0 0.0
    %538 = vmatprep.subr.mxu0 0.0
    %539 = vmatpush2.msra.mxu0 0.0
    %540 = vmatprep.subr.mxu0 0.0
    %541 = vmatpush2.msra.mxu0 0.0
    %542 = vmatprep.subr.mxu0 0.0
    %543 = vmatpush2.msra.mxu0 0.0
    %544 = vmatprep.subr.mxu0 0.0
    %545 = vmatpush2.msra.mxu0 0.0
    %546 = vmatprep.subr.mxu0 0.0
    %547 = vmatpush2.msra.mxu0 0.0
    %548 = vmatprep.mubr.f32.mxu0 0.0
    %549 = vmatmul.mubr.f32.gmra.mxu0 %v482
    %v550 = vpop.f32.mrf.mxu0
    %v551 = vadd.f32 0.0, %v550
    %v552 = vpop.f32.mrf.mxu0
    %v553 = vadd.f32 0.0, %v552
    %554 = vdwg.mxu0
    %v555 = vadd.f32 %v480, %v551
    %v556 = vadd.f32 %v481, %v553
    %v557 = vxor.u32 %v555, 2147483648
    %v558 = vmul.f32 %v557, 1.442695
    %v559 = vpow.pop %v558
    %v560 = vadd.f32 %v559, 1.0
    %v561 = vrcp.pop %v560
    %v562 = vmul.f32 1.0, %v561
    %v563 = vtanh.pop %v556
    %v564 = vxor.u32 %v556, 2147483648
    %v565 = vmul.f32 %v564, 1.442695
    %v566 = vpow.pop %v565
    %v567 = vadd.f32 %v566, 1.0
    %v568 = vrcp.pop %v567
    %v569 = vmul.f32 1.0, %v568
    %v570 = vmul.f32 %v562, %v471
    %v571 = vmul.f32 %v562, %v563
    %573 = vrot.lane.b32.xlu0 %v571, 64
    %v574 = vpop.permute.xlu0 %573
    %v576 = vadd.f32 %v570, %v574
    %v577 = vtanh.pop %v576
    %v578 = vmul.f32 %v569, %v577
    %580 = vrot.lane.b32.xlu0 %v578, 64
    %v581 = vpop.permute.xlu0 %580
    %583 = vst.msk [vmem:[#allocation3 + $0x10] sm:$0xff] %vm269, %v581
    %584 = vst.msk [vmem:[#allocation3 + $0x28] sm:$0xff] %vm373, %v578
    %v585 = vld [vmem:[#allocation2 + $0x30] sm:$0xff]
    %v586 = vld [vmem:[#allocation2 + $0x38] sm:$0xff]
    %v587 = vsel %vm269, %v581, 0
    %589 = vmatprep.subr.mxu0 0.0
    %590 = vmatpush1.msra.mxu0 0.0
    %591 = vmatprep.subr.mxu0 0.0
    %592 = vmatpush1.msra.mxu0 0.0
    %593 = vmatprep.subr.mxu0 0.0
    %594 = vmatpush1.msra.mxu0 0.0
    %595 = vmatprep.subr.mxu0 0.0
    %596 = vmatpush1.msra.mxu0 0.0
    %597 = vmatprep.subr.mxu0 0.0
    %598 = vmatpush1.msra.mxu0 0.0
    %599 = vmatprep.subr.mxu0 0.0
    %600 = vmatpush1.msra.mxu0 0.0
    %601 = vmatprep.subr.mxu0 0.0
    %602 = vmatpush1.msra.mxu0 0.0
    %603 = vmatprep.subr.mxu0 0.0
    %604 = vmatpush1.msra.mxu0 0.0
    %605 = vmatprep.subr.mxu0 %v265
    %606 = vmatpush1.msra.mxu0 %v264
    %607 = vmatprep.subr.mxu0 %v263
    %608 = vmatpush1.msra.mxu0 %v262
    %609 = vmatprep.subr.mxu0 %v261
    %610 = vmatpush1.msra.mxu0 %v260
    %611 = vmatprep.subr.mxu0 %v259
    %612 = vmatpush1.msra.mxu0 %v258
    %613 = vmatprep.subr.mxu0 %v257
    %614 = vmatpush1.msra.mxu0 %v256
    %615 = vmatprep.subr.mxu0 %v255
    %616 = vmatpush1.msra.mxu0 %v254
    %617 = vmatprep.subr.mxu0 %v253
    %618 = vmatpush1.msra.mxu0 %v252
    %619 = vmatprep.subr.mxu0 %v251
    %620 = vmatpush1.msra.mxu0 %v250
    %621 = vmatprep.subr.mxu0 0.0
    %622 = vmatpush2.msra.mxu0 0.0
    %623 = vmatprep.subr.mxu0 0.0
    %624 = vmatpush2.msra.mxu0 0.0
    %625 = vmatprep.subr.mxu0 0.0
    %626 = vmatpush2.msra.mxu0 0.0
    %627 = vmatprep.subr.mxu0 0.0
    %628 = vmatpush2.msra.mxu0 0.0
    %629 = vmatprep.subr.mxu0 0.0
    %630 = vmatpush2.msra.mxu0 0.0
    %631 = vmatprep.subr.mxu0 0.0
    %632 = vmatpush2.msra.mxu0 0.0
    %633 = vmatprep.subr.mxu0 0.0
    %634 = vmatpush2.msra.mxu0 0.0
    %635 = vmatprep.subr.mxu0 0.0
    %636 = vmatpush2.msra.mxu0 0.0
    %637 = vmatprep.subr.mxu0 0.0
    %638 = vmatpush2.msra.mxu0 0.0
    %639 = vmatprep.subr.mxu0 0.0
    %640 = vmatpush2.msra.mxu0 0.0
    %641 = vmatprep.subr.mxu0 0.0
    %642 = vmatpush2.msra.mxu0 0.0
    %643 = vmatprep.subr.mxu0 0.0
    %644 = vmatpush2.msra.mxu0 0.0
    %645 = vmatprep.subr.mxu0 0.0
    %646 = vmatpush2.msra.mxu0 0.0
    %647 = vmatprep.subr.mxu0 0.0
    %648 = vmatpush2.msra.mxu0 0.0
    %649 = vmatprep.subr.mxu0 0.0
    %650 = vmatpush2.msra.mxu0 0.0
    %651 = vmatprep.subr.mxu0 0.0
    %652 = vmatpush2.msra.mxu0 0.0
    %653 = vmatprep.mubr.f32.mxu0 0.0
    %654 = vmatmul.mubr.f32.gmra.mxu0 %v587
    %v655 = vpop.f32.mrf.mxu0
    %v656 = vadd.f32 0.0, %v655
    %v657 = vpop.f32.mrf.mxu0
    %v658 = vadd.f32 0.0, %v657
    %659 = vdwg.mxu0
    %v660 = vadd.f32 %v585, %v656
    %v661 = vadd.f32 %v586, %v658
    %v662 = vxor.u32 %v660, 2147483648
    %v663 = vmul.f32 %v662, 1.442695
    %v664 = vpow.pop %v663
    %v665 = vadd.f32 %v664, 1.0
    %v666 = vrcp.pop %v665
    %v667 = vmul.f32 1.0, %v666
    %v668 = vtanh.pop %v661
    %v669 = vxor.u32 %v661, 2147483648
    %v670 = vmul.f32 %v669, 1.442695
    %v671 = vpow.pop %v670
    %v672 = vadd.f32 %v671, 1.0
    %v673 = vrcp.pop %v672
    %v674 = vmul.f32 1.0, %v673
    %v675 = vmul.f32 %v667, %v576
    %v676 = vmul.f32 %v667, %v668
    %678 = vrot.lane.b32.xlu0 %v676, 64
    %v679 = vpop.permute.xlu0 %678
    %v681 = vadd.f32 %v675, %v679
    %v682 = vtanh.pop %v681
    %v683 = vmul.f32 %v674, %v682
    %685 = vrot.lane.b32.xlu0 %v683, 64
    %v686 = vpop.permute.xlu0 %685
    %688 = vst.msk [vmem:[#allocation3 + $0x18] sm:$0xff] %vm269, %v686
    %689 = vst.msk [vmem:[#allocation3 + $0x20] sm:$0xff] %vm373, %v683
    %v690 = vld [vmem:[#allocation2 + $0x40] sm:$0xff]
    %v691 = vld [vmem:[#allocation2 + $0x48] sm:$0xff]
    %v692 = vsel %vm269, %v686, 0
    %694 = vmatprep.subr.mxu0 0.0
    %695 = vmatpush1.msra.mxu0 0.0
    %696 = vmatprep.subr.mxu0 0.0
    %697 = vmatpush1.msra.mxu0 0.0
    %698 = vmatprep.subr.mxu0 0.0
    %699 = vmatpush1.msra.mxu0 0.0
    %700 = vmatprep.subr.mxu0 0.0
    %701 = vmatpush1.msra.mxu0 0.0
    %702 = vmatprep.subr.mxu0 0.0
    %703 = vmatpush1.msra.mxu0 0.0
    %704 = vmatprep.subr.mxu0 0.0
    %705 = vmatpush1.msra.mxu0 0.0
    %706 = vmatprep.subr.mxu0 0.0
    %707 = vmatpush1.msra.mxu0 0.0
    %708 = vmatprep.subr.mxu0 0.0
    %709 = vmatpush1.msra.mxu0 0.0
    %710 = vmatprep.subr.mxu0 %v265
    %711 = vmatpush1.msra.mxu0 %v264
    %712 = vmatprep.subr.mxu0 %v263
    %713 = vmatpush1.msra.mxu0 %v262
    %714 = vmatprep.subr.mxu0 %v261
    %715 = vmatpush1.msra.mxu0 %v260
    %716 = vmatprep.subr.mxu0 %v259
    %717 = vmatpush1.msra.mxu0 %v258
    %718 = vmatprep.subr.mxu0 %v257
    %719 = vmatpush1.msra.mxu0 %v256
    %720 = vmatprep.subr.mxu0 %v255
    %721 = vmatpush1.msra.mxu0 %v254
    %722 = vmatprep.subr.mxu0 %v253
    %723 = vmatpush1.msra.mxu0 %v252
    %724 = vmatprep.subr.mxu0 %v251
    %725 = vmatpush1.msra.mxu0 %v250
    %726 = vmatprep.subr.mxu0 0.0
    %727 = vmatpush2.msra.mxu0 0.0
    %728 = vmatprep.subr.mxu0 0.0
    %729 = vmatpush2.msra.mxu0 0.0
    %730 = vmatprep.subr.mxu0 0.0
    %731 = vmatpush2.msra.mxu0 0.0
    %732 = vmatprep.subr.mxu0 0.0
    %733 = vmatpush2.msra.mxu0 0.0
    %734 = vmatprep.subr.mxu0 0.0
    %735 = vmatpush2.msra.mxu0 0.0
    %736 = vmatprep.subr.mxu0 0.0
    %737 = vmatpush2.msra.mxu0 0.0
    %738 = vmatprep.subr.mxu0 0.0
    %739 = vmatpush2.msra.mxu0 0.0
    %740 = vmatprep.subr.mxu0 0.0
    %741 = vmatpush2.msra.mxu0 0.0
    %742 = vmatprep.subr.mxu0 0.0
    %743 = vmatpush2.msra.mxu0 0.0
    %744 = vmatprep.subr.mxu0 0.0
    %745 = vmatpush2.msra.mxu0 0.0
    %746 = vmatprep.subr.mxu0 0.0
    %747 = vmatpush2.msra.mxu0 0.0
    %748 = vmatprep.subr.mxu0 0.0
    %749 = vmatpush2.msra.mxu0 0.0
    %750 = vmatprep.subr.mxu0 0.0
    %751 = vmatpush2.msra.mxu0 0.0
    %752 = vmatprep.subr.mxu0 0.0
    %753 = vmatpush2.msra.mxu0 0.0
    %754 = vmatprep.subr.mxu0 0.0
    %755 = vmatpush2.msra.mxu0 0.0
    %756 = vmatprep.subr.mxu0 0.0
    %757 = vmatpush2.msra.mxu0 0.0
    %758 = vmatprep.mubr.f32.mxu0 0.0
    %759 = vmatmul.mubr.f32.gmra.mxu0 %v692
    %v760 = vpop.f32.mrf.mxu0
    %v761 = vadd.f32 0.0, %v760
    %v762 = vpop.f32.mrf.mxu0
    %v763 = vadd.f32 0.0, %v762
    %764 = vdwg.mxu0
    %v765 = vadd.f32 %v690, %v761
    %v766 = vadd.f32 %v691, %v763
    %v767 = vxor.u32 %v765, 2147483648
    %v768 = vmul.f32 %v767, 1.442695
    %v769 = vpow.pop %v768
    %v770 = vadd.f32 %v769, 1.0
    %v771 = vrcp.pop %v770
    %v772 = vmul.f32 1.0, %v771
    %v773 = vtanh.pop %v766
    %v774 = vxor.u32 %v766, 2147483648
    %v775 = vmul.f32 %v774, 1.442695
    %v776 = vpow.pop %v775
    %v777 = vadd.f32 %v776, 1.0
    %v778 = vrcp.pop %v777
    %v779 = vmul.f32 1.0, %v778
    %v780 = vmul.f32 %v772, %v681
    %v781 = vmul.f32 %v772, %v773
    %783 = vrot.lane.b32.xlu0 %v781, 64
    %v784 = vpop.permute.xlu0 %783
    %v786 = vadd.f32 %v780, %v784
    %v787 = vtanh.pop %v786
    %v788 = vmul.f32 %v779, %v787
    %790 = vrot.lane.b32.xlu0 %v788, 64
    %v791 = vpop.permute.xlu0 %790
    %793 = vst.msk [vmem:[#allocation3 + $0x20] sm:$0xff] %vm269, %v791
    %794 = vst.msk [vmem:[#allocation3 + $0x18] sm:$0xff] %vm373, %v788
    %v795 = vld [vmem:[#allocation2 + $0x50] sm:$0xff]
    %v796 = vld [vmem:[#allocation2 + $0x58] sm:$0xff]
    %v797 = vsel %vm269, %v791, 0
    %799 = vmatprep.subr.mxu0 0.0
    %800 = vmatpush1.msra.mxu0 0.0
    %801 = vmatprep.subr.mxu0 0.0
    %802 = vmatpush1.msra.mxu0 0.0
    %803 = vmatprep.subr.mxu0 0.0
    %804 = vmatpush1.msra.mxu0 0.0
    %805 = vmatprep.subr.mxu0 0.0
    %806 = vmatpush1.msra.mxu0 0.0
    %807 = vmatprep.subr.mxu0 0.0
    %808 = vmatpush1.msra.mxu0 0.0
    %809 = vmatprep.subr.mxu0 0.0
    %810 = vmatpush1.msra.mxu0 0.0
    %811 = vmatprep.subr.mxu0 0.0
    %812 = vmatpush1.msra.mxu0 0.0
    %813 = vmatprep.subr.mxu0 0.0
    %814 = vmatpush1.msra.mxu0 0.0
    %815 = vmatprep.subr.mxu0 %v265
    %816 = vmatpush1.msra.mxu0 %v264
    %817 = vmatprep.subr.mxu0 %v263
    %818 = vmatpush1.msra.mxu0 %v262
    %819 = vmatprep.subr.mxu0 %v261
    %820 = vmatpush1.msra.mxu0 %v260
    %821 = vmatprep.subr.mxu0 %v259
    %822 = vmatpush1.msra.mxu0 %v258
    %823 = vmatprep.subr.mxu0 %v257
    %824 = vmatpush1.msra.mxu0 %v256
    %825 = vmatprep.subr.mxu0 %v255
    %826 = vmatpush1.msra.mxu0 %v254
    %827 = vmatprep.subr.mxu0 %v253
    %828 = vmatpush1.msra.mxu0 %v252
    %829 = vmatprep.subr.mxu0 %v251
    %830 = vmatpush1.msra.mxu0 %v250
    %831 = vmatprep.subr.mxu0 0.0
    %832 = vmatpush2.msra.mxu0 0.0
    %833 = vmatprep.subr.mxu0 0.0
    %834 = vmatpush2.msra.mxu0 0.0
    %835 = vmatprep.subr.mxu0 0.0
    %836 = vmatpush2.msra.mxu0 0.0
    %837 = vmatprep.subr.mxu0 0.0
    %838 = vmatpush2.msra.mxu0 0.0
    %839 = vmatprep.subr.mxu0 0.0
    %840 = vmatpush2.msra.mxu0 0.0
    %841 = vmatprep.subr.mxu0 0.0
    %842 = vmatpush2.msra.mxu0 0.0
    %843 = vmatprep.subr.mxu0 0.0
    %844 = vmatpush2.msra.mxu0 0.0
    %845 = vmatprep.subr.mxu0 0.0
    %846 = vmatpush2.msra.mxu0 0.0
    %847 = vmatprep.subr.mxu0 0.0
    %848 = vmatpush2.msra.mxu0 0.0
    %849 = vmatprep.subr.mxu0 0.0
    %850 = vmatpush2.msra.mxu0 0.0
    %851 = vmatprep.subr.mxu0 0.0
    %852 = vmatpush2.msra.mxu0 0.0
    %853 = vmatprep.subr.mxu0 0.0
    %854 = vmatpush2.msra.mxu0 0.0
    %855 = vmatprep.subr.mxu0 0.0
    %856 = vmatpush2.msra.mxu0 0.0
    %857 = vmatprep.subr.mxu0 0.0
    %858 = vmatpush2.msra.mxu0 0.0
    %859 = vmatprep.subr.mxu0 0.0
    %860 = vmatpush2.msra.mxu0 0.0
    %861 = vmatprep.subr.mxu0 0.0
    %862 = vmatpush2.msra.mxu0 0.0
    %863 = vmatprep.mubr.f32.mxu0 0.0
    %864 = vmatmul.mubr.f32.gmra.mxu0 %v797
    %v865 = vpop.f32.mrf.mxu0
    %v866 = vadd.f32 0.0, %v865
    %v867 = vpop.f32.mrf.mxu0
    %v868 = vadd.f32 0.0, %v867
    %869 = vdwg.mxu0
    %v870 = vadd.f32 %v795, %v866
    %v871 = vadd.f32 %v796, %v868
    %v872 = vxor.u32 %v870, 2147483648
    %v873 = vmul.f32 %v872, 1.442695
    %v874 = vpow.pop %v873
    %v875 = vadd.f32 %v874, 1.0
    %v876 = vrcp.pop %v875
    %v877 = vmul.f32 1.0, %v876
    %v878 = vtanh.pop %v871
    %v879 = vxor.u32 %v871, 2147483648
    %v880 = vmul.f32 %v879, 1.442695
    %v881 = vpow.pop %v880
    %v882 = vadd.f32 %v881, 1.0
    %v883 = vrcp.pop %v882
    %v884 = vmul.f32 1.0, %v883
    %v885 = vmul.f32 %v877, %v786
    %v886 = vmul.f32 %v877, %v878
    %888 = vrot.lane.b32.xlu0 %v886, 64
    %v889 = vpop.permute.xlu0 %888
    %v891 = vadd.f32 %v885, %v889
    %v892 = vtanh.pop %v891
    %v893 = vmul.f32 %v884, %v892
    %895 = vrot.lane.b32.xlu0 %v893, 64
    %v896 = vpop.permute.xlu0 %895
    %898 = vst.msk [vmem:[#allocation3 + $0x28] sm:$0xff] %vm269, %v896
    %899 = vst.msk [vmem:[#allocation3 + $0x10] sm:$0xff] %vm373, %v893
    %v900 = vld [vmem:[#allocation2 + $0x60] sm:$0xff]
    %v901 = vld [vmem:[#allocation2 + $0x68] sm:$0xff]
    %v902 = vsel %vm269, %v896, 0
    %904 = vmatprep.subr.mxu0 0.0
    %905 = vmatpush1.msra.mxu0 0.0
    %906 = vmatprep.subr.mxu0 0.0
    %907 = vmatpush1.msra.mxu0 0.0
    %908 = vmatprep.subr.mxu0 0.0
    %909 = vmatpush1.msra.mxu0 0.0
    %910 = vmatprep.subr.mxu0 0.0
    %911 = vmatpush1.msra.mxu0 0.0
    %912 = vmatprep.subr.mxu0 0.0
    %913 = vmatpush1.msra.mxu0 0.0
    %914 = vmatprep.subr.mxu0 0.0
    %915 = vmatpush1.msra.mxu0 0.0
    %916 = vmatprep.subr.mxu0 0.0
    %917 = vmatpush1.msra.mxu0 0.0
    %918 = vmatprep.subr.mxu0 0.0
    %919 = vmatpush1.msra.mxu0 0.0
    %920 = vmatprep.subr.mxu0 %v265
    %921 = vmatpush1.msra.mxu0 %v264
    %922 = vmatprep.subr.mxu0 %v263
    %923 = vmatpush1.msra.mxu0 %v262
    %924 = vmatprep.subr.mxu0 %v261
    %925 = vmatpush1.msra.mxu0 %v260
    %926 = vmatprep.subr.mxu0 %v259
    %927 = vmatpush1.msra.mxu0 %v258
    %928 = vmatprep.subr.mxu0 %v257
    %929 = vmatpush1.msra.mxu0 %v256
    %930 = vmatprep.subr.mxu0 %v255
    %931 = vmatpush1.msra.mxu0 %v254
    %932 = vmatprep.subr.mxu0 %v253
    %933 = vmatpush1.msra.mxu0 %v252
    %934 = vmatprep.subr.mxu0 %v251
    %935 = vmatpush1.msra.mxu0 %v250
    %936 = vmatprep.subr.mxu0 0.0
    %937 = vmatpush2.msra.mxu0 0.0
    %938 = vmatprep.subr.mxu0 0.0
    %939 = vmatpush2.msra.mxu0 0.0
    %940 = vmatprep.subr.mxu0 0.0
    %941 = vmatpush2.msra.mxu0 0.0
    %942 = vmatprep.subr.mxu0 0.0
    %943 = vmatpush2.msra.mxu0 0.0
    %944 = vmatprep.subr.mxu0 0.0
    %945 = vmatpush2.msra.mxu0 0.0
    %946 = vmatprep.subr.mxu0 0.0
    %947 = vmatpush2.msra.mxu0 0.0
    %948 = vmatprep.subr.mxu0 0.0
    %949 = vmatpush2.msra.mxu0 0.0
    %950 = vmatprep.subr.mxu0 0.0
    %951 = vmatpush2.msra.mxu0 0.0
    %952 = vmatprep.subr.mxu0 0.0
    %953 = vmatpush2.msra.mxu0 0.0
    %954 = vmatprep.subr.mxu0 0.0
    %955 = vmatpush2.msra.mxu0 0.0
    %956 = vmatprep.subr.mxu0 0.0
    %957 = vmatpush2.msra.mxu0 0.0
    %958 = vmatprep.subr.mxu0 0.0
    %959 = vmatpush2.msra.mxu0 0.0
    %960 = vmatprep.subr.mxu0 0.0
    %961 = vmatpush2.msra.mxu0 0.0
    %962 = vmatprep.subr.mxu0 0.0
    %963 = vmatpush2.msra.mxu0 0.0
    %964 = vmatprep.subr.mxu0 0.0
    %965 = vmatpush2.msra.mxu0 0.0
    %966 = vmatprep.subr.mxu0 0.0
    %967 = vmatpush2.msra.mxu0 0.0
    %968 = vmatprep.mubr.f32.mxu0 0.0
    %969 = vmatmul.mubr.f32.gmra.mxu0 %v902
    %v970 = vpop.f32.mrf.mxu0
    %v971 = vadd.f32 0.0, %v970
    %v972 = vpop.f32.mrf.mxu0
    %v973 = vadd.f32 0.0, %v972
    %974 = vdwg.mxu0
    %v975 = vadd.f32 %v900, %v971
    %v976 = vadd.f32 %v901, %v973
    %v977 = vxor.u32 %v975, 2147483648
    %v978 = vmul.f32 %v977, 1.442695
    %v979 = vpow.pop %v978
    %v980 = vadd.f32 %v979, 1.0
    %v981 = vrcp.pop %v980
    %v982 = vmul.f32 1.0, %v981
    %v983 = vtanh.pop %v976
    %v984 = vxor.u32 %v976, 2147483648
    %v985 = vmul.f32 %v984, 1.442695
    %v986 = vpow.pop %v985
    %v987 = vadd.f32 %v986, 1.0
    %v988 = vrcp.pop %v987
    %v989 = vmul.f32 1.0, %v988
    %v990 = vmul.f32 %v982, %v891
    %v991 = vmul.f32 %v982, %v983
    %993 = vrot.lane.b32.xlu0 %v991, 64
    %v994 = vpop.permute.xlu0 %993
    %v996 = vadd.f32 %v990, %v994
    %v997 = vtanh.pop %v996
    %v998 = vmul.f32 %v989, %v997
    %1000 = vrot.lane.b32.xlu0 %v998, 64
    %v1001 = vpop.permute.xlu0 %1000
    %1003 = vst.msk [vmem:[#allocation3 + $0x30] sm:$0xff] %vm269, %v1001
    %1004 = vst.msk [vmem:[#allocation3 + $0x8] sm:$0xff] %vm373, %v998
    %v1005 = vld [vmem:[#allocation2 + $0x70] sm:$0xff]
    %v1006 = vld [vmem:[#allocation2 + $0x78] sm:$0xff]
    %v1007 = vsel %vm269, %v1001, 0
    %1009 = vmatprep.subr.mxu0 0.0
    %1010 = vmatpush1.msra.mxu0 0.0
    %1011 = vmatprep.subr.mxu0 0.0
    %1012 = vmatpush1.msra.mxu0 0.0
    %1013 = vmatprep.subr.mxu0 0.0
    %1014 = vmatpush1.msra.mxu0 0.0
    %1015 = vmatprep.subr.mxu0 0.0
    %1016 = vmatpush1.msra.mxu0 0.0
    %1017 = vmatprep.subr.mxu0 0.0
    %1018 = vmatpush1.msra.mxu0 0.0
    %1019 = vmatprep.subr.mxu0 0.0
    %1020 = vmatpush1.msra.mxu0 0.0
    %1021 = vmatprep.subr.mxu0 0.0
    %1022 = vmatpush1.msra.mxu0 0.0
    %1023 = vmatprep.subr.mxu0 0.0
    %1024 = vmatpush1.msra.mxu0 0.0
    %1025 = vmatprep.subr.mxu0 %v265
    %1026 = vmatpush1.msra.mxu0 %v264
    %1027 = vmatprep.subr.mxu0 %v263
    %1028 = vmatpush1.msra.mxu0 %v262
    %1029 = vmatprep.subr.mxu0 %v261
    %1030 = vmatpush1.msra.mxu0 %v260
    %1031 = vmatprep.subr.mxu0 %v259
    %1032 = vmatpush1.msra.mxu0 %v258
    %1033 = vmatprep.subr.mxu0 %v257
    %1034 = vmatpush1.msra.mxu0 %v256
    %1035 = vmatprep.subr.mxu0 %v255
    %1036 = vmatpush1.msra.mxu0 %v254
    %1037 = vmatprep.subr.mxu0 %v253
    %1038 = vmatpush1.msra.mxu0 %v252
    %1039 = vmatprep.subr.mxu0 %v251
    %1040 = vmatpush1.msra.mxu0 %v250
    %1041 = vmatprep.subr.mxu0 0.0
    %1042 = vmatpush2.msra.mxu0 0.0
    %1043 = vmatprep.subr.mxu0 0.0
    %1044 = vmatpush2.msra.mxu0 0.0
    %1045 = vmatprep.subr.mxu0 0.0
    %1046 = vmatpush2.msra.mxu0 0.0
    %1047 = vmatprep.subr.mxu0 0.0
    %1048 = vmatpush2.msra.mxu0 0.0
    %1049 = vmatprep.subr.mxu0 0.0
    %1050 = vmatpush2.msra.mxu0 0.0
    %1051 = vmatprep.subr.mxu0 0.0
    %1052 = vmatpush2.msra.mxu0 0.0
    %1053 = vmatprep.subr.mxu0 0.0
    %1054 = vmatpush2.msra.mxu0 0.0
    %1055 = vmatprep.subr.mxu0 0.0
    %1056 = vmatpush2.msra.mxu0 0.0
    %1057 = vmatprep.subr.mxu0 0.0
    %1058 = vmatpush2.msra.mxu0 0.0
    %1059 = vmatprep.subr.mxu0 0.0
    %1060 = vmatpush2.msra.mxu0 0.0
    %1061 = vmatprep.subr.mxu0 0.0
    %1062 = vmatpush2.msra.mxu0 0.0
    %1063 = vmatprep.subr.mxu0 0.0
    %1064 = vmatpush2.msra.mxu0 0.0
    %1065 = vmatprep.subr.mxu0 0.0
    %1066 = vmatpush2.msra.mxu0 0.0
    %1067 = vmatprep.subr.mxu0 0.0
    %1068 = vmatpush2.msra.mxu0 0.0
    %1069 = vmatprep.subr.mxu0 0.0
    %1070 = vmatpush2.msra.mxu0 0.0
    %1071 = vmatprep.subr.mxu0 0.0
    %1072 = vmatpush2.msra.mxu0 0.0
    %1073 = vmatprep.mubr.f32.mxu0 0.0
    %1074 = vmatmul.mubr.f32.gmra.mxu0 %v1007
    %v1075 = vpop.f32.mrf.mxu0
    %v1076 = vadd.f32 0.0, %v1075
    %v1077 = vpop.f32.mrf.mxu0
    %v1078 = vadd.f32 0.0, %v1077
    %1079 = vdwg.mxu0
    %v1080 = vadd.f32 %v1005, %v1076
    %v1081 = vadd.f32 %v1006, %v1078
    %v1082 = vxor.u32 %v1080, 2147483648
    %v1083 = vmul.f32 %v1082, 1.442695
    %v1084 = vpow.pop %v1083
    %v1085 = vadd.f32 %v1084, 1.0
    %v1086 = vrcp.pop %v1085
    %v1087 = vmul.f32 1.0, %v1086
    %v1088 = vtanh.pop %v1081
    %v1089 = vxor.u32 %v1081, 2147483648
    %v1090 = vmul.f32 %v1089, 1.442695
    %v1091 = vpow.pop %v1090
    %v1092 = vadd.f32 %v1091, 1.0
    %v1093 = vrcp.pop %v1092
    %v1094 = vmul.f32 1.0, %v1093
    %v1095 = vmul.f32 %v1087, %v996
    %v1096 = vmul.f32 %v1087, %v1088
    %1098 = vrot.lane.b32.xlu0 %v1096, 64
    %v1099 = vpop.permute.xlu0 %1098
    %v1101 = vadd.f32 %v1095, %v1099
    %v1102 = vtanh.pop %v1101
    %v1103 = vmul.f32 %v1094, %v1102
    %1105 = vrot.lane.b32.xlu0 %v1103, 64
    %v1106 = vpop.permute.xlu0 %1105
    %1108 = vst.msk [vmem:[#allocation3 + $0x38] sm:$0xff] %vm269, %v1106
    %1109 = vst.msk [vmem:[#allocation3] sm:$0xff] %vm373, %v1103
    %v1110 = vld [vmem:[#allocation3] sm:$0xff]
    %v1111 = vld [vmem:[#allocation3 + $0x8] sm:$0xff]
    %v1112 = vld [vmem:[#allocation3 + $0x10] sm:$0xff]
    %v1113 = vld [vmem:[#allocation3 + $0x18] sm:$0xff]
    %v1114 = vld [vmem:[#allocation3 + $0x20] sm:$0xff]
    %v1115 = vld [vmem:[#allocation3 + $0x28] sm:$0xff]
    %v1116 = vld [vmem:[#allocation3 + $0x30] sm:$0xff]
    %v1117 = vld [vmem:[#allocation3 + $0x38] sm:$0xff]
    %v1118 = vld [vmem:[#allocation4] sm:$0xff]
    %v1119 = vld [vmem:[#allocation4 + $0x8] sm:$0xff]
    %v1120 = vld [vmem:[#allocation4 + $0x10] sm:$0xff]
    %v1121 = vld [vmem:[#allocation4 + $0x18] sm:$0xff]
    %v1122 = vld [vmem:[#allocation4 + $0x20] sm:$0xff]
    %v1123 = vld [vmem:[#allocation4 + $0x28] sm:$0xff]
    %v1124 = vld [vmem:[#allocation4 + $0x30] sm:$0xff]
    %v1125 = vld [vmem:[#allocation4 + $0x38] sm:$0xff]
    %v1126 = vld [vmem:[#allocation4 + $0x40] sm:$0xff]
    %v1127 = vld [vmem:[#allocation4 + $0x48] sm:$0xff]
    %v1128 = vld [vmem:[#allocation4 + $0x50] sm:$0xff]
    %v1129 = vld [vmem:[#allocation4 + $0x58] sm:$0xff]
    %v1130 = vld [vmem:[#allocation4 + $0x60] sm:$0xff]
    %v1131 = vld [vmem:[#allocation4 + $0x68] sm:$0xff]
    %v1132 = vld [vmem:[#allocation4 + $0x70] sm:$0xff]
    %v1133 = vld [vmem:[#allocation4 + $0x78] sm:$0xff]
    %v1134 = vld [vmem:[#allocation4 + $0x80] sm:$0xff]
    %v1135 = vld [vmem:[#allocation4 + $0x88] sm:$0xff]
    %v1136 = vld [vmem:[#allocation4 + $0x90] sm:$0xff]
    %v1137 = vld [vmem:[#allocation4 + $0x98] sm:$0xff]
    %v1138 = vld [vmem:[#allocation4 + $0xa0] sm:$0xff]
    %v1139 = vld [vmem:[#allocation4 + $0xa8] sm:$0xff]
    %v1140 = vld [vmem:[#allocation4 + $0xb0] sm:$0xff]
    %v1141 = vld [vmem:[#allocation4 + $0xb8] sm:$0xff]
    %v1142 = vld [vmem:[#allocation4 + $0xc0] sm:$0xff]
    %v1143 = vld [vmem:[#allocation4 + $0xc8] sm:$0xff]
    %v1144 = vld [vmem:[#allocation4 + $0xd0] sm:$0xff]
    %v1145 = vld [vmem:[#allocation4 + $0xd8] sm:$0xff]
    %v1146 = vld [vmem:[#allocation4 + $0xe0] sm:$0xff]
    %v1147 = vld [vmem:[#allocation4 + $0xe8] sm:$0xff]
    %v1148 = vld [vmem:[#allocation4 + $0xf0] sm:$0xff]
    %v1149 = vld [vmem:[#allocation4 + $0xf8] sm:$0xff]
    %s1150 = scalar_lea.vmem %s5, 2
    %v1151 = vld [vmem:[%s1150] sm:$0x3]
    %v1153 = vlaneseq
    %v1154 = vshrl.u32 %v1153, 7
    %v1155 = vsub.s32 0, %v1154
    %v1156 = vrot.slane %v1151, %v1155
    %v1157 = vlaneseq
    %v1158 = vshrl.u32 %v1157, 7
    %v1159 = vsub.s32 1, %v1158
    %v1160 = vrot.slane %v1151, %v1159
    %1163 = vmatprep.subr.mxu0 %v1149
    %1164 = vmatpush1.msra.mxu0 %v1148
    %1165 = vmatprep.subr.mxu0 %v1147
    %1166 = vmatpush1.msra.mxu0 %v1146
    %1167 = vmatprep.subr.mxu0 %v1145
    %1168 = vmatpush1.msra.mxu0 %v1144
    %1169 = vmatprep.subr.mxu0 %v1143
    %1170 = vmatpush1.msra.mxu0 %v1142
    %1171 = vmatprep.subr.mxu0 %v1141
    %1172 = vmatpush1.msra.mxu0 %v1140
    %1173 = vmatprep.subr.mxu0 %v1139
    %1174 = vmatpush1.msra.mxu0 %v1138
    %1175 = vmatprep.subr.mxu0 %v1137
    %1176 = vmatpush1.msra.mxu0 %v1136
    %1177 = vmatprep.subr.mxu0 %v1135
    %1178 = vmatpush1.msra.mxu0 %v1134
    %1179 = vmatprep.subr.mxu0 %v1133
    %1180 = vmatpush1.msra.mxu0 %v1132
    %1181 = vmatprep.subr.mxu0 %v1131
    %1182 = vmatpush1.msra.mxu0 %v1130
    %1183 = vmatprep.subr.mxu0 %v1129
    %1184 = vmatpush1.msra.mxu0 %v1128
    %1185 = vmatprep.subr.mxu0 %v1127
    %1186 = vmatpush1.msra.mxu0 %v1126
    %1187 = vmatprep.subr.mxu0 %v1125
    %1188 = vmatpush1.msra.mxu0 %v1124
    %1189 = vmatprep.subr.mxu0 %v1123
    %1190 = vmatpush1.msra.mxu0 %v1122
    %1191 = vmatprep.subr.mxu0 %v1121
    %1192 = vmatpush1.msra.mxu0 %v1120
    %1193 = vmatprep.subr.mxu0 %v1119
    %1194 = vmatpush1.msra.mxu0 %v1118
    %1195 = vmatprep.subr.mxu0 0.0
    %1196 = vmatpush2.msra.mxu0 0.0
    %1197 = vmatprep.subr.mxu0 0.0
    %1198 = vmatpush2.msra.mxu0 0.0
    %1199 = vmatprep.subr.mxu0 0.0
    %1200 = vmatpush2.msra.mxu0 0.0
    %1201 = vmatprep.subr.mxu0 0.0
    %1202 = vmatpush2.msra.mxu0 0.0
    %1203 = vmatprep.subr.mxu0 0.0
    %1204 = vmatpush2.msra.mxu0 0.0
    %1205 = vmatprep.subr.mxu0 0.0
    %1206 = vmatpush2.msra.mxu0 0.0
    %1207 = vmatprep.subr.mxu0 0.0
    %1208 = vmatpush2.msra.mxu0 0.0
    %1209 = vmatprep.subr.mxu0 0.0
    %1210 = vmatpush2.msra.mxu0 0.0
    %1211 = vmatprep.subr.mxu0 0.0
    %1212 = vmatpush2.msra.mxu0 0.0
    %1213 = vmatprep.subr.mxu0 0.0
    %1214 = vmatpush2.msra.mxu0 0.0
    %1215 = vmatprep.subr.mxu0 0.0
    %1216 = vmatpush2.msra.mxu0 0.0
    %1217 = vmatprep.subr.mxu0 0.0
    %1218 = vmatpush2.msra.mxu0 0.0
    %1219 = vmatprep.subr.mxu0 0.0
    %1220 = vmatpush2.msra.mxu0 0.0
    %1221 = vmatprep.subr.mxu0 0.0
    %1222 = vmatpush2.msra.mxu0 0.0
    %1223 = vmatprep.subr.mxu0 0.0
    %1224 = vmatpush2.msra.mxu0 0.0
    %1225 = vmatprep.subr.mxu0 0.0
    %1226 = vmatpush2.msra.mxu0 0.0
    %1227 = vmatprep.mubr.f32.mxu0 0.0
    %1228 = vmatmul.mubr.f32.gmra.mxu0 %v1110
    %v1229 = vpop.f32.mrf.mxu0
    %v1230 = vadd.f32 %v1156, %v1229
    %v1231 = vpop.f32.mrf.mxu0
    %v1232 = vadd.f32 %v1160, %v1231
    %1233 = vmatprep.mubr.f32.mxu0 0.0
    %1234 = vmatmul.mubr.f32.gmra.mxu0 %v1111
    %v1235 = vpop.f32.mrf.mxu0
    %v1236 = vadd.f32 %v1156, %v1235
    %v1237 = vpop.f32.mrf.mxu0
    %v1238 = vadd.f32 %v1160, %v1237
    %1239 = vmatprep.mubr.f32.mxu0 0.0
    %1240 = vmatmul.mubr.f32.gmra.mxu0 %v1112
    %v1241 = vpop.f32.mrf.mxu0
    %v1242 = vadd.f32 %v1156, %v1241
    %v1243 = vpop.f32.mrf.mxu0
    %v1244 = vadd.f32 %v1160, %v1243
    %1245 = vmatprep.mubr.f32.mxu0 0.0
    %1246 = vmatmul.mubr.f32.gmra.mxu0 %v1113
    %v1247 = vpop.f32.mrf.mxu0
    %v1248 = vadd.f32 %v1156, %v1247
    %v1249 = vpop.f32.mrf.mxu0
    %v1250 = vadd.f32 %v1160, %v1249
    %1251 = vmatprep.mubr.f32.mxu0 0.0
    %1252 = vmatmul.mubr.f32.gmra.mxu0 %v1114
    %v1253 = vpop.f32.mrf.mxu0
    %v1254 = vadd.f32 %v1156, %v1253
    %v1255 = vpop.f32.mrf.mxu0
    %v1256 = vadd.f32 %v1160, %v1255
    %1257 = vmatprep.mubr.f32.mxu0 0.0
    %1258 = vmatmul.mubr.f32.gmra.mxu0 %v1115
    %v1259 = vpop.f32.mrf.mxu0
    %v1260 = vadd.f32 %v1156, %v1259
    %v1261 = vpop.f32.mrf.mxu0
    %v1262 = vadd.f32 %v1160, %v1261
    %1263 = vmatprep.mubr.f32.mxu0 0.0
    %1264 = vmatmul.mubr.f32.gmra.mxu0 %v1116
    %v1265 = vpop.f32.mrf.mxu0
    %v1266 = vadd.f32 %v1156, %v1265
    %v1267 = vpop.f32.mrf.mxu0
    %v1268 = vadd.f32 %v1160, %v1267
    %1269 = vmatprep.mubr.f32.mxu0 0.0
    %1270 = vmatmul.mubr.f32.gmra.mxu0 %v1117
    %v1271 = vpop.f32.mrf.mxu0
    %v1272 = vadd.f32 %v1156, %v1271
    %v1273 = vpop.f32.mrf.mxu0
    %v1274 = vadd.f32 %v1160, %v1273
    %1275 = vdwg.mxu0
    %1276 = vst [vmem:[#allocation2] sm:$0xff] %v1230
    %1277 = vst [vmem:[#allocation2 + $0x8] sm:$0xff] %v1232
    %1278 = vst [vmem:[#allocation2 + $0x10] sm:$0xff] %v1236
    %1279 = vst [vmem:[#allocation2 + $0x18] sm:$0xff] %v1238
    %1280 = vst [vmem:[#allocation2 + $0x20] sm:$0xff] %v1242
    %1281 = vst [vmem:[#allocation2 + $0x28] sm:$0xff] %v1244
    %1282 = vst [vmem:[#allocation2 + $0x30] sm:$0xff] %v1248
    %1283 = vst [vmem:[#allocation2 + $0x38] sm:$0xff] %v1250
    %1284 = vst [vmem:[#allocation2 + $0x40] sm:$0xff] %v1254
    %1285 = vst [vmem:[#allocation2 + $0x48] sm:$0xff] %v1256
    %1286 = vst [vmem:[#allocation2 + $0x50] sm:$0xff] %v1260
    %1287 = vst [vmem:[#allocation2 + $0x58] sm:$0xff] %v1262
    %1288 = vst [vmem:[#allocation2 + $0x60] sm:$0xff] %v1266
    %1289 = vst [vmem:[#allocation2 + $0x68] sm:$0xff] %v1268
    %1290 = vst [vmem:[#allocation2 + $0x70] sm:$0xff] %v1272
    %1291 = vst [vmem:[#allocation2 + $0x78] sm:$0xff] %v1274
    %s1292 = scalar_lea.vmem [#allocation7], 128
    %v1293 = vld [vmem:[%s1292] sm:$0xff]
    %v1294 = vld [vmem:[%s1292 + $0x8] sm:$0xff]
    %v1295 = vld [vmem:[%s1292 + $0x10] sm:$0xff]
    %v1296 = vld [vmem:[%s1292 + $0x18] sm:$0xff]
    %v1297 = vld [vmem:[%s1292 + $0x20] sm:$0xff]
    %v1298 = vld [vmem:[%s1292 + $0x28] sm:$0xff]
    %v1299 = vld [vmem:[%s1292 + $0x30] sm:$0xff]
    %v1300 = vld [vmem:[%s1292 + $0x38] sm:$0xff]
    %v1301 = vld [vmem:[%s1292 + $0x40] sm:$0xff]
    %v1302 = vld [vmem:[%s1292 + $0x48] sm:$0xff]
    %v1303 = vld [vmem:[%s1292 + $0x50] sm:$0xff]
    %v1304 = vld [vmem:[%s1292 + $0x58] sm:$0xff]
    %v1305 = vld [vmem:[%s1292 + $0x60] sm:$0xff]
    %v1306 = vld [vmem:[%s1292 + $0x68] sm:$0xff]
    %v1307 = vld [vmem:[%s1292 + $0x70] sm:$0xff]
    %v1308 = vld [vmem:[%s1292 + $0x78] sm:$0xff]
    %s1309 = scalar_lea.vmem %s1, 8
    %v1310 = vld [vmem:[%s1309] sm:$0xff]
    %v1311 = vld [vmem:[#allocation2] sm:$0xff]
    %v1312 = vld [vmem:[#allocation2 + $0x8] sm:$0xff]
    %v1314 = vsel %vm269, %v1310, 0
    %1316 = vmatprep.subr.mxu0 0.0
    %1317 = vmatpush1.msra.mxu0 0.0
    %1318 = vmatprep.subr.mxu0 0.0
    %1319 = vmatpush1.msra.mxu0 0.0
    %1320 = vmatprep.subr.mxu0 0.0
    %1321 = vmatpush1.msra.mxu0 0.0
    %1322 = vmatprep.subr.mxu0 0.0
    %1323 = vmatpush1.msra.mxu0 0.0
    %1324 = vmatprep.subr.mxu0 0.0
    %1325 = vmatpush1.msra.mxu0 0.0
    %1326 = vmatprep.subr.mxu0 0.0
    %1327 = vmatpush1.msra.mxu0 0.0
    %1328 = vmatprep.subr.mxu0 0.0
    %1329 = vmatpush1.msra.mxu0 0.0
    %1330 = vmatprep.subr.mxu0 0.0
    %1331 = vmatpush1.msra.mxu0 0.0
    %1332 = vmatprep.subr.mxu0 %v1308
    %1333 = vmatpush1.msra.mxu0 %v1307
    %1334 = vmatprep.subr.mxu0 %v1306
    %1335 = vmatpush1.msra.mxu0 %v1305
    %1336 = vmatprep.subr.mxu0 %v1304
    %1337 = vmatpush1.msra.mxu0 %v1303
    %1338 = vmatprep.subr.mxu0 %v1302
    %1339 = vmatpush1.msra.mxu0 %v1301
    %1340 = vmatprep.subr.mxu0 %v1300
    %1341 = vmatpush1.msra.mxu0 %v1299
    %1342 = vmatprep.subr.mxu0 %v1298
    %1343 = vmatpush1.msra.mxu0 %v1297
    %1344 = vmatprep.subr.mxu0 %v1296
    %1345 = vmatpush1.msra.mxu0 %v1295
    %1346 = vmatprep.subr.mxu0 %v1294
    %1347 = vmatpush1.msra.mxu0 %v1293
    %1348 = vmatprep.subr.mxu0 0.0
    %1349 = vmatpush2.msra.mxu0 0.0
    %1350 = vmatprep.subr.mxu0 0.0
    %1351 = vmatpush2.msra.mxu0 0.0
    %1352 = vmatprep.subr.mxu0 0.0
    %1353 = vmatpush2.msra.mxu0 0.0
    %1354 = vmatprep.subr.mxu0 0.0
    %1355 = vmatpush2.msra.mxu0 0.0
    %1356 = vmatprep.subr.mxu0 0.0
    %1357 = vmatpush2.msra.mxu0 0.0
    %1358 = vmatprep.subr.mxu0 0.0
    %1359 = vmatpush2.msra.mxu0 0.0
    %1360 = vmatprep.subr.mxu0 0.0
    %1361 = vmatpush2.msra.mxu0 0.0
    %1362 = vmatprep.subr.mxu0 0.0
    %1363 = vmatpush2.msra.mxu0 0.0
    %1364 = vmatprep.subr.mxu0 0.0
    %1365 = vmatpush2.msra.mxu0 0.0
    %1366 = vmatprep.subr.mxu0 0.0
    %1367 = vmatpush2.msra.mxu0 0.0
    %1368 = vmatprep.subr.mxu0 0.0
    %1369 = vmatpush2.msra.mxu0 0.0
    %1370 = vmatprep.subr.mxu0 0.0
    %1371 = vmatpush2.msra.mxu0 0.0
    %1372 = vmatprep.subr.mxu0 0.0
    %1373 = vmatpush2.msra.mxu0 0.0
    %1374 = vmatprep.subr.mxu0 0.0
    %1375 = vmatpush2.msra.mxu0 0.0
    %1376 = vmatprep.subr.mxu0 0.0
    %1377 = vmatpush2.msra.mxu0 0.0
    %1378 = vmatprep.subr.mxu0 0.0
    %1379 = vmatpush2.msra.mxu0 0.0
    %1380 = vmatprep.mubr.f32.mxu0 0.0
    %1381 = vmatmul.mubr.f32.gmra.mxu0 %v1314
    %v1382 = vpop.f32.mrf.mxu0
    %v1383 = vadd.f32 0.0, %v1382
    %v1384 = vpop.f32.mrf.mxu0
    %v1385 = vadd.f32 0.0, %v1384
    %1386 = vdwg.mxu0
    %v1387 = vadd.f32 %v1311, %v1383
    %v1388 = vadd.f32 %v1312, %v1385
    %v1389 = vxor.u32 %v1387, 2147483648
    %v1390 = vmul.f32 %v1389, 1.442695
    %v1391 = vpow.pop %v1390
    %v1392 = vadd.f32 %v1391, 1.0
    %v1393 = vrcp.pop %v1392
    %v1394 = vmul.f32 1.0, %v1393
    %v1395 = vtanh.pop %v1388
    %v1396 = vxor.u32 %v1388, 2147483648
    %v1397 = vmul.f32 %v1396, 1.442695
    %v1398 = vpow.pop %v1397
    %v1399 = vadd.f32 %v1398, 1.0
    %v1400 = vrcp.pop %v1399
    %v1401 = vmul.f32 1.0, %v1400
    %v1402 = vmul.f32 %v1394, %v1310
    %v1403 = vmul.f32 %v1394, %v1395
    %1405 = vrot.lane.b32.xlu0 %v1403, 64
    %v1406 = vpop.permute.xlu0 %1405
    %v1408 = vadd.f32 %v1402, %v1406
    %v1409 = vtanh.pop %v1408
    %v1410 = vmul.f32 %v1401, %v1409
    %v1411 = vld [vmem:[#allocation2 + $0x10] sm:$0xff]
    %v1412 = vld [vmem:[#allocation2 + $0x18] sm:$0xff]
    %1414 = vrot.lane.b32.xlu0 %v1410, 64
    %v1415 = vpop.permute.xlu0 %1414
    %v1416 = vsel %vm269, %v1415, 0
    %1418 = vmatprep.subr.mxu0 0.0
    %1419 = vmatpush1.msra.mxu0 0.0
    %1420 = vmatprep.subr.mxu0 0.0
    %1421 = vmatpush1.msra.mxu0 0.0
    %1422 = vmatprep.subr.mxu0 0.0
    %1423 = vmatpush1.msra.mxu0 0.0
    %1424 = vmatprep.subr.mxu0 0.0
    %1425 = vmatpush1.msra.mxu0 0.0
    %1426 = vmatprep.subr.mxu0 0.0
    %1427 = vmatpush1.msra.mxu0 0.0
    %1428 = vmatprep.subr.mxu0 0.0
    %1429 = vmatpush1.msra.mxu0 0.0
    %1430 = vmatprep.subr.mxu0 0.0
    %1431 = vmatpush1.msra.mxu0 0.0
    %1432 = vmatprep.subr.mxu0 0.0
    %1433 = vmatpush1.msra.mxu0 0.0
    %1434 = vmatprep.subr.mxu0 %v1308
    %1435 = vmatpush1.msra.mxu0 %v1307
    %1436 = vmatprep.subr.mxu0 %v1306
    %1437 = vmatpush1.msra.mxu0 %v1305
    %1438 = vmatprep.subr.mxu0 %v1304
    %1439 = vmatpush1.msra.mxu0 %v1303
    %1440 = vmatprep.subr.mxu0 %v1302
    %1441 = vmatpush1.msra.mxu0 %v1301
    %1442 = vmatprep.subr.mxu0 %v1300
    %1443 = vmatpush1.msra.mxu0 %v1299
    %1444 = vmatprep.subr.mxu0 %v1298
    %1445 = vmatpush1.msra.mxu0 %v1297
    %1446 = vmatprep.subr.mxu0 %v1296
    %1447 = vmatpush1.msra.mxu0 %v1295
    %1448 = vmatprep.subr.mxu0 %v1294
    %1449 = vmatpush1.msra.mxu0 %v1293
    %1450 = vmatprep.subr.mxu0 0.0
    %1451 = vmatpush2.msra.mxu0 0.0
    %1452 = vmatprep.subr.mxu0 0.0
    %1453 = vmatpush2.msra.mxu0 0.0
    %1454 = vmatprep.subr.mxu0 0.0
    %1455 = vmatpush2.msra.mxu0 0.0
    %1456 = vmatprep.subr.mxu0 0.0
    %1457 = vmatpush2.msra.mxu0 0.0
    %1458 = vmatprep.subr.mxu0 0.0
    %1459 = vmatpush2.msra.mxu0 0.0
    %1460 = vmatprep.subr.mxu0 0.0
    %1461 = vmatpush2.msra.mxu0 0.0
    %1462 = vmatprep.subr.mxu0 0.0
    %1463 = vmatpush2.msra.mxu0 0.0
    %1464 = vmatprep.subr.mxu0 0.0
    %1465 = vmatpush2.msra.mxu0 0.0
    %1466 = vmatprep.subr.mxu0 0.0
    %1467 = vmatpush2.msra.mxu0 0.0
    %1468 = vmatprep.subr.mxu0 0.0
    %1469 = vmatpush2.msra.mxu0 0.0
    %1470 = vmatprep.subr.mxu0 0.0
    %1471 = vmatpush2.msra.mxu0 0.0
    %1472 = vmatprep.subr.mxu0 0.0
    %1473 = vmatpush2.msra.mxu0 0.0
    %1474 = vmatprep.subr.mxu0 0.0
    %1475 = vmatpush2.msra.mxu0 0.0
    %1476 = vmatprep.subr.mxu0 0.0
    %1477 = vmatpush2.msra.mxu0 0.0
    %1478 = vmatprep.subr.mxu0 0.0
    %1479 = vmatpush2.msra.mxu0 0.0
    %1480 = vmatprep.subr.mxu0 0.0
    %1481 = vmatpush2.msra.mxu0 0.0
    %1482 = vmatprep.mubr.f32.mxu0 0.0
    %1483 = vmatmul.mubr.f32.gmra.mxu0 %v1416
    %v1484 = vpop.f32.mrf.mxu0
    %v1485 = vadd.f32 0.0, %v1484
    %v1486 = vpop.f32.mrf.mxu0
    %v1487 = vadd.f32 0.0, %v1486
    %1488 = vdwg.mxu0
    %v1489 = vadd.f32 %v1411, %v1485
    %v1490 = vadd.f32 %v1412, %v1487
    %v1491 = vxor.u32 %v1489, 2147483648
    %v1492 = vmul.f32 %v1491, 1.442695
    %v1493 = vpow.pop %v1492
    %v1494 = vadd.f32 %v1493, 1.0
    %v1495 = vrcp.pop %v1494
    %v1496 = vmul.f32 1.0, %v1495
    %v1497 = vtanh.pop %v1490
    %v1498 = vxor.u32 %v1490, 2147483648
    %v1499 = vmul.f32 %v1498, 1.442695
    %v1500 = vpow.pop %v1499
    %v1501 = vadd.f32 %v1500, 1.0
    %v1502 = vrcp.pop %v1501
    %v1503 = vmul.f32 1.0, %v1502
    %v1504 = vmul.f32 %v1496, %v1408
    %v1505 = vmul.f32 %v1496, %v1497
    %1507 = vrot.lane.b32.xlu0 %v1505, 64
    %v1508 = vpop.permute.xlu0 %1507
    %v1510 = vadd.f32 %v1504, %v1508
    %v1511 = vtanh.pop %v1510
    %v1512 = vmul.f32 %v1503, %v1511
    %v1513 = vld [vmem:[#allocation2 + $0x20] sm:$0xff]
    %v1514 = vld [vmem:[#allocation2 + $0x28] sm:$0xff]
    %1516 = vrot.lane.b32.xlu0 %v1512, 64
    %v1517 = vpop.permute.xlu0 %1516
    %v1518 = vsel %vm269, %v1517, 0
    %1520 = vmatprep.subr.mxu0 0.0
    %1521 = vmatpush1.msra.mxu0 0.0
    %1522 = vmatprep.subr.mxu0 0.0
    %1523 = vmatpush1.msra.mxu0 0.0
    %1524 = vmatprep.subr.mxu0 0.0
    %1525 = vmatpush1.msra.mxu0 0.0
    %1526 = vmatprep.subr.mxu0 0.0
    %1527 = vmatpush1.msra.mxu0 0.0
    %1528 = vmatprep.subr.mxu0 0.0
    %1529 = vmatpush1.msra.mxu0 0.0
    %1530 = vmatprep.subr.mxu0 0.0
    %1531 = vmatpush1.msra.mxu0 0.0
    %1532 = vmatprep.subr.mxu0 0.0
    %1533 = vmatpush1.msra.mxu0 0.0
    %1534 = vmatprep.subr.mxu0 0.0
    %1535 = vmatpush1.msra.mxu0 0.0
    %1536 = vmatprep.subr.mxu0 %v1308
    %1537 = vmatpush1.msra.mxu0 %v1307
    %1538 = vmatprep.subr.mxu0 %v1306
    %1539 = vmatpush1.msra.mxu0 %v1305
    %1540 = vmatprep.subr.mxu0 %v1304
    %1541 = vmatpush1.msra.mxu0 %v1303
    %1542 = vmatprep.subr.mxu0 %v1302
    %1543 = vmatpush1.msra.mxu0 %v1301
    %1544 = vmatprep.subr.mxu0 %v1300
    %1545 = vmatpush1.msra.mxu0 %v1299
    %1546 = vmatprep.subr.mxu0 %v1298
    %1547 = vmatpush1.msra.mxu0 %v1297
    %1548 = vmatprep.subr.mxu0 %v1296
    %1549 = vmatpush1.msra.mxu0 %v1295
    %1550 = vmatprep.subr.mxu0 %v1294
    %1551 = vmatpush1.msra.mxu0 %v1293
    %1552 = vmatprep.subr.mxu0 0.0
    %1553 = vmatpush2.msra.mxu0 0.0
    %1554 = vmatprep.subr.mxu0 0.0
    %1555 = vmatpush2.msra.mxu0 0.0
    %1556 = vmatprep.subr.mxu0 0.0
    %1557 = vmatpush2.msra.mxu0 0.0
    %1558 = vmatprep.subr.mxu0 0.0
    %1559 = vmatpush2.msra.mxu0 0.0
    %1560 = vmatprep.subr.mxu0 0.0
    %1561 = vmatpush2.msra.mxu0 0.0
    %1562 = vmatprep.subr.mxu0 0.0
    %1563 = vmatpush2.msra.mxu0 0.0
    %1564 = vmatprep.subr.mxu0 0.0
    %1565 = vmatpush2.msra.mxu0 0.0
    %1566 = vmatprep.subr.mxu0 0.0
    %1567 = vmatpush2.msra.mxu0 0.0
    %1568 = vmatprep.subr.mxu0 0.0
    %1569 = vmatpush2.msra.mxu0 0.0
    %1570 = vmatprep.subr.mxu0 0.0
    %1571 = vmatpush2.msra.mxu0 0.0
    %1572 = vmatprep.subr.mxu0 0.0
    %1573 = vmatpush2.msra.mxu0 0.0
    %1574 = vmatprep.subr.mxu0 0.0
    %1575 = vmatpush2.msra.mxu0 0.0
    %1576 = vmatprep.subr.mxu0 0.0
    %1577 = vmatpush2.msra.mxu0 0.0
    %1578 = vmatprep.subr.mxu0 0.0
    %1579 = vmatpush2.msra.mxu0 0.0
    %1580 = vmatprep.subr.mxu0 0.0
    %1581 = vmatpush2.msra.mxu0 0.0
    %1582 = vmatprep.subr.mxu0 0.0
    %1583 = vmatpush2.msra.mxu0 0.0
    %1584 = vmatprep.mubr.f32.mxu0 0.0
    %1585 = vmatmul.mubr.f32.gmra.mxu0 %v1518
    %v1586 = vpop.f32.mrf.mxu0
    %v1587 = vadd.f32 0.0, %v1586
    %v1588 = vpop.f32.mrf.mxu0
    %v1589 = vadd.f32 0.0, %v1588
    %1590 = vdwg.mxu0
    %v1591 = vadd.f32 %v1513, %v1587
    %v1592 = vadd.f32 %v1514, %v1589
    %v1593 = vxor.u32 %v1591, 2147483648
    %v1594 = vmul.f32 %v1593, 1.442695
    %v1595 = vpow.pop %v1594
    %v1596 = vadd.f32 %v1595, 1.0
    %v1597 = vrcp.pop %v1596
    %v1598 = vmul.f32 1.0, %v1597
    %v1599 = vtanh.pop %v1592
    %v1600 = vxor.u32 %v1592, 2147483648
    %v1601 = vmul.f32 %v1600, 1.442695
    %v1602 = vpow.pop %v1601
    %v1603 = vadd.f32 %v1602, 1.0
    %v1604 = vrcp.pop %v1603
    %v1605 = vmul.f32 1.0, %v1604
    %v1606 = vmul.f32 %v1598, %v1510
    %v1607 = vmul.f32 %v1598, %v1599
    %1609 = vrot.lane.b32.xlu0 %v1607, 64
    %v1610 = vpop.permute.xlu0 %1609
    %v1612 = vadd.f32 %v1606, %v1610
    %v1613 = vtanh.pop %v1612
    %v1614 = vmul.f32 %v1605, %v1613
    %v1615 = vld [vmem:[#allocation2 + $0x30] sm:$0xff]
    %v1616 = vld [vmem:[#allocation2 + $0x38] sm:$0xff]
    %1618 = vrot.lane.b32.xlu0 %v1614, 64
    %v1619 = vpop.permute.xlu0 %1618
    %v1620 = vsel %vm269, %v1619, 0
    %1622 = vmatprep.subr.mxu0 0.0
    %1623 = vmatpush1.msra.mxu0 0.0
    %1624 = vmatprep.subr.mxu0 0.0
    %1625 = vmatpush1.msra.mxu0 0.0
    %1626 = vmatprep.subr.mxu0 0.0
    %1627 = vmatpush1.msra.mxu0 0.0
    %1628 = vmatprep.subr.mxu0 0.0
    %1629 = vmatpush1.msra.mxu0 0.0
    %1630 = vmatprep.subr.mxu0 0.0
    %1631 = vmatpush1.msra.mxu0 0.0
    %1632 = vmatprep.subr.mxu0 0.0
    %1633 = vmatpush1.msra.mxu0 0.0
    %1634 = vmatprep.subr.mxu0 0.0
    %1635 = vmatpush1.msra.mxu0 0.0
    %1636 = vmatprep.subr.mxu0 0.0
    %1637 = vmatpush1.msra.mxu0 0.0
    %1638 = vmatprep.subr.mxu0 %v1308
    %1639 = vmatpush1.msra.mxu0 %v1307
    %1640 = vmatprep.subr.mxu0 %v1306
    %1641 = vmatpush1.msra.mxu0 %v1305
    %1642 = vmatprep.subr.mxu0 %v1304
    %1643 = vmatpush1.msra.mxu0 %v1303
    %1644 = vmatprep.subr.mxu0 %v1302
    %1645 = vmatpush1.msra.mxu0 %v1301
    %1646 = vmatprep.subr.mxu0 %v1300
    %1647 = vmatpush1.msra.mxu0 %v1299
    %1648 = vmatprep.subr.mxu0 %v1298
    %1649 = vmatpush1.msra.mxu0 %v1297
    %1650 = vmatprep.subr.mxu0 %v1296
    %1651 = vmatpush1.msra.mxu0 %v1295
    %1652 = vmatprep.subr.mxu0 %v1294
    %1653 = vmatpush1.msra.mxu0 %v1293
    %1654 = vmatprep.subr.mxu0 0.0
    %1655 = vmatpush2.msra.mxu0 0.0
    %1656 = vmatprep.subr.mxu0 0.0
    %1657 = vmatpush2.msra.mxu0 0.0
    %1658 = vmatprep.subr.mxu0 0.0
    %1659 = vmatpush2.msra.mxu0 0.0
    %1660 = vmatprep.subr.mxu0 0.0
    %1661 = vmatpush2.msra.mxu0 0.0
    %1662 = vmatprep.subr.mxu0 0.0
    %1663 = vmatpush2.msra.mxu0 0.0
    %1664 = vmatprep.subr.mxu0 0.0
    %1665 = vmatpush2.msra.mxu0 0.0
    %1666 = vmatprep.subr.mxu0 0.0
    %1667 = vmatpush2.msra.mxu0 0.0
    %1668 = vmatprep.subr.mxu0 0.0
    %1669 = vmatpush2.msra.mxu0 0.0
    %1670 = vmatprep.subr.mxu0 0.0
    %1671 = vmatpush2.msra.mxu0 0.0
    %1672 = vmatprep.subr.mxu0 0.0
    %1673 = vmatpush2.msra.mxu0 0.0
    %1674 = vmatprep.subr.mxu0 0.0
    %1675 = vmatpush2.msra.mxu0 0.0
    %1676 = vmatprep.subr.mxu0 0.0
    %1677 = vmatpush2.msra.mxu0 0.0
    %1678 = vmatprep.subr.mxu0 0.0
    %1679 = vmatpush2.msra.mxu0 0.0
    %1680 = vmatprep.subr.mxu0 0.0
    %1681 = vmatpush2.msra.mxu0 0.0
    %1682 = vmatprep.subr.mxu0 0.0
    %1683 = vmatpush2.msra.mxu0 0.0
    %1684 = vmatprep.subr.mxu0 0.0
    %1685 = vmatpush2.msra.mxu0 0.0
    %1686 = vmatprep.mubr.f32.mxu0 0.0
    %1687 = vmatmul.mubr.f32.gmra.mxu0 %v1620
    %v1688 = vpop.f32.mrf.mxu0
    %v1689 = vadd.f32 0.0, %v1688
    %v1690 = vpop.f32.mrf.mxu0
    %v1691 = vadd.f32 0.0, %v1690
    %1692 = vdwg.mxu0
    %v1693 = vadd.f32 %v1615, %v1689
    %v1694 = vadd.f32 %v1616, %v1691
    %v1695 = vxor.u32 %v1693, 2147483648
    %v1696 = vmul.f32 %v1695, 1.442695
    %v1697 = vpow.pop %v1696
    %v1698 = vadd.f32 %v1697, 1.0
    %v1699 = vrcp.pop %v1698
    %v1700 = vmul.f32 1.0, %v1699
    %v1701 = vtanh.pop %v1694
    %v1702 = vxor.u32 %v1694, 2147483648
    %v1703 = vmul.f32 %v1702, 1.442695
    %v1704 = vpow.pop %v1703
    %v1705 = vadd.f32 %v1704, 1.0
    %v1706 = vrcp.pop %v1705
    %v1707 = vmul.f32 1.0, %v1706
    %v1708 = vmul.f32 %v1700, %v1612
    %v1709 = vmul.f32 %v1700, %v1701
    %1711 = vrot.lane.b32.xlu0 %v1709, 64
    %v1712 = vpop.permute.xlu0 %1711
    %v1714 = vadd.f32 %v1708, %v1712
    %v1715 = vtanh.pop %v1714
    %v1716 = vmul.f32 %v1707, %v1715
    %v1717 = vld [vmem:[#allocation2 + $0x40] sm:$0xff]
    %v1718 = vld [vmem:[#allocation2 + $0x48] sm:$0xff]
    %1720 = vrot.lane.b32.xlu0 %v1716, 64
    %v1721 = vpop.permute.xlu0 %1720
    %v1722 = vsel %vm269, %v1721, 0
    %1724 = vmatprep.subr.mxu0 0.0
    %1725 = vmatpush1.msra.mxu0 0.0
    %1726 = vmatprep.subr.mxu0 0.0
    %1727 = vmatpush1.msra.mxu0 0.0
    %1728 = vmatprep.subr.mxu0 0.0
    %1729 = vmatpush1.msra.mxu0 0.0
    %1730 = vmatprep.subr.mxu0 0.0
    %1731 = vmatpush1.msra.mxu0 0.0
    %1732 = vmatprep.subr.mxu0 0.0
    %1733 = vmatpush1.msra.mxu0 0.0
    %1734 = vmatprep.subr.mxu0 0.0
    %1735 = vmatpush1.msra.mxu0 0.0
    %1736 = vmatprep.subr.mxu0 0.0
    %1737 = vmatpush1.msra.mxu0 0.0
    %1738 = vmatprep.subr.mxu0 0.0
    %1739 = vmatpush1.msra.mxu0 0.0
    %1740 = vmatprep.subr.mxu0 %v1308
    %1741 = vmatpush1.msra.mxu0 %v1307
    %1742 = vmatprep.subr.mxu0 %v1306
    %1743 = vmatpush1.msra.mxu0 %v1305
    %1744 = vmatprep.subr.mxu0 %v1304
    %1745 = vmatpush1.msra.mxu0 %v1303
    %1746 = vmatprep.subr.mxu0 %v1302
    %1747 = vmatpush1.msra.mxu0 %v1301
    %1748 = vmatprep.subr.mxu0 %v1300
    %1749 = vmatpush1.msra.mxu0 %v1299
    %1750 = vmatprep.subr.mxu0 %v1298
    %1751 = vmatpush1.msra.mxu0 %v1297
    %1752 = vmatprep.subr.mxu0 %v1296
    %1753 = vmatpush1.msra.mxu0 %v1295
    %1754 = vmatprep.subr.mxu0 %v1294
    %1755 = vmatpush1.msra.mxu0 %v1293
    %1756 = vmatprep.subr.mxu0 0.0
    %1757 = vmatpush2.msra.mxu0 0.0
    %1758 = vmatprep.subr.mxu0 0.0
    %1759 = vmatpush2.msra.mxu0 0.0
    %1760 = vmatprep.subr.mxu0 0.0
    %1761 = vmatpush2.msra.mxu0 0.0
    %1762 = vmatprep.subr.mxu0 0.0
    %1763 = vmatpush2.msra.mxu0 0.0
    %1764 = vmatprep.subr.mxu0 0.0
    %1765 = vmatpush2.msra.mxu0 0.0
    %1766 = vmatprep.subr.mxu0 0.0
    %1767 = vmatpush2.msra.mxu0 0.0
    %1768 = vmatprep.subr.mxu0 0.0
    %1769 = vmatpush2.msra.mxu0 0.0
    %1770 = vmatprep.subr.mxu0 0.0
    %1771 = vmatpush2.msra.mxu0 0.0
    %1772 = vmatprep.subr.mxu0 0.0
    %1773 = vmatpush2.msra.mxu0 0.0
    %1774 = vmatprep.subr.mxu0 0.0
    %1775 = vmatpush2.msra.mxu0 0.0
    %1776 = vmatprep.subr.mxu0 0.0
    %1777 = vmatpush2.msra.mxu0 0.0
    %1778 = vmatprep.subr.mxu0 0.0
    %1779 = vmatpush2.msra.mxu0 0.0
    %1780 = vmatprep.subr.mxu0 0.0
    %1781 = vmatpush2.msra.mxu0 0.0
    %1782 = vmatprep.subr.mxu0 0.0
    %1783 = vmatpush2.msra.mxu0 0.0
    %1784 = vmatprep.subr.mxu0 0.0
    %1785 = vmatpush2.msra.mxu0 0.0
    %1786 = vmatprep.subr.mxu0 0.0
    %1787 = vmatpush2.msra.mxu0 0.0
    %1788 = vmatprep.mubr.f32.mxu0 0.0
    %1789 = vmatmul.mubr.f32.gmra.mxu0 %v1722
    %v1790 = vpop.f32.mrf.mxu0
    %v1791 = vadd.f32 0.0, %v1790
    %v1792 = vpop.f32.mrf.mxu0
    %v1793 = vadd.f32 0.0, %v1792
    %1794 = vdwg.mxu0
    %v1795 = vadd.f32 %v1717, %v1791
    %v1796 = vadd.f32 %v1718, %v1793
    %v1797 = vxor.u32 %v1795, 2147483648
    %v1798 = vmul.f32 %v1797, 1.442695
    %v1799 = vpow.pop %v1798
    %v1800 = vadd.f32 %v1799, 1.0
    %v1801 = vrcp.pop %v1800
    %v1802 = vmul.f32 1.0, %v1801
    %v1803 = vtanh.pop %v1796
    %v1804 = vxor.u32 %v1796, 2147483648
    %v1805 = vmul.f32 %v1804, 1.442695
    %v1806 = vpow.pop %v1805
    %v1807 = vadd.f32 %v1806, 1.0
    %v1808 = vrcp.pop %v1807
    %v1809 = vmul.f32 1.0, %v1808
    %v1810 = vmul.f32 %v1802, %v1714
    %v1811 = vmul.f32 %v1802, %v1803
    %1813 = vrot.lane.b32.xlu0 %v1811, 64
    %v1814 = vpop.permute.xlu0 %1813
    %v1816 = vadd.f32 %v1810, %v1814
    %v1817 = vtanh.pop %v1816
    %v1818 = vmul.f32 %v1809, %v1817
    %v1819 = vld [vmem:[#allocation2 + $0x50] sm:$0xff]
    %v1820 = vld [vmem:[#allocation2 + $0x58] sm:$0xff]
    %1822 = vrot.lane.b32.xlu0 %v1818, 64
    %v1823 = vpop.permute.xlu0 %1822
    %v1824 = vsel %vm269, %v1823, 0
    %1826 = vmatprep.subr.mxu0 0.0
    %1827 = vmatpush1.msra.mxu0 0.0
    %1828 = vmatprep.subr.mxu0 0.0
    %1829 = vmatpush1.msra.mxu0 0.0
    %1830 = vmatprep.subr.mxu0 0.0
    %1831 = vmatpush1.msra.mxu0 0.0
    %1832 = vmatprep.subr.mxu0 0.0
    %1833 = vmatpush1.msra.mxu0 0.0
    %1834 = vmatprep.subr.mxu0 0.0
    %1835 = vmatpush1.msra.mxu0 0.0
    %1836 = vmatprep.subr.mxu0 0.0
    %1837 = vmatpush1.msra.mxu0 0.0
    %1838 = vmatprep.subr.mxu0 0.0
    %1839 = vmatpush1.msra.mxu0 0.0
    %1840 = vmatprep.subr.mxu0 0.0
    %1841 = vmatpush1.msra.mxu0 0.0
    %1842 = vmatprep.subr.mxu0 %v1308
    %1843 = vmatpush1.msra.mxu0 %v1307
    %1844 = vmatprep.subr.mxu0 %v1306
    %1845 = vmatpush1.msra.mxu0 %v1305
    %1846 = vmatprep.subr.mxu0 %v1304
    %1847 = vmatpush1.msra.mxu0 %v1303
    %1848 = vmatprep.subr.mxu0 %v1302
    %1849 = vmatpush1.msra.mxu0 %v1301
    %1850 = vmatprep.subr.mxu0 %v1300
    %1851 = vmatpush1.msra.mxu0 %v1299
    %1852 = vmatprep.subr.mxu0 %v1298
    %1853 = vmatpush1.msra.mxu0 %v1297
    %1854 = vmatprep.subr.mxu0 %v1296
    %1855 = vmatpush1.msra.mxu0 %v1295
    %1856 = vmatprep.subr.mxu0 %v1294
    %1857 = vmatpush1.msra.mxu0 %v1293
    %1858 = vmatprep.subr.mxu0 0.0
    %1859 = vmatpush2.msra.mxu0 0.0
    %1860 = vmatprep.subr.mxu0 0.0
    %1861 = vmatpush2.msra.mxu0 0.0
    %1862 = vmatprep.subr.mxu0 0.0
    %1863 = vmatpush2.msra.mxu0 0.0
    %1864 = vmatprep.subr.mxu0 0.0
    %1865 = vmatpush2.msra.mxu0 0.0
    %1866 = vmatprep.subr.mxu0 0.0
    %1867 = vmatpush2.msra.mxu0 0.0
    %1868 = vmatprep.subr.mxu0 0.0
    %1869 = vmatpush2.msra.mxu0 0.0
    %1870 = vmatprep.subr.mxu0 0.0
    %1871 = vmatpush2.msra.mxu0 0.0
    %1872 = vmatprep.subr.mxu0 0.0
    %1873 = vmatpush2.msra.mxu0 0.0
    %1874 = vmatprep.subr.mxu0 0.0
    %1875 = vmatpush2.msra.mxu0 0.0
    %1876 = vmatprep.subr.mxu0 0.0
    %1877 = vmatpush2.msra.mxu0 0.0
    %1878 = vmatprep.subr.mxu0 0.0
    %1879 = vmatpush2.msra.mxu0 0.0
    %1880 = vmatprep.subr.mxu0 0.0
    %1881 = vmatpush2.msra.mxu0 0.0
    %1882 = vmatprep.subr.mxu0 0.0
    %1883 = vmatpush2.msra.mxu0 0.0
    %1884 = vmatprep.subr.mxu0 0.0
    %1885 = vmatpush2.msra.mxu0 0.0
    %1886 = vmatprep.subr.mxu0 0.0
    %1887 = vmatpush2.msra.mxu0 0.0
    %1888 = vmatprep.subr.mxu0 0.0
    %1889 = vmatpush2.msra.mxu0 0.0
    %1890 = vmatprep.mubr.f32.mxu0 0.0
    %1891 = vmatmul.mubr.f32.gmra.mxu0 %v1824
    %v1892 = vpop.f32.mrf.mxu0
    %v1893 = vadd.f32 0.0, %v1892
    %v1894 = vpop.f32.mrf.mxu0
    %v1895 = vadd.f32 0.0, %v1894
    %1896 = vdwg.mxu0
    %v1897 = vadd.f32 %v1819, %v1893
    %v1898 = vadd.f32 %v1820, %v1895
    %v1899 = vxor.u32 %v1897, 2147483648
    %v1900 = vmul.f32 %v1899, 1.442695
    %v1901 = vpow.pop %v1900
    %v1902 = vadd.f32 %v1901, 1.0
    %v1903 = vrcp.pop %v1902
    %v1904 = vmul.f32 1.0, %v1903
    %v1905 = vtanh.pop %v1898
    %v1906 = vxor.u32 %v1898, 2147483648
    %v1907 = vmul.f32 %v1906, 1.442695
    %v1908 = vpow.pop %v1907
    %v1909 = vadd.f32 %v1908, 1.0
    %v1910 = vrcp.pop %v1909
    %v1911 = vmul.f32 1.0, %v1910
    %v1912 = vmul.f32 %v1904, %v1816
    %v1913 = vmul.f32 %v1904, %v1905
    %1915 = vrot.lane.b32.xlu0 %v1913, 64
    %v1916 = vpop.permute.xlu0 %1915
    %v1918 = vadd.f32 %v1912, %v1916
    %v1919 = vtanh.pop %v1918
    %v1920 = vmul.f32 %v1911, %v1919
    %v1921 = vld [vmem:[#allocation2 + $0x60] sm:$0xff]
    %v1922 = vld [vmem:[#allocation2 + $0x68] sm:$0xff]
    %1924 = vrot.lane.b32.xlu0 %v1920, 64
    %v1925 = vpop.permute.xlu0 %1924
    %v1926 = vsel %vm269, %v1925, 0
    %1928 = vmatprep.subr.mxu0 0.0
    %1929 = vmatpush1.msra.mxu0 0.0
    %1930 = vmatprep.subr.mxu0 0.0
    %1931 = vmatpush1.msra.mxu0 0.0
    %1932 = vmatprep.subr.mxu0 0.0
    %1933 = vmatpush1.msra.mxu0 0.0
    %1934 = vmatprep.subr.mxu0 0.0
    %1935 = vmatpush1.msra.mxu0 0.0
    %1936 = vmatprep.subr.mxu0 0.0
    %1937 = vmatpush1.msra.mxu0 0.0
    %1938 = vmatprep.subr.mxu0 0.0
    %1939 = vmatpush1.msra.mxu0 0.0
    %1940 = vmatprep.subr.mxu0 0.0
    %1941 = vmatpush1.msra.mxu0 0.0
    %1942 = vmatprep.subr.mxu0 0.0
    %1943 = vmatpush1.msra.mxu0 0.0
    %1944 = vmatprep.subr.mxu0 %v1308
    %1945 = vmatpush1.msra.mxu0 %v1307
    %1946 = vmatprep.subr.mxu0 %v1306
    %1947 = vmatpush1.msra.mxu0 %v1305
    %1948 = vmatprep.subr.mxu0 %v1304
    %1949 = vmatpush1.msra.mxu0 %v1303
    %1950 = vmatprep.subr.mxu0 %v1302
    %1951 = vmatpush1.msra.mxu0 %v1301
    %1952 = vmatprep.subr.mxu0 %v1300
    %1953 = vmatpush1.msra.mxu0 %v1299
    %1954 = vmatprep.subr.mxu0 %v1298
    %1955 = vmatpush1.msra.mxu0 %v1297
    %1956 = vmatprep.subr.mxu0 %v1296
    %1957 = vmatpush1.msra.mxu0 %v1295
    %1958 = vmatprep.subr.mxu0 %v1294
    %1959 = vmatpush1.msra.mxu0 %v1293
    %1960 = vmatprep.subr.mxu0 0.0
    %1961 = vmatpush2.msra.mxu0 0.0
    %1962 = vmatprep.subr.mxu0 0.0
    %1963 = vmatpush2.msra.mxu0 0.0
    %1964 = vmatprep.subr.mxu0 0.0
    %1965 = vmatpush2.msra.mxu0 0.0
    %1966 = vmatprep.subr.mxu0 0.0
    %1967 = vmatpush2.msra.mxu0 0.0
    %1968 = vmatprep.subr.mxu0 0.0
    %1969 = vmatpush2.msra.mxu0 0.0
    %1970 = vmatprep.subr.mxu0 0.0
    %1971 = vmatpush2.msra.mxu0 0.0
    %1972 = vmatprep.subr.mxu0 0.0
    %1973 = vmatpush2.msra.mxu0 0.0
    %1974 = vmatprep.subr.mxu0 0.0
    %1975 = vmatpush2.msra.mxu0 0.0
    %1976 = vmatprep.subr.mxu0 0.0
    %1977 = vmatpush2.msra.mxu0 0.0
    %1978 = vmatprep.subr.mxu0 0.0
    %1979 = vmatpush2.msra.mxu0 0.0
    %1980 = vmatprep.subr.mxu0 0.0
    %1981 = vmatpush2.msra.mxu0 0.0
    %1982 = vmatprep.subr.mxu0 0.0
    %1983 = vmatpush2.msra.mxu0 0.0
    %1984 = vmatprep.subr.mxu0 0.0
    %1985 = vmatpush2.msra.mxu0 0.0
    %1986 = vmatprep.subr.mxu0 0.0
    %1987 = vmatpush2.msra.mxu0 0.0
    %1988 = vmatprep.subr.mxu0 0.0
    %1989 = vmatpush2.msra.mxu0 0.0
    %1990 = vmatprep.subr.mxu0 0.0
    %1991 = vmatpush2.msra.mxu0 0.0
    %1992 = vmatprep.mubr.f32.mxu0 0.0
    %1993 = vmatmul.mubr.f32.gmra.mxu0 %v1926
    %v1994 = vpop.f32.mrf.mxu0
    %v1995 = vadd.f32 0.0, %v1994
    %v1996 = vpop.f32.mrf.mxu0
    %v1997 = vadd.f32 0.0, %v1996
    %1998 = vdwg.mxu0
    %v1999 = vadd.f32 %v1921, %v1995
    %v2000 = vadd.f32 %v1922, %v1997
    %v2001 = vxor.u32 %v1999, 2147483648
    %v2002 = vmul.f32 %v2001, 1.442695
    %v2003 = vpow.pop %v2002
    %v2004 = vadd.f32 %v2003, 1.0
    %v2005 = vrcp.pop %v2004
    %v2006 = vmul.f32 1.0, %v2005
    %v2007 = vtanh.pop %v2000
    %v2008 = vxor.u32 %v2000, 2147483648
    %v2009 = vmul.f32 %v2008, 1.442695
    %v2010 = vpow.pop %v2009
    %v2011 = vadd.f32 %v2010, 1.0
    %v2012 = vrcp.pop %v2011
    %v2013 = vmul.f32 1.0, %v2012
    %v2014 = vmul.f32 %v2006, %v1918
    %v2015 = vmul.f32 %v2006, %v2007
    %2017 = vrot.lane.b32.xlu0 %v2015, 64
    %v2018 = vpop.permute.xlu0 %2017
    %v2020 = vadd.f32 %v2014, %v2018
    %v2021 = vtanh.pop %v2020
    %v2022 = vmul.f32 %v2013, %v2021
    %v2023 = vld [vmem:[#allocation2 + $0x70] sm:$0xff]
    %v2024 = vld [vmem:[#allocation2 + $0x78] sm:$0xff]
    %2026 = vrot.lane.b32.xlu0 %v2022, 64
    %v2027 = vpop.permute.xlu0 %2026
    %v2028 = vsel %vm269, %v2027, 0
    %2030 = vmatprep.subr.mxu0 0.0
    %2031 = vmatpush1.msra.mxu0 0.0
    %2032 = vmatprep.subr.mxu0 0.0
    %2033 = vmatpush1.msra.mxu0 0.0
    %2034 = vmatprep.subr.mxu0 0.0
    %2035 = vmatpush1.msra.mxu0 0.0
    %2036 = vmatprep.subr.mxu0 0.0
    %2037 = vmatpush1.msra.mxu0 0.0
    %2038 = vmatprep.subr.mxu0 0.0
    %2039 = vmatpush1.msra.mxu0 0.0
    %2040 = vmatprep.subr.mxu0 0.0
    %2041 = vmatpush1.msra.mxu0 0.0
    %2042 = vmatprep.subr.mxu0 0.0
    %2043 = vmatpush1.msra.mxu0 0.0
    %2044 = vmatprep.subr.mxu0 0.0
    %2045 = vmatpush1.msra.mxu0 0.0
    %2046 = vmatprep.subr.mxu0 %v1308
    %2047 = vmatpush1.msra.mxu0 %v1307
    %2048 = vmatprep.subr.mxu0 %v1306
    %2049 = vmatpush1.msra.mxu0 %v1305
    %2050 = vmatprep.subr.mxu0 %v1304
    %2051 = vmatpush1.msra.mxu0 %v1303
    %2052 = vmatprep.subr.mxu0 %v1302
    %2053 = vmatpush1.msra.mxu0 %v1301
    %2054 = vmatprep.subr.mxu0 %v1300
    %2055 = vmatpush1.msra.mxu0 %v1299
    %2056 = vmatprep.subr.mxu0 %v1298
    %2057 = vmatpush1.msra.mxu0 %v1297
    %2058 = vmatprep.subr.mxu0 %v1296
    %2059 = vmatpush1.msra.mxu0 %v1295
    %2060 = vmatprep.subr.mxu0 %v1294
    %2061 = vmatpush1.msra.mxu0 %v1293
    %2062 = vmatprep.subr.mxu0 0.0
    %2063 = vmatpush2.msra.mxu0 0.0
    %2064 = vmatprep.subr.mxu0 0.0
    %2065 = vmatpush2.msra.mxu0 0.0
    %2066 = vmatprep.subr.mxu0 0.0
    %2067 = vmatpush2.msra.mxu0 0.0
    %2068 = vmatprep.subr.mxu0 0.0
    %2069 = vmatpush2.msra.mxu0 0.0
    %2070 = vmatprep.subr.mxu0 0.0
    %2071 = vmatpush2.msra.mxu0 0.0
    %2072 = vmatprep.subr.mxu0 0.0
    %2073 = vmatpush2.msra.mxu0 0.0
    %2074 = vmatprep.subr.mxu0 0.0
    %2075 = vmatpush2.msra.mxu0 0.0
    %2076 = vmatprep.subr.mxu0 0.0
    %2077 = vmatpush2.msra.mxu0 0.0
    %2078 = vmatprep.subr.mxu0 0.0
    %2079 = vmatpush2.msra.mxu0 0.0
    %2080 = vmatprep.subr.mxu0 0.0
    %2081 = vmatpush2.msra.mxu0 0.0
    %2082 = vmatprep.subr.mxu0 0.0
    %2083 = vmatpush2.msra.mxu0 0.0
    %2084 = vmatprep.subr.mxu0 0.0
    %2085 = vmatpush2.msra.mxu0 0.0
    %2086 = vmatprep.subr.mxu0 0.0
    %2087 = vmatpush2.msra.mxu0 0.0
    %2088 = vmatprep.subr.mxu0 0.0
    %2089 = vmatpush2.msra.mxu0 0.0
    %2090 = vmatprep.subr.mxu0 0.0
    %2091 = vmatpush2.msra.mxu0 0.0
    %2092 = vmatprep.subr.mxu0 0.0
    %2093 = vmatpush2.msra.mxu0 0.0
    %2094 = vmatprep.mubr.f32.mxu0 0.0
    %2095 = vmatmul.mubr.f32.gmra.mxu0 %v2028
    %v2096 = vpop.f32.mrf.mxu0
    %v2097 = vadd.f32 0.0, %v2096
    %v2098 = vpop.f32.mrf.mxu0
    %v2099 = vadd.f32 0.0, %v2098
    %2100 = vdwg.mxu0
    %v2101 = vadd.f32 %v2023, %v2097
    %v2102 = vadd.f32 %v2024, %v2099
    %v2103 = vxor.u32 %v2101, 2147483648
    %v2104 = vmul.f32 %v2103, 1.442695
    %v2105 = vpow.pop %v2104
    %v2106 = vadd.f32 %v2105, 1.0
    %v2107 = vrcp.pop %v2106
    %v2108 = vmul.f32 1.0, %v2107
    %v2109 = vtanh.pop %v2102
    %v2110 = vxor.u32 %v2102, 2147483648
    %v2111 = vmul.f32 %v2110, 1.442695
    %v2112 = vpow.pop %v2111
    %v2113 = vadd.f32 %v2112, 1.0
    %v2114 = vrcp.pop %v2113
    %v2115 = vmul.f32 1.0, %v2114
    %v2116 = vmul.f32 %v2108, %v2020
    %v2117 = vmul.f32 %v2108, %v2109
    %2119 = vrot.lane.b32.xlu0 %v2117, 64
    %v2120 = vpop.permute.xlu0 %2119
    %v2122 = vadd.f32 %v2116, %v2120
    %v2123 = vtanh.pop %v2122
    %v2124 = vmul.f32 %v2115, %v2123
    %v2125 = vld [vmem:[#allocation9] sm:$0xff]
    %v2126 = vld [vmem:[#allocation9 + $0x8] sm:$0xff]
    %v2127 = vld [vmem:[#allocation9 + $0x10] sm:$0xff]
    %v2128 = vld [vmem:[#allocation9 + $0x18] sm:$0xff]
    %v2129 = vld [vmem:[#allocation9 + $0x20] sm:$0xff]
    %v2130 = vld [vmem:[#allocation9 + $0x28] sm:$0xff]
    %v2131 = vld [vmem:[#allocation9 + $0x30] sm:$0xff]
    %v2132 = vld [vmem:[#allocation9 + $0x38] sm:$0xff]
    %2133 = vrot.lane.b32.xlu0 %v1410, 32
    %v2134 = vpop.permute.xlu0 %2133
    %vm2135 = vcmask 261120
    %v2136 = vsel %vm2135, %v2134, 0
    %2138 = vmatprep.subr.mxu0 0.0
    %2139 = vmatpush1.msra.mxu0 0.0
    %2140 = vmatprep.subr.mxu0 0.0
    %2141 = vmatpush1.msra.mxu0 0.0
    %2142 = vmatprep.subr.mxu0 0.0
    %2143 = vmatpush1.msra.mxu0 0.0
    %2144 = vmatprep.subr.mxu0 0.0
    %2145 = vmatpush1.msra.mxu0 0.0
    %2146 = vmatprep.subr.mxu0 0.0
    %2147 = vmatpush1.msra.mxu0 0.0
    %2148 = vmatprep.subr.mxu0 0.0
    %2149 = vmatpush1.msra.mxu0 0.0
    %2150 = vmatprep.subr.mxu0 0.0
    %2151 = vmatpush1.msra.mxu0 0.0
    %2152 = vmatprep.subr.mxu0 0.0
    %2153 = vmatpush1.msra.mxu0 0.0
    %2154 = vmatprep.subr.mxu0 0.0
    %2155 = vmatpush1.msra.mxu0 0.0
    %2156 = vmatprep.subr.mxu0 0.0
    %2157 = vmatpush1.msra.mxu0 0.0
    %2158 = vmatprep.subr.mxu0 0.0
    %2159 = vmatpush1.msra.mxu0 0.0
    %2160 = vmatprep.subr.mxu0 0.0
    %2161 = vmatpush1.msra.mxu0 0.0
    %2162 = vmatprep.subr.mxu0 0.0
    %2163 = vmatpush1.msra.mxu0 %v2132
    %2164 = vmatprep.subr.mxu0 0.0
    %2165 = vmatpush1.msra.mxu0 %v2131
    %2166 = vmatprep.subr.mxu0 0.0
    %2167 = vmatpush1.msra.mxu0 %v2130
    %2168 = vmatprep.subr.mxu0 0.0
    %2169 = vmatpush1.msra.mxu0 %v2129
    %2170 = vmatprep.subr.mxu0 0.0
    %2171 = vmatpush2.msra.mxu0 0.0
    %2172 = vmatprep.subr.mxu0 0.0
    %2173 = vmatpush2.msra.mxu0 0.0
    %2174 = vmatprep.subr.mxu0 0.0
    %2175 = vmatpush2.msra.mxu0 0.0
    %2176 = vmatprep.subr.mxu0 0.0
    %2177 = vmatpush2.msra.mxu0 0.0
    %2178 = vmatprep.subr.mxu0 0.0
    %2179 = vmatpush2.msra.mxu0 0.0
    %2180 = vmatprep.subr.mxu0 0.0
    %2181 = vmatpush2.msra.mxu0 0.0
    %2182 = vmatprep.subr.mxu0 0.0
    %2183 = vmatpush2.msra.mxu0 0.0
    %2184 = vmatprep.subr.mxu0 0.0
    %2185 = vmatpush2.msra.mxu0 0.0
    %2186 = vmatprep.subr.mxu0 0.0
    %2187 = vmatpush2.msra.mxu0 0.0
    %2188 = vmatprep.subr.mxu0 0.0
    %2189 = vmatpush2.msra.mxu0 0.0
    %2190 = vmatprep.subr.mxu0 0.0
    %2191 = vmatpush2.msra.mxu0 0.0
    %2192 = vmatprep.subr.mxu0 0.0
    %2193 = vmatpush2.msra.mxu0 0.0
    %2194 = vmatprep.subr.mxu0 0.0
    %2195 = vmatpush2.msra.mxu0 0.0
    %2196 = vmatprep.subr.mxu0 0.0
    %2197 = vmatpush2.msra.mxu0 0.0
    %2198 = vmatprep.subr.mxu0 0.0
    %2199 = vmatpush2.msra.mxu0 0.0
    %2200 = vmatprep.subr.mxu0 0.0
    %2201 = vmatpush2.msra.mxu0 0.0
    %2202 = vmatprep.mubr.f32.mxu0 0.0
    %2203 = vmatmul.mubr.f32.gmra.mxu0 %v2136
    %v2204 = vpop.f32.mrf.mxu0
    %v2205 = vadd.f32 0.0, %v2204
    %v2206 = vpop.f32.mrf.mxu0
    %2207 = vdwg.mxu0
    %2209 = vrot.lane.b32.xlu0 %v2124, 64
    %v2210 = vpop.permute.xlu0 %2209
    %v2211 = vsel %vm2135, %v2210, 0
    %2213 = vmatprep.subr.mxu0 0.0
    %2214 = vmatpush1.msra.mxu0 0.0
    %2215 = vmatprep.subr.mxu0 0.0
    %2216 = vmatpush1.msra.mxu0 0.0
    %2217 = vmatprep.subr.mxu0 0.0
    %2218 = vmatpush1.msra.mxu0 0.0
    %2219 = vmatprep.subr.mxu0 0.0
    %2220 = vmatpush1.msra.mxu0 0.0
    %2221 = vmatprep.subr.mxu0 0.0
    %2222 = vmatpush1.msra.mxu0 0.0
    %2223 = vmatprep.subr.mxu0 0.0
    %2224 = vmatpush1.msra.mxu0 0.0
    %2225 = vmatprep.subr.mxu0 0.0
    %2226 = vmatpush1.msra.mxu0 0.0
    %2227 = vmatprep.subr.mxu0 0.0
    %2228 = vmatpush1.msra.mxu0 0.0
    %2229 = vmatprep.subr.mxu0 0.0
    %2230 = vmatpush1.msra.mxu0 0.0
    %2231 = vmatprep.subr.mxu0 0.0
    %2232 = vmatpush1.msra.mxu0 0.0
    %2233 = vmatprep.subr.mxu0 0.0
    %2234 = vmatpush1.msra.mxu0 0.0
    %2235 = vmatprep.subr.mxu0 0.0
    %2236 = vmatpush1.msra.mxu0 0.0
    %2237 = vmatprep.subr.mxu0 0.0
    %2238 = vmatpush1.msra.mxu0 %v2128
    %2239 = vmatprep.subr.mxu0 0.0
    %2240 = vmatpush1.msra.mxu0 %v2127
    %2241 = vmatprep.subr.mxu0 0.0
    %2242 = vmatpush1.msra.mxu0 %v2126
    %2243 = vmatprep.subr.mxu0 0.0
    %2244 = vmatpush1.msra.mxu0 %v2125
    %2245 = vmatprep.subr.mxu0 0.0
    %2246 = vmatpush2.msra.mxu0 0.0
    %2247 = vmatprep.subr.mxu0 0.0
    %2248 = vmatpush2.msra.mxu0 0.0
    %2249 = vmatprep.subr.mxu0 0.0
    %2250 = vmatpush2.msra.mxu0 0.0
    %2251 = vmatprep.subr.mxu0 0.0
    %2252 = vmatpush2.msra.mxu0 0.0
    %2253 = vmatprep.subr.mxu0 0.0
    %2254 = vmatpush2.msra.mxu0 0.0
    %2255 = vmatprep.subr.mxu0 0.0
    %2256 = vmatpush2.msra.mxu0 0.0
    %2257 = vmatprep.subr.mxu0 0.0
    %2258 = vmatpush2.msra.mxu0 0.0
    %2259 = vmatprep.subr.mxu0 0.0
    %2260 = vmatpush2.msra.mxu0 0.0
    %2261 = vmatprep.subr.mxu0 0.0
    %2262 = vmatpush2.msra.mxu0 0.0
    %2263 = vmatprep.subr.mxu0 0.0
    %2264 = vmatpush2.msra.mxu0 0.0
    %2265 = vmatprep.subr.mxu0 0.0
    %2266 = vmatpush2.msra.mxu0 0.0
    %2267 = vmatprep.subr.mxu0 0.0
    %2268 = vmatpush2.msra.mxu0 0.0
    %2269 = vmatprep.subr.mxu0 0.0
    %2270 = vmatpush2.msra.mxu0 0.0
    %2271 = vmatprep.subr.mxu0 0.0
    %2272 = vmatpush2.msra.mxu0 0.0
    %2273 = vmatprep.subr.mxu0 0.0
    %2274 = vmatpush2.msra.mxu0 0.0
    %2275 = vmatprep.subr.mxu0 0.0
    %2276 = vmatpush2.msra.mxu0 0.0
    %2277 = vmatprep.mubr.f32.mxu0 0.0
    %2278 = vmatmul.mubr.f32.gmra.mxu0 %v2211
    %v2279 = vpop.f32.mrf.mxu0
    %v2280 = vadd.f32 %v2205, %v2279
    %v2281 = vpop.f32.mrf.mxu0
    %2282 = vdwg.mxu0
    %v2283 = vld [vmem:[#allocation9 + $0x40] sm:$0x1]
    %v2284 = vlaneseq
    %v2285 = vshrl.u32 %v2284, 7
    %v2286 = vsub.s32 0, %v2285
    %v2287 = vrot.slane %v2283, %v2286
    %v2288 = vadd.f32 %v2280, %v2287
    %v2289 = vld [vmem:[#allocation9 + $0x48] sm:$0xff]
    %v2290 = vld [vmem:[#allocation9 + $0x50] sm:$0xff]
    %v2291 = vld [vmem:[#allocation9 + $0x58] sm:$0xff]
    %v2292 = vld [vmem:[#allocation9 + $0x60] sm:$0xff]
    %v2293 = vld [vmem:[#allocation9 + $0x68] sm:$0xff]
    %v2294 = vld [vmem:[#allocation9 + $0x70] sm:$0xff]
    %v2295 = vld [vmem:[#allocation9 + $0x78] sm:$0xff]
    %v2296 = vld [vmem:[#allocation9 + $0x80] sm:$0xff]
    %v2297 = vld [vmem:[#allocation9 + $0x88] sm:$0xff]
    %v2298 = vld [vmem:[#allocation9 + $0x90] sm:$0xff]
    %v2299 = vld [vmem:[#allocation9 + $0x98] sm:$0xff]
    %v2300 = vld [vmem:[#allocation9 + $0xa0] sm:$0xff]
    %v2301 = vld [vmem:[#allocation9 + $0xa8] sm:$0xff]
    %v2302 = vld [vmem:[#allocation9 + $0xb0] sm:$0xff]
    %v2303 = vld [vmem:[#allocation9 + $0xb8] sm:$0xff]
    %v2304 = vld [vmem:[#allocation9 + $0xc0] sm:$0xff]
    %v2305 = vld [vmem:[#allocation9 + $0xc8] sm:$0x1]
    %v2306 = vlaneseq
    %v2307 = vshrl.u32 %v2306, 7
    %v2308 = vsub.s32 0, %v2307
    %v2309 = vrot.slane %v2305, %v2308
    %2310 = vmatprep.subr.mxu0 0.0
    %2311 = vmatpush1.msra.mxu0 %v2304
    %2312 = vmatprep.subr.mxu0 0.0
    %2313 = vmatpush1.msra.mxu0 %v2303
    %2314 = vmatprep.subr.mxu0 0.0
    %2315 = vmatpush1.msra.mxu0 %v2302
    %2316 = vmatprep.subr.mxu0 0.0
    %2317 = vmatpush1.msra.mxu0 %v2301
    %2318 = vmatprep.subr.mxu0 0.0
    %2319 = vmatpush1.msra.mxu0 %v2300
    %2320 = vmatprep.subr.mxu0 0.0
    %2321 = vmatpush1.msra.mxu0 %v2299
    %2322 = vmatprep.subr.mxu0 0.0
    %2323 = vmatpush1.msra.mxu0 %v2298
    %2324 = vmatprep.subr.mxu0 0.0
    %2325 = vmatpush1.msra.mxu0 %v2297
    %2326 = vmatprep.subr.mxu0 0.0
    %2327 = vmatpush1.msra.mxu0 %v2296
    %2328 = vmatprep.subr.mxu0 0.0
    %2329 = vmatpush1.msra.mxu0 %v2295
    %2330 = vmatprep.subr.mxu0 0.0
    %2331 = vmatpush1.msra.mxu0 %v2294
    %2332 = vmatprep.subr.mxu0 0.0
    %2333 = vmatpush1.msra.mxu0 %v2293
    %2334 = vmatprep.subr.mxu0 0.0
    %2335 = vmatpush1.msra.mxu0 %v2292
    %2336 = vmatprep.subr.mxu0 0.0
    %2337 = vmatpush1.msra.mxu0 %v2291
    %2338 = vmatprep.subr.mxu0 0.0
    %2339 = vmatpush1.msra.mxu0 %v2290
    %2340 = vmatprep.subr.mxu0 0.0
    %2341 = vmatpush1.msra.mxu0 %v2289
    %2342 = vmatprep.subr.mxu0 0.0
    %2343 = vmatpush2.msra.mxu0 0.0
    %2344 = vmatprep.subr.mxu0 0.0
    %2345 = vmatpush2.msra.mxu0 0.0
    %2346 = vmatprep.subr.mxu0 0.0
    %2347 = vmatpush2.msra.mxu0 0.0
    %2348 = vmatprep.subr.mxu0 0.0
    %2349 = vmatpush2.msra.mxu0 0.0
    %2350 = vmatprep.subr.mxu0 0.0
    %2351 = vmatpush2.msra.mxu0 0.0
    %2352 = vmatprep.subr.mxu0 0.0
    %2353 = vmatpush2.msra.mxu0 0.0
    %2354 = vmatprep.subr.mxu0 0.0
    %2355 = vmatpush2.msra.mxu0 0.0
    %2356 = vmatprep.subr.mxu0 0.0
    %2357 = vmatpush2.msra.mxu0 0.0
    %2358 = vmatprep.subr.mxu0 0.0
    %2359 = vmatpush2.msra.mxu0 0.0
    %2360 = vmatprep.subr.mxu0 0.0
    %2361 = vmatpush2.msra.mxu0 0.0
    %2362 = vmatprep.subr.mxu0 0.0
    %2363 = vmatpush2.msra.mxu0 0.0
    %2364 = vmatprep.subr.mxu0 0.0
    %2365 = vmatpush2.msra.mxu0 0.0
    %2366 = vmatprep.subr.mxu0 0.0
    %2367 = vmatpush2.msra.mxu0 0.0
    %2368 = vmatprep.subr.mxu0 0.0
    %2369 = vmatpush2.msra.mxu0 0.0
    %2370 = vmatprep.subr.mxu0 0.0
    %2371 = vmatpush2.msra.mxu0 0.0
    %2372 = vmatprep.subr.mxu0 0.0
    %2373 = vmatpush2.msra.mxu0 0.0
    %2374 = vmatprep.mubr.f32.mxu0 0.0
    %2375 = vmatmul.mubr.f32.gmra.mxu0 %v2288
    %v2376 = vpop.f32.mrf.mxu0
    %v2377 = vadd.f32 %v2309, %v2376
    %v2378 = vpop.f32.mrf.mxu0
    %2379 = vdwg.mxu0
    %2380 = vst [vmem:[#allocation10] sm:$0xff] %v2377
    // Predicated region
    $region42: #{tpu_custom_call.1} parent=1 // pred_check
      _
    $region43: #{tpu_custom_call.1} parent=1 // pred_check_branch
      %2382 = sbr.rel (0) target = $region45
    $region44: #{tpu_custom_call.1} parent=1 // pred_region
      %s2384 = ssub.s32 128, 128
      %2385 = vsyncadd [#allocation6], %s2384
      %s2387 = sshll.u32 [#allocation10], 4
      %s2388 = int_to_ptr.vmem [resolvable:$true] %s2387
      %2390 = dma.vmem_to_hbm [thread:$0]  %s2388, 128, %s7, [#allocation6]
    $region45: #{tpu_custom_call.1} parent=1 // pred_fallthru
      _
    // Predicated region
    $region46: #{tpu_custom_call.1} parent=1 // pred_check
      _
    $region47: #{tpu_custom_call.1} parent=1 // pred_check_branch
      %2392 = sbr.rel (0) target = $region49
    $region48: #{tpu_custom_call.1} parent=1 // pred_region
      %2393 = dma.done [#allocation6], 128
    $region49: #{tpu_custom_call.1} parent=1 // pred_fallthru
      _
    %2394 = vsyncpa [#allocation5], 1
    %2395 = vsyncpa [#allocation8], 1
    %2396 = vsyncpa [#allocation6], 1

</llo_original>
